<compile_context>
chip_gen: v6e
topology: v6e:2x2x1
jax: 0.10.0
libtpu: 0.0.40
codegen_flags: <defaults>
</compile_context>

<pallas_src>
import jax
import jax.numpy as jnp
from jax.experimental import pallas as pl
from jax.experimental.pallas import tpu as pltpu

D_MODEL = 32
N_HEADS = 2
HEAD_K = D_MODEL // N_HEADS
DD_HIDDEN = 32      # LoRA hidden dim of the 5 DDLerp loras
DECAY_HIDDEN = 64   # LoRA hidden dim of decay_lora
LN_EPS = 1e-5       # nn.LayerNorm default
GN_EPS = 0.00064    # nn.GroupNorm eps from the module


# ------------------------------------------------------------------ the kernel
def _time_mixer_kernel(x_ref, xst_ref, kv_ref,
                       lnw_ref, lnb_ref, pmix_ref,
                       ddwa_ref, ddwb_ref, ddb_ref,
                       projw_ref,
                       dwa_ref, dwb_ref, dbase_ref,
                       u_ref, gnw_ref, gnb_ref, wout_ref,
                       y_ref, xlast_ref, kvout_ref,
                       wkv_scr):
    f32 = jnp.float32
    M, C = x_ref.shape
    H = N_HEADS
    K = C // H

    x = x_ref[...].astype(f32)

    # ---- LayerNorm prenorm --------------------------------------------------
    mean = jnp.mean(x, axis=-1, keepdims=True)
    var = jnp.mean(jnp.square(x - mean), axis=-1, keepdims=True)
    x_ln = (x - mean) * jax.lax.rsqrt(var + LN_EPS) * lnw_ref[...] + lnb_ref[...]

    # ---- token shift (B == 1): x_shift[t] = x_ln[t-1], x_shift[0] = x_state --
    ri = jax.lax.broadcasted_iota(jnp.int32, (M, M), 0)
    ci = jax.lax.broadcasted_iota(jnp.int32, (M, M), 1)
    shift_mat = (ri == ci + 1).astype(f32)
    x_prev = jnp.dot(shift_mat, x_ln, preferred_element_type=f32)   # row 0 = 0
    row0 = jax.lax.broadcasted_iota(jnp.int32, (M, C), 0) == 0
    x_shift = jnp.where(row0, jnp.broadcast_to(xst_ref[...], (M, C)), x_prev)
    delta = x_shift - x_ln

    # ---- premix lerp + fused 5x DDLerp LoRA ---------------------------------
    x_pre = x_ln + pmix_ref[...] * delta
    h5 = jnp.tanh(jnp.dot(x_pre, ddwa_ref[...], preferred_element_type=f32))
    mix = ddb_ref[...] + jnp.dot(h5, ddwb_ref[...], preferred_element_type=f32)

    # replicate x_ln / delta across the 4 lane blocks [r|k|v|g] via a 0/1 matmul
    si = jax.lax.broadcasted_iota(jnp.int32, (C, 4 * C), 0)
    li = jax.lax.broadcasted_iota(jnp.int32, (C, 4 * C), 1)
    rep_mask = None
    for b in range(4):
        m = (li == si + b * C)
        rep_mask = m if rep_mask is None else jnp.logical_or(rep_mask, m)
    rep4 = rep_mask.astype(f32)
    x_rep = jnp.dot(x_ln, rep4, preferred_element_type=f32)
    d_rep = jnp.dot(delta, rep4, preferred_element_type=f32)
    dd4 = x_rep + mix[:, 0:4 * C] * d_rep              # [rx | kx | vx | gx]
    dd_w = x_ln + mix[:, 4 * C:5 * C] * delta          # wx branch

    # ---- r/k/v/gate projections: single block-diagonal (M,4C)@(4C,4C) matmul
    proj = jnp.dot(dd4, projw_ref[...], preferred_element_type=f32)
    gate = proj[:, 3 * C:4 * C]

    # ---- decay LoRA -> w = exp(-exp(.)) -------------------------------------
    hd = jnp.tanh(jnp.dot(dd_w, dwa_ref[...], preferred_element_type=f32))
    w_mix = dbase_ref[...] + jnp.dot(hd, dwb_ref[...], preferred_element_type=f32)
    w_dec = jnp.exp(-jnp.exp(w_mix))

    # ---- per-head block-structure constants (built once) --------------------
    ai = jax.lax.broadcasted_iota(jnp.int32, (C, C), 0)
    bi = jax.lax.broadcasted_iota(jnp.int32, (C, C), 1)
    eye = (ai == bi).astype(f32)
    bm = None                                           # same-head block mask
    for h in range(H):
        rsel = jnp.logical_and(ai >= h * K, ai < (h + 1) * K)
        csel = jnp.logical_and(bi >= h * K, bi < (h + 1) * K)
        m = jnp.logical_and(rsel, csel)
        bm = m if bm is None else jnp.logical_or(bm, m)
    bm_f = bm.astype(f32)

    u_row = u_ref[...]                                  # (1, C), per k-index
    s = kv_ref[...].astype(f32)                         # (C, C) block-diag state

    # ---- WKV recurrence: statically unrolled over T, state stays in vregs ---
    # TODO(synk): for long sequences switch to the chunked (Tc x Tc) matmul
    # formulation (or a pl.loop with dynamic row slices); the static unroll is
    # sized for decode-scale T.
    for t in range(M):
        r_row = proj[t:t + 1, 0:C]                      # (1, C)
        k_row = proj[t:t + 1, C:2 * C]
        v_row = proj[t:t + 1, 2 * C:3 * C]
        w_row = w_dec[t:t + 1, :]
        # out = r @ (S + (k v^T)*u)  ==  r @ S + (sum_i r_i u_i k_i) * v
        coef = jnp.dot(r_row * u_row * k_row, bm_f, preferred_element_type=f32)
        wkv_scr[t:t + 1, :] = (jnp.dot(r_row, s, preferred_element_type=f32)
                               + coef * v_row)
        # S <- diag(w) @ S + block-masked k v^T
        d_w = eye * w_row
        d_k = eye * k_row
        v_b = bm_f * v_row
        s = (jnp.dot(d_w, s, preferred_element_type=f32)
             + jnp.dot(d_k, v_b, preferred_element_type=f32))

    kvout_ref[...] = s.astype(kvout_ref.dtype)

    # ---- GroupNorm (group = head) + silu(gate) + out proj + residual --------
    wkv = wkv_scr[...]
    inv_k = 1.0 / K
    gmean = jnp.dot(wkv, bm_f, preferred_element_type=f32) * inv_k
    cent = wkv - gmean
    gvar = jnp.dot(cent * cent, bm_f, preferred_element_type=f32) * inv_k
    gn = cent * jax.lax.rsqrt(gvar + GN_EPS) * gnw_ref[...] + gnb_ref[...]
    gated = gn * (gate * jax.nn.sigmoid(gate))
    out = jnp.dot(gated, wout_ref[...], preferred_element_type=f32)
    y_ref[...] = (x_ln + out).astype(y_ref.dtype)
    xlast_ref[...] = x_ln[M - 1:M, :].astype(xlast_ref.dtype)


# --------------------------------------------------------------- full forward
def time_mixer_forward(packed, x, x_state, kv_state):
    B, T, C = x.shape
    H, K = N_HEADS, C // N_HEADS
    assert B == 1, "reference w.view(T, H, K, 1) implies B == 1"
    M = B * T

    x2 = x.reshape(M, C)
    xst = x_state.reshape(1, C)

    # Layout plumbing only: embed per-head (K,K) states block-diagonally into
    # a single (C,C) matrix so the kernel's recurrence is plain matmul/VPU ops.
    kv_blk = jnp.zeros((C, C), jnp.float32)
    for h in range(H):
        kv_blk = kv_blk.at[h * K:(h + 1) * K, h * K:(h + 1) * K].set(
            kv_state[0, h].astype(jnp.float32))

    inputs = (x2, xst, kv_blk,
              packed['ln_w'], packed['ln_b'], packed['w_premix'],
              packed['dd_wa_cat'], packed['dd_wb_blk'], packed['dd_base_cat'],
              packed['proj_blk'],
              packed['decay_wa'], packed['decay_wb'], packed['decay_base'],
              packed['u_row'], packed['gn_w'], packed['gn_b'], packed['w_out'])

    out_shapes = (jax.ShapeDtypeStruct((M, C), jnp.float32),
                  jax.ShapeDtypeStruct((1, C), jnp.float32),
                  jax.ShapeDtypeStruct((C, C), jnp.float32))

    y2, xlast, kv_blk_out = pl.pallas_call(
        _time_mixer_kernel,
        out_shape=out_shapes,
        grid=(1,),
        in_specs=[pl.BlockSpec(a.shape, lambda i: (0, 0)) for a in inputs],
        out_specs=[pl.BlockSpec(o.shape, lambda i: (0, 0)) for o in out_shapes],
        scratch_shapes=[pltpu.VMEM((M, C), jnp.float32)],      # wkv outputs
        compiler_params=pltpu.CompilerParams(
            dimension_semantics=("arbitrary",)),
    )(*inputs)

    # Extract the per-head diagonal blocks back to (B, H, K, K).
    kv_new = jnp.stack(
        [kv_blk_out[h * K:(h + 1) * K, h * K:(h + 1) * K] for h in range(H)],
        axis=0)[None]
    return y2.reshape(B, T, C), xlast.reshape(B, C), kv_new


# ------------------------------------------------------------------- params
def init_params(key):
    C = D_MODEL
    ks = jax.random.split(key, 16)

    def nrm(k, shape, scale=0.1):
        return scale * jax.random.normal(k, shape, dtype=jnp.float32)

    # Linear weights are stored (in_features, out_features) so y = x @ W.
    return dict(
        ln_w=1.0 + nrm(ks[0], (C,)),
        ln_b=nrm(ks[1], (C,)),
        w_premix=nrm(ks[2], (C,)),
        dd_base=nrm(ks[3], (5, 1, C)),
        dd_wa=nrm(ks[4], (5, C, DD_HIDDEN)),
        dd_wb=nrm(ks[5], (5, DD_HIDDEN, C)),
        decay_base=jnp.ones((C,), jnp.float32),          # init_value = ones
        decay_wa=nrm(ks[6], (C, DECAY_HIDDEN)),
        decay_wb=nrm(ks[7], (DECAY_HIDDEN, C)),
        w_r=nrm(ks[8], (C, C)),
        w_k=nrm(ks[9], (C, C)),
        w_v=nrm(ks[10], (C, C)),
        w_g=nrm(ks[11], (C, C)),
        w_out=nrm(ks[12], (C, C)),
        u=1.0 + nrm(ks[13], (N_HEADS, HEAD_K)),
        gn_w=1.0 + nrm(ks[14], (C,)),
        gn_b=nrm(ks[15], (C,)),
    )


def _block_diag(blocks):
    n = len(blocks)
    rows = []
    for i, b in enumerate(blocks):
        row = [b if j == i else jnp.zeros((b.shape[0], blocks[j].shape[1]),
                                          b.dtype) for j in range(n)]
        rows.append(jnp.concatenate(row, axis=1))
    return jnp.concatenate(rows, axis=0)


def pack_params(p):
    """One-time packing of per-branch weights into fused/block-diag matrices."""
    C = D_MODEL
    return dict(
        ln_w=p['ln_w'].reshape(1, C),
        ln_b=p['ln_b'].reshape(1, C),
        w_premix=p['w_premix'].reshape(1, C),
        dd_wa_cat=jnp.concatenate([p['dd_wa'][i] for i in range(5)], axis=1),
        dd_wb_blk=_block_diag([p['dd_wb'][i] for i in range(5)]),
        dd_base_cat=p['dd_base'].reshape(1, 5 * C),
        proj_blk=_block_diag([p['w_r'], p['w_k'], p['w_v'], p['w_g']]),
        decay_wa=p['decay_wa'],
        decay_wb=p['decay_wb'],
        decay_base=p['decay_base'].reshape(1, C),
        u_row=p['u'].reshape(1, C),
        gn_w=p['gn_w'].reshape(1, C),
        gn_b=p['gn_b'].reshape(1, C),
        w_out=p['w_out'],
    )


# ------------------------------------------- pure-JAX reference (for checking)
def time_mixer_reference(p, x, x_state, kv_state):
    B, T, C = x.shape
    H, K = N_HEADS, C // N_HEADS
    xf = x.astype(jnp.float32)
    mean = jnp.mean(xf, -1, keepdims=True)
    var = jnp.mean(jnp.square(xf - mean), -1, keepdims=True)
    x_ln = (xf - mean) * jax.lax.rsqrt(var + LN_EPS) * p['ln_w'] + p['ln_b']
    x_shift = jnp.concatenate([x_state[:, None, :], x_ln[:, :-1]], axis=1)
    x_pre = x_ln + p['w_premix'] * (x_shift - x_ln)

    def ddlerp(i):
        h = jnp.tanh(x_pre @ p['dd_wa'][i])
        mix = p['dd_base'][i] + h @ p['dd_wb'][i]
        return x_ln + mix * (x_shift - x_ln)

    rx, kx, vx, gx, wx = [ddlerp(i) for i in range(5)]
    r = (rx @ p['w_r']).reshape(B, T, H, 1, K)
    k = (kx @ p['w_k']).reshape(B, T, H, K, 1)
    v = (vx @ p['w_v']).reshape(B, T, H, 1, K)
    gate = gx @ p['w_g']
    w = p['decay_base'] + jnp.tanh(wx @ p['decay_wa']) @ p['decay_wb']
    w = jnp.exp(-jnp.exp(w.reshape(T, H, K, 1)))
    u = p['u'].reshape(H, K, 1)

    s = kv_state.astype(jnp.float32)
    outs = []
    for t in range(T):
        kv = k[:, t] @ v[:, t]
        y = s + kv * u
        o = r[:, t] @ y
        outs.append(o[:, :, 0, :])
        s = s * w[t] + kv
    out = jnp.stack(outs, axis=1).reshape(B * T, C)

    gm = out.reshape(B * T, H, K)
    mg = jnp.mean(gm, -1, keepdims=True)
    vg = jnp.mean(jnp.square(gm - mg), -1, keepdims=True)
    gn = ((gm - mg) * jax.lax.rsqrt(vg + GN_EPS)).reshape(B * T, C)
    gn = gn * p['gn_w'] + p['gn_b']
    out = gn.reshape(B, T, C) * jax.nn.silu(gate)
    out = out @ p['w_out']
    return x_ln + out, x_ln[:, -1], s


if __name__ == "__main__":
    key = jax.random.PRNGKey(0)
    kp, kx, kst, kkv = jax.random.split(key, 4)
    params = init_params(kp)
    packed = pack_params(params)

    B, T = 1, 8
    x = jax.random.normal(kx, (B, T, D_MODEL), dtype=jnp.float32)
    x_state = jax.random.normal(kst, (B, D_MODEL), dtype=jnp.float32)
    kv_state = 0.1 * jax.random.normal(
        kkv, (B, N_HEADS, HEAD_K, HEAD_K), dtype=jnp.float32)

    fwd = jax.jit(time_mixer_forward)
    y, x_last, kv_new = fwd(packed, x, x_state, kv_state)
    jax.block_until_ready((y, x_last, kv_new))

    assert y.shape == (B, T, D_MODEL)
    assert x_last.shape == (B, D_MODEL)
    assert kv_new.shape == (B, N_HEADS, HEAD_K, HEAD_K)

    # correctness vs. a pure-JAX transcription of the PyTorch module
    y_ref, xl_ref, kv_ref = jax.jit(time_mixer_reference)(
        params, x, x_state, kv_state)
    assert bool(jnp.allclose(y, y_ref, rtol=2e-2, atol=2e-2))
    assert bool(jnp.allclose(x_last, xl_ref, rtol=2e-2, atol=2e-2))
    assert bool(jnp.allclose(kv_new, kv_ref, rtol=2e-2, atol=2e-2))

    print("KERNEL_OK")
</pallas_src>

<mosaic_0001>
module attributes {stable_mosaic.version = 11 : i64} {
  func.func @_time_mixer_kernel(%arg0: i32, %arg1: memref<8x32xf32, #tpu.memory_space<vmem>>, %arg2: memref<1x32xf32, #tpu.memory_space<vmem>>, %arg3: memref<32x32xf32, #tpu.memory_space<vmem>>, %arg4: memref<1x32xf32, #tpu.memory_space<vmem>>, %arg5: memref<1x32xf32, #tpu.memory_space<vmem>>, %arg6: memref<1x32xf32, #tpu.memory_space<vmem>>, %arg7: memref<32x160xf32, #tpu.memory_space<vmem>>, %arg8: memref<160x160xf32, #tpu.memory_space<vmem>>, %arg9: memref<1x160xf32, #tpu.memory_space<vmem>>, %arg10: memref<128x128xf32, #tpu.memory_space<vmem>>, %arg11: memref<32x64xf32, #tpu.memory_space<vmem>>, %arg12: memref<64x32xf32, #tpu.memory_space<vmem>>, %arg13: memref<1x32xf32, #tpu.memory_space<vmem>>, %arg14: memref<1x32xf32, #tpu.memory_space<vmem>>, %arg15: memref<1x32xf32, #tpu.memory_space<vmem>>, %arg16: memref<1x32xf32, #tpu.memory_space<vmem>>, %arg17: memref<32x32xf32, #tpu.memory_space<vmem>>, %arg18: memref<8x32xf32, #tpu.memory_space<vmem>>, %arg19: memref<1x32xf32, #tpu.memory_space<vmem>>, %arg20: memref<32x32xf32, #tpu.memory_space<vmem>>, %arg21: memref<8x32xf32, #tpu.memory_space<vmem>>) attributes {dimension_semantics = [#tpu.dimension_semantics<arbitrary>], iteration_bounds = array<i64: 1>, scalar_prefetch = 0 : i64, scratch_operands = 1 : i64, tpu.core_type = #tpu.core_type<tc>, window_params = [{pipeline_mode = #tpu.pipeline_mode<synchronous>, transform_indices = @transform_0, window_bounds = array<i64: 8, 32>}, {pipeline_mode = #tpu.pipeline_mode<synchronous>, transform_indices = @transform_1, window_bounds = array<i64: 1, 32>}, {pipeline_mode = #tpu.pipeline_mode<synchronous>, transform_indices = @transform_2, window_bounds = array<i64: 32, 32>}, {pipeline_mode = #tpu.pipeline_mode<synchronous>, transform_indices = @transform_3, window_bounds = array<i64: 1, 32>}, {pipeline_mode = #tpu.pipeline_mode<synchronous>, transform_indices = @transform_4, window_bounds = array<i64: 1, 32>}, {pipeline_mode = #tpu.pipeline_mode<synchronous>, transform_indices = @transform_5, window_bounds = array<i64: 1, 32>}, {pipeline_mode = #tpu.pipeline_mode<synchronous>, transform_indices = @transform_6, window_bounds = array<i64: 32, 160>}, {pipeline_mode = #tpu.pipeline_mode<synchronous>, transform_indices = @transform_7, window_bounds = array<i64: 160, 160>}, {pipeline_mode = #tpu.pipeline_mode<synchronous>, transform_indices = @transform_8, window_bounds = array<i64: 1, 160>}, {pipeline_mode = #tpu.pipeline_mode<synchronous>, transform_indices = @transform_9, window_bounds = array<i64: 128, 128>}, {pipeline_mode = #tpu.pipeline_mode<synchronous>, transform_indices = @transform_10, window_bounds = array<i64: 32, 64>}, {pipeline_mode = #tpu.pipeline_mode<synchronous>, transform_indices = @transform_11, window_bounds = array<i64: 64, 32>}, {pipeline_mode = #tpu.pipeline_mode<synchronous>, transform_indices = @transform_12, window_bounds = array<i64: 1, 32>}, {pipeline_mode = #tpu.pipeline_mode<synchronous>, transform_indices = @transform_13, window_bounds = array<i64: 1, 32>}, {pipeline_mode = #tpu.pipeline_mode<synchronous>, transform_indices = @transform_14, window_bounds = array<i64: 1, 32>}, {pipeline_mode = #tpu.pipeline_mode<synchronous>, transform_indices = @transform_15, window_bounds = array<i64: 1, 32>}, {pipeline_mode = #tpu.pipeline_mode<synchronous>, transform_indices = @transform_16, window_bounds = array<i64: 32, 32>}, {pipeline_mode = #tpu.pipeline_mode<synchronous>, transform_indices = @transform_17, window_bounds = array<i64: 8, 32>}, {pipeline_mode = #tpu.pipeline_mode<synchronous>, transform_indices = @transform_18, window_bounds = array<i64: 1, 32>}, {pipeline_mode = #tpu.pipeline_mode<synchronous>, transform_indices = @transform_19, window_bounds = array<i64: 32, 32>}]} {
    %c0 = arith.constant 0 : index
    %c0_0 = arith.constant 0 : index
    %0 = vector.load %arg1[%c0, %c0_0] : memref<8x32xf32, #tpu.memory_space<vmem>>, vector<8x32xf32>
    %cst = arith.constant dense<0.000000e+00> : vector<8xf32>
    %1 = vector.multi_reduction <add>, %0, %cst [1] : vector<8x32xf32> to vector<8xf32>
    %2 = vector.shape_cast %1 : vector<8xf32> to vector<8x1xf32>
    %cst_1 = arith.constant 3.200000e+01 : f32
    %3 = vector.broadcast %cst_1 : f32 to vector<8x1xf32>
    %4 = arith.divf %2, %3 : vector<8x1xf32>
    %5 = vector.broadcast %4 : vector<8x1xf32> to vector<8x32xf32>
    %6 = arith.subf %0, %5 : vector<8x32xf32>
    %7 = arith.mulf %6, %6 : vector<8x32xf32>
    %cst_2 = arith.constant dense<0.000000e+00> : vector<8xf32>
    %8 = vector.multi_reduction <add>, %7, %cst_2 [1] : vector<8x32xf32> to vector<8xf32>
    %9 = vector.shape_cast %8 : vector<8xf32> to vector<8x1xf32>
    %cst_3 = arith.constant 3.200000e+01 : f32
    %10 = vector.broadcast %cst_3 : f32 to vector<8x1xf32>
    %11 = arith.divf %9, %10 : vector<8x1xf32>
    %12 = vector.broadcast %4 : vector<8x1xf32> to vector<8x32xf32>
    %13 = arith.subf %0, %12 : vector<8x32xf32>
    %cst_4 = arith.constant 9.99999974E-6 : f32
    %14 = vector.broadcast %cst_4 : f32 to vector<8x1xf32>
    %15 = arith.addf %11, %14 : vector<8x1xf32>
    %16 = math.rsqrt %15 : vector<8x1xf32>
    %17 = vector.broadcast %16 : vector<8x1xf32> to vector<8x32xf32>
    %18 = arith.mulf %13, %17 : vector<8x32xf32>
    %c0_5 = arith.constant 0 : index
    %c0_6 = arith.constant 0 : index
    %19 = vector.load %arg4[%c0_5, %c0_6] : memref<1x32xf32, #tpu.memory_space<vmem>>, vector<1x32xf32>
    %20 = vector.broadcast %19 : vector<1x32xf32> to vector<8x32xf32>
    %21 = arith.mulf %18, %20 : vector<8x32xf32>
    %c0_7 = arith.constant 0 : index
    %c0_8 = arith.constant 0 : index
    %22 = vector.load %arg5[%c0_7, %c0_8] : memref<1x32xf32, #tpu.memory_space<vmem>>, vector<1x32xf32>
    %23 = vector.broadcast %22 : vector<1x32xf32> to vector<8x32xf32>
    %24 = arith.addf %21, %23 : vector<8x32xf32>
    %25 = tpu.iota {dimensions = array<i32: 0>} : vector<8x8xi32>
    %26 = tpu.iota {dimensions = array<i32: 1>} : vector<8x8xi32>
    %c1_i32 = arith.constant 1 : i32
    %27 = vector.broadcast %c1_i32 : i32 to vector<8x8xi32>
    %28 = arith.addi %26, %27 : vector<8x8xi32>
    %29 = arith.cmpi eq, %25, %28 : vector<8x8xi32>
    %30 = arith.extui %29 : vector<8x8xi1> to vector<8x8xi32>
    %31 = arith.sitofp %30 : vector<8x8xi32> to vector<8x8xf32>
    %cst_9 = arith.constant dense<0.000000e+00> : vector<8x32xf32>
    %32 = tpu.matmul %31, %24, %cst_9 {dimension_numbers = #tpu.dot_dimension_numbers<[1], [0], [0], [1], [0, 0, 1, 1], [], []>} : vector<8x8xf32>, vector<8x32xf32>, vector<8x32xf32> -> vector<8x32xf32>
    %33 = tpu.iota {dimensions = array<i32: 0>} : vector<8x32xi32>
    %c0_i32 = arith.constant 0 : i32
    %34 = vector.broadcast %c0_i32 : i32 to vector<8x32xi32>
    %35 = arith.cmpi eq, %33, %34 : vector<8x32xi32>
    %c0_10 = arith.constant 0 : index
    %c0_11 = arith.constant 0 : index
    %36 = vector.load %arg2[%c0_10, %c0_11] : memref<1x32xf32, #tpu.memory_space<vmem>>, vector<1x32xf32>
    %37 = vector.shape_cast %36 : vector<1x32xf32> to vector<1x32xf32>
    %38 = vector.broadcast %37 : vector<1x32xf32> to vector<8x32xf32>
    %39 = arith.select %35, %38, %32 : vector<8x32xi1>, vector<8x32xf32>
    %40 = arith.subf %39, %24 : vector<8x32xf32>
    %c0_12 = arith.constant 0 : index
    %c0_13 = arith.constant 0 : index
    %41 = vector.load %arg6[%c0_12, %c0_13] : memref<1x32xf32, #tpu.memory_space<vmem>>, vector<1x32xf32>
    %42 = vector.broadcast %41 : vector<1x32xf32> to vector<8x32xf32>
    %43 = arith.mulf %42, %40 : vector<8x32xf32>
    %44 = arith.addf %24, %43 : vector<8x32xf32>
    %c0_14 = arith.constant 0 : index
    %c0_15 = arith.constant 0 : index
    %45 = vector.load %arg7[%c0_14, %c0_15] : memref<32x160xf32, #tpu.memory_space<vmem>>, vector<32x160xf32>
    %cst_16 = arith.constant dense<0.000000e+00> : vector<8x160xf32>
    %46 = tpu.matmul %44, %45, %cst_16 {dimension_numbers = #tpu.dot_dimension_numbers<[1], [0], [0], [1], [0, 0, 1, 1], [], []>} : vector<8x32xf32>, vector<32x160xf32>, vector<8x160xf32> -> vector<8x160xf32>
    %47 = math.tanh %46 : vector<8x160xf32>
    %c0_17 = arith.constant 0 : index
    %c0_18 = arith.constant 0 : index
    %48 = vector.load %arg9[%c0_17, %c0_18] : memref<1x160xf32, #tpu.memory_space<vmem>>, vector<1x160xf32>
    %c0_19 = arith.constant 0 : index
    %c0_20 = arith.constant 0 : index
    %49 = vector.load %arg8[%c0_19, %c0_20] : memref<160x160xf32, #tpu.memory_space<vmem>>, vector<160x160xf32>
    %cst_21 = arith.constant dense<0.000000e+00> : vector<8x160xf32>
    %50 = tpu.matmul %47, %49, %cst_21 {dimension_numbers = #tpu.dot_dimension_numbers<[1], [0], [0], [1], [0, 0, 1, 1], [], []>} : vector<8x160xf32>, vector<160x160xf32>, vector<8x160xf32> -> vector<8x160xf32>
    %51 = vector.broadcast %48 : vector<1x160xf32> to vector<8x160xf32>
    %52 = arith.addf %51, %50 : vector<8x160xf32>
    %53 = tpu.iota {dimensions = array<i32: 0>} : vector<32x128xi32>
    %54 = tpu.iota {dimensions = array<i32: 1>} : vector<32x128xi32>
    %c0_i32_22 = arith.constant 0 : i32
    %55 = vector.broadcast %c0_i32_22 : i32 to vector<32x128xi32>
    %56 = arith.addi %53, %55 : vector<32x128xi32>
    %57 = arith.cmpi eq, %54, %56 : vector<32x128xi32>
    %c32_i32 = arith.constant 32 : i32
    %58 = vector.broadcast %c32_i32 : i32 to vector<32x128xi32>
    %59 = arith.addi %53, %58 : vector<32x128xi32>
    %60 = arith.cmpi eq, %54, %59 : vector<32x128xi32>
    %61 = arith.ori %57, %60 : vector<32x128xi1>
    %c64_i32 = arith.constant 64 : i32
    %62 = vector.broadcast %c64_i32 : i32 to vector<32x128xi32>
    %63 = arith.addi %53, %62 : vector<32x128xi32>
    %64 = arith.cmpi eq, %54, %63 : vector<32x128xi32>
    %65 = arith.ori %61, %64 : vector<32x128xi1>
    %c96_i32 = arith.constant 96 : i32
    %66 = vector.broadcast %c96_i32 : i32 to vector<32x128xi32>
    %67 = arith.addi %53, %66 : vector<32x128xi32>
    %68 = arith.cmpi eq, %54, %67 : vector<32x128xi32>
    %69 = arith.ori %65, %68 : vector<32x128xi1>
    %70 = arith.extui %69 : vector<32x128xi1> to vector<32x128xi32>
    %71 = arith.sitofp %70 : vector<32x128xi32> to vector<32x128xf32>
    %cst_23 = arith.constant dense<0.000000e+00> : vector<8x128xf32>
    %72 = tpu.matmul %24, %71, %cst_23 {dimension_numbers = #tpu.dot_dimension_numbers<[1], [0], [0], [1], [0, 0, 1, 1], [], []>} : vector<8x32xf32>, vector<32x128xf32>, vector<8x128xf32> -> vector<8x128xf32>
    %cst_24 = arith.constant dense<0.000000e+00> : vector<8x128xf32>
    %73 = tpu.matmul %40, %71, %cst_24 {dimension_numbers = #tpu.dot_dimension_numbers<[1], [0], [0], [1], [0, 0, 1, 1], [], []>} : vector<8x32xf32>, vector<32x128xf32>, vector<8x128xf32> -> vector<8x128xf32>
    %74 = vector.extract_strided_slice %52 {offsets = [0, 0], sizes = [8, 128], strides = [1, 1]} : vector<8x160xf32> to vector<8x128xf32>
    %75 = arith.mulf %74, %73 : vector<8x128xf32>
    %76 = arith.addf %72, %75 : vector<8x128xf32>
    %77 = vector.extract_strided_slice %52 {offsets = [0, 128], sizes = [8, 32], strides = [1, 1]} : vector<8x160xf32> to vector<8x32xf32>
    %78 = arith.mulf %77, %40 : vector<8x32xf32>
    %79 = arith.addf %24, %78 : vector<8x32xf32>
    %c0_25 = arith.constant 0 : index
    %c0_26 = arith.constant 0 : index
    %80 = vector.load %arg10[%c0_25, %c0_26] : memref<128x128xf32, #tpu.memory_space<vmem>>, vector<128x128xf32>
    %cst_27 = arith.constant dense<0.000000e+00> : vector<8x128xf32>
    %81 = tpu.matmul %76, %80, %cst_27 {dimension_numbers = #tpu.dot_dimension_numbers<[1], [0], [0], [1], [0, 0, 1, 1], [], []>} : vector<8x128xf32>, vector<128x128xf32>, vector<8x128xf32> -> vector<8x128xf32>
    %82 = vector.extract_strided_slice %81 {offsets = [0, 96], sizes = [8, 32], strides = [1, 1]} : vector<8x128xf32> to vector<8x32xf32>
    %c0_28 = arith.constant 0 : index
    %c0_29 = arith.constant 0 : index
    %83 = vector.load %arg11[%c0_28, %c0_29] : memref<32x64xf32, #tpu.memory_space<vmem>>, vector<32x64xf32>
    %cst_30 = arith.constant dense<0.000000e+00> : vector<8x64xf32>
    %84 = tpu.matmul %79, %83, %cst_30 {dimension_numbers = #tpu.dot_dimension_numbers<[1], [0], [0], [1], [0, 0, 1, 1], [], []>} : vector<8x32xf32>, vector<32x64xf32>, vector<8x64xf32> -> vector<8x64xf32>
    %85 = math.tanh %84 : vector<8x64xf32>
    %c0_31 = arith.constant 0 : index
    %c0_32 = arith.constant 0 : index
    %86 = vector.load %arg13[%c0_31, %c0_32] : memref<1x32xf32, #tpu.memory_space<vmem>>, vector<1x32xf32>
    %c0_33 = arith.constant 0 : index
    %c0_34 = arith.constant 0 : index
    %87 = vector.load %arg12[%c0_33, %c0_34] : memref<64x32xf32, #tpu.memory_space<vmem>>, vector<64x32xf32>
    %cst_35 = arith.constant dense<0.000000e+00> : vector<8x32xf32>
    %88 = tpu.matmul %85, %87, %cst_35 {dimension_numbers = #tpu.dot_dimension_numbers<[1], [0], [0], [1], [0, 0, 1, 1], [], []>} : vector<8x64xf32>, vector<64x32xf32>, vector<8x32xf32> -> vector<8x32xf32>
    %89 = vector.broadcast %86 : vector<1x32xf32> to vector<8x32xf32>
    %90 = arith.addf %89, %88 : vector<8x32xf32>
    %91 = math.exp %90 : vector<8x32xf32>
    %cst_36 = arith.constant 0.000000e+00 : f32
    %92 = vector.broadcast %cst_36 : f32 to vector<8x32xf32>
    %93 = arith.subf %92, %91 : vector<8x32xf32>
    %94 = math.exp %93 : vector<8x32xf32>
    %95 = tpu.iota {dimensions = array<i32: 0>} : vector<32x32xi32>
    %96 = tpu.iota {dimensions = array<i32: 1>} : vector<32x32xi32>
    %97 = arith.cmpi eq, %95, %96 : vector<32x32xi32>
    %98 = arith.extui %97 : vector<32x32xi1> to vector<32x32xi32>
    %99 = arith.sitofp %98 : vector<32x32xi32> to vector<32x32xf32>
    %c0_i32_37 = arith.constant 0 : i32
    %100 = vector.broadcast %c0_i32_37 : i32 to vector<32x32xi32>
    %101 = arith.cmpi sge, %95, %100 : vector<32x32xi32>
    %c16_i32 = arith.constant 16 : i32
    %102 = vector.broadcast %c16_i32 : i32 to vector<32x32xi32>
    %103 = arith.cmpi slt, %95, %102 : vector<32x32xi32>
    %104 = arith.andi %101, %103 : vector<32x32xi1>
    %c0_i32_38 = arith.constant 0 : i32
    %105 = vector.broadcast %c0_i32_38 : i32 to vector<32x32xi32>
    %106 = arith.cmpi sge, %96, %105 : vector<32x32xi32>
    %c16_i32_39 = arith.constant 16 : i32
    %107 = vector.broadcast %c16_i32_39 : i32 to vector<32x32xi32>
    %108 = arith.cmpi slt, %96, %107 : vector<32x32xi32>
    %109 = arith.andi %106, %108 : vector<32x32xi1>
    %110 = arith.andi %104, %109 : vector<32x32xi1>
    %c16_i32_40 = arith.constant 16 : i32
    %111 = vector.broadcast %c16_i32_40 : i32 to vector<32x32xi32>
    %112 = arith.cmpi sge, %95, %111 : vector<32x32xi32>
    %c32_i32_41 = arith.constant 32 : i32
    %113 = vector.broadcast %c32_i32_41 : i32 to vector<32x32xi32>
    %114 = arith.cmpi slt, %95, %113 : vector<32x32xi32>
    %115 = arith.andi %112, %114 : vector<32x32xi1>
    %c16_i32_42 = arith.constant 16 : i32
    %116 = vector.broadcast %c16_i32_42 : i32 to vector<32x32xi32>
    %117 = arith.cmpi sge, %96, %116 : vector<32x32xi32>
    %c32_i32_43 = arith.constant 32 : i32
    %118 = vector.broadcast %c32_i32_43 : i32 to vector<32x32xi32>
    %119 = arith.cmpi slt, %96, %118 : vector<32x32xi32>
    %120 = arith.andi %117, %119 : vector<32x32xi1>
    %121 = arith.andi %115, %120 : vector<32x32xi1>
    %122 = arith.ori %110, %121 : vector<32x32xi1>
    %123 = arith.extui %122 : vector<32x32xi1> to vector<32x32xi32>
    %124 = arith.sitofp %123 : vector<32x32xi32> to vector<32x32xf32>
    %c0_44 = arith.constant 0 : index
    %c0_45 = arith.constant 0 : index
    %125 = vector.load %arg14[%c0_44, %c0_45] : memref<1x32xf32, #tpu.memory_space<vmem>>, vector<1x32xf32>
    %c0_46 = arith.constant 0 : index
    %c0_47 = arith.constant 0 : index
    %126 = vector.load %arg3[%c0_46, %c0_47] : memref<32x32xf32, #tpu.memory_space<vmem>>, vector<32x32xf32>
    %127 = vector.extract_strided_slice %81 {offsets = [0, 0], sizes = [1, 32], strides = [1, 1]} : vector<8x128xf32> to vector<1x32xf32>
    %128 = vector.extract_strided_slice %81 {offsets = [0, 32], sizes = [1, 32], strides = [1, 1]} : vector<8x128xf32> to vector<1x32xf32>
    %129 = vector.extract_strided_slice %81 {offsets = [0, 64], sizes = [1, 32], strides = [1, 1]} : vector<8x128xf32> to vector<1x32xf32>
    %130 = vector.extract_strided_slice %94 {offsets = [0, 0], sizes = [1, 32], strides = [1, 1]} : vector<8x32xf32> to vector<1x32xf32>
    %131 = arith.mulf %127, %125 : vector<1x32xf32>
    %132 = arith.mulf %131, %128 : vector<1x32xf32>
    %cst_48 = arith.constant dense<0.000000e+00> : vector<1x32xf32>
    %133 = tpu.matmul %132, %124, %cst_48 {dimension_numbers = #tpu.dot_dimension_numbers<[1], [0], [0], [1], [0, 0, 1, 1], [], []>} : vector<1x32xf32>, vector<32x32xf32>, vector<1x32xf32> -> vector<1x32xf32>
    %cst_49 = arith.constant dense<0.000000e+00> : vector<1x32xf32>
    %134 = tpu.matmul %127, %126, %cst_49 {dimension_numbers = #tpu.dot_dimension_numbers<[1], [0], [0], [1], [0, 0, 1, 1], [], []>} : vector<1x32xf32>, vector<32x32xf32>, vector<1x32xf32> -> vector<1x32xf32>
    %135 = arith.mulf %133, %129 : vector<1x32xf32>
    %136 = arith.addf %134, %135 : vector<1x32xf32>
    %c0_50 = arith.constant 0 : index
    %c0_51 = arith.constant 0 : index
    %137 = vector.load %arg21[%c0_50, %c0_51] : memref<8x32xf32, #tpu.memory_space<vmem>>, vector<1x32xf32>
    tpu.vector_store %arg21[%c0_50, %c0_51], %136 {strides = array<i32>} : memref<8x32xf32, #tpu.memory_space<vmem>>, vector<1x32xf32>,
    %138 = vector.broadcast %130 : vector<1x32xf32> to vector<32x32xf32>
    %139 = arith.mulf %99, %138 : vector<32x32xf32>
    %140 = vector.broadcast %128 : vector<1x32xf32> to vector<32x32xf32>
    %141 = arith.mulf %99, %140 : vector<32x32xf32>
    %142 = vector.broadcast %129 : vector<1x32xf32> to vector<32x32xf32>
    %143 = arith.mulf %124, %142 : vector<32x32xf32>
    %cst_52 = arith.constant dense<0.000000e+00> : vector<32x32xf32>
    %144 = tpu.matmul %139, %126, %cst_52 {dimension_numbers = #tpu.dot_dimension_numbers<[1], [0], [0], [1], [0, 0, 1, 1], [], []>} : vector<32x32xf32>, vector<32x32xf32>, vector<32x32xf32> -> vector<32x32xf32>
    %cst_53 = arith.constant dense<0.000000e+00> : vector<32x32xf32>
    %145 = tpu.matmul %141, %143, %cst_53 {dimension_numbers = #tpu.dot_dimension_numbers<[1], [0], [0], [1], [0, 0, 1, 1], [], []>} : vector<32x32xf32>, vector<32x32xf32>, vector<32x32xf32> -> vector<32x32xf32>
    %146 = arith.addf %144, %145 : vector<32x32xf32>
    %147 = vector.extract_strided_slice %81 {offsets = [1, 0], sizes = [1, 32], strides = [1, 1]} : vector<8x128xf32> to vector<1x32xf32>
    %148 = vector.extract_strided_slice %81 {offsets = [1, 32], sizes = [1, 32], strides = [1, 1]} : vector<8x128xf32> to vector<1x32xf32>
    %149 = vector.extract_strided_slice %81 {offsets = [1, 64], sizes = [1, 32], strides = [1, 1]} : vector<8x128xf32> to vector<1x32xf32>
    %150 = vector.extract_strided_slice %94 {offsets = [1, 0], sizes = [1, 32], strides = [1, 1]} : vector<8x32xf32> to vector<1x32xf32>
    %151 = arith.mulf %147, %125 : vector<1x32xf32>
    %152 = arith.mulf %151, %148 : vector<1x32xf32>
    %cst_54 = arith.constant dense<0.000000e+00> : vector<1x32xf32>
    %153 = tpu.matmul %152, %124, %cst_54 {dimension_numbers = #tpu.dot_dimension_numbers<[1], [0], [0], [1], [0, 0, 1, 1], [], []>} : vector<1x32xf32>, vector<32x32xf32>, vector<1x32xf32> -> vector<1x32xf32>
    %cst_55 = arith.constant dense<0.000000e+00> : vector<1x32xf32>
    %154 = tpu.matmul %147, %146, %cst_55 {dimension_numbers = #tpu.dot_dimension_numbers<[1], [0], [0], [1], [0, 0, 1, 1], [], []>} : vector<1x32xf32>, vector<32x32xf32>, vector<1x32xf32> -> vector<1x32xf32>
    %155 = arith.mulf %153, %149 : vector<1x32xf32>
    %156 = arith.addf %154, %155 : vector<1x32xf32>
    %c1 = arith.constant 1 : index
    %c0_56 = arith.constant 0 : index
    %157 = vector.load %arg21[%c1, %c0_56] : memref<8x32xf32, #tpu.memory_space<vmem>>, vector<1x32xf32>
    tpu.vector_store %arg21[%c1, %c0_56], %156 {strides = array<i32>} : memref<8x32xf32, #tpu.memory_space<vmem>>, vector<1x32xf32>,
    %158 = vector.broadcast %150 : vector<1x32xf32> to vector<32x32xf32>
    %159 = arith.mulf %99, %158 : vector<32x32xf32>
    %160 = vector.broadcast %148 : vector<1x32xf32> to vector<32x32xf32>
    %161 = arith.mulf %99, %160 : vector<32x32xf32>
    %162 = vector.broadcast %149 : vector<1x32xf32> to vector<32x32xf32>
    %163 = arith.mulf %124, %162 : vector<32x32xf32>
    %cst_57 = arith.constant dense<0.000000e+00> : vector<32x32xf32>
    %164 = tpu.matmul %159, %146, %cst_57 {dimension_numbers = #tpu.dot_dimension_numbers<[1], [0], [0], [1], [0, 0, 1, 1], [], []>} : vector<32x32xf32>, vector<32x32xf32>, vector<32x32xf32> -> vector<32x32xf32>
    %cst_58 = arith.constant dense<0.000000e+00> : vector<32x32xf32>
    %165 = tpu.matmul %161, %163, %cst_58 {dimension_numbers = #tpu.dot_dimension_numbers<[1], [0], [0], [1], [0, 0, 1, 1], [], []>} : vector<32x32xf32>, vector<32x32xf32>, vector<32x32xf32> -> vector<32x32xf32>
    %166 = arith.addf %164, %165 : vector<32x32xf32>
    %167 = vector.extract_strided_slice %81 {offsets = [2, 0], sizes = [1, 32], strides = [1, 1]} : vector<8x128xf32> to vector<1x32xf32>
    %168 = vector.extract_strided_slice %81 {offsets = [2, 32], sizes = [1, 32], strides = [1, 1]} : vector<8x128xf32> to vector<1x32xf32>
    %169 = vector.extract_strided_slice %81 {offsets = [2, 64], sizes = [1, 32], strides = [1, 1]} : vector<8x128xf32> to vector<1x32xf32>
    %170 = vector.extract_strided_slice %94 {offsets = [2, 0], sizes = [1, 32], strides = [1, 1]} : vector<8x32xf32> to vector<1x32xf32>
    %171 = arith.mulf %167, %125 : vector<1x32xf32>
    %172 = arith.mulf %171, %168 : vector<1x32xf32>
    %cst_59 = arith.constant dense<0.000000e+00> : vector<1x32xf32>
    %173 = tpu.matmul %172, %124, %cst_59 {dimension_numbers = #tpu.dot_dimension_numbers<[1], [0], [0], [1], [0, 0, 1, 1], [], []>} : vector<1x32xf32>, vector<32x32xf32>, vector<1x32xf32> -> vector<1x32xf32>
    %cst_60 = arith.constant dense<0.000000e+00> : vector<1x32xf32>
    %174 = tpu.matmul %167, %166, %cst_60 {dimension_numbers = #tpu.dot_dimension_numbers<[1], [0], [0], [1], [0, 0, 1, 1], [], []>} : vector<1x32xf32>, vector<32x32xf32>, vector<1x32xf32> -> vector<1x32xf32>
    %175 = arith.mulf %173, %169 : vector<1x32xf32>
    %176 = arith.addf %174, %175 : vector<1x32xf32>
    %c2 = arith.constant 2 : index
    %c0_61 = arith.constant 0 : index
    %177 = vector.load %arg21[%c2, %c0_61] : memref<8x32xf32, #tpu.memory_space<vmem>>, vector<1x32xf32>
    tpu.vector_store %arg21[%c2, %c0_61], %176 {strides = array<i32>} : memref<8x32xf32, #tpu.memory_space<vmem>>, vector<1x32xf32>,
    %178 = vector.broadcast %170 : vector<1x32xf32> to vector<32x32xf32>
    %179 = arith.mulf %99, %178 : vector<32x32xf32>
    %180 = vector.broadcast %168 : vector<1x32xf32> to vector<32x32xf32>
    %181 = arith.mulf %99, %180 : vector<32x32xf32>
    %182 = vector.broadcast %169 : vector<1x32xf32> to vector<32x32xf32>
    %183 = arith.mulf %124, %182 : vector<32x32xf32>
    %cst_62 = arith.constant dense<0.000000e+00> : vector<32x32xf32>
    %184 = tpu.matmul %179, %166, %cst_62 {dimension_numbers = #tpu.dot_dimension_numbers<[1], [0], [0], [1], [0, 0, 1, 1], [], []>} : vector<32x32xf32>, vector<32x32xf32>, vector<32x32xf32> -> vector<32x32xf32>
    %cst_63 = arith.constant dense<0.000000e+00> : vector<32x32xf32>
    %185 = tpu.matmul %181, %183, %cst_63 {dimension_numbers = #tpu.dot_dimension_numbers<[1], [0], [0], [1], [0, 0, 1, 1], [], []>} : vector<32x32xf32>, vector<32x32xf32>, vector<32x32xf32> -> vector<32x32xf32>
    %186 = arith.addf %184, %185 : vector<32x32xf32>
    %187 = vector.extract_strided_slice %81 {offsets = [3, 0], sizes = [1, 32], strides = [1, 1]} : vector<8x128xf32> to vector<1x32xf32>
    %188 = vector.extract_strided_slice %81 {offsets = [3, 32], sizes = [1, 32], strides = [1, 1]} : vector<8x128xf32> to vector<1x32xf32>
    %189 = vector.extract_strided_slice %81 {offsets = [3, 64], sizes = [1, 32], strides = [1, 1]} : vector<8x128xf32> to vector<1x32xf32>
    %190 = vector.extract_strided_slice %94 {offsets = [3, 0], sizes = [1, 32], strides = [1, 1]} : vector<8x32xf32> to vector<1x32xf32>
    %191 = arith.mulf %187, %125 : vector<1x32xf32>
    %192 = arith.mulf %191, %188 : vector<1x32xf32>
    %cst_64 = arith.constant dense<0.000000e+00> : vector<1x32xf32>
    %193 = tpu.matmul %192, %124, %cst_64 {dimension_numbers = #tpu.dot_dimension_numbers<[1], [0], [0], [1], [0, 0, 1, 1], [], []>} : vector<1x32xf32>, vector<32x32xf32>, vector<1x32xf32> -> vector<1x32xf32>
    %cst_65 = arith.constant dense<0.000000e+00> : vector<1x32xf32>
    %194 = tpu.matmul %187, %186, %cst_65 {dimension_numbers = #tpu.dot_dimension_numbers<[1], [0], [0], [1], [0, 0, 1, 1], [], []>} : vector<1x32xf32>, vector<32x32xf32>, vector<1x32xf32> -> vector<1x32xf32>
    %195 = arith.mulf %193, %189 : vector<1x32xf32>
    %196 = arith.addf %194, %195 : vector<1x32xf32>
    %c3 = arith.constant 3 : index
    %c0_66 = arith.constant 0 : index
    %197 = vector.load %arg21[%c3, %c0_66] : memref<8x32xf32, #tpu.memory_space<vmem>>, vector<1x32xf32>
    tpu.vector_store %arg21[%c3, %c0_66], %196 {strides = array<i32>} : memref<8x32xf32, #tpu.memory_space<vmem>>, vector<1x32xf32>,
    %198 = vector.broadcast %190 : vector<1x32xf32> to vector<32x32xf32>
    %199 = arith.mulf %99, %198 : vector<32x32xf32>
    %200 = vector.broadcast %188 : vector<1x32xf32> to vector<32x32xf32>
    %201 = arith.mulf %99, %200 : vector<32x32xf32>
    %202 = vector.broadcast %189 : vector<1x32xf32> to vector<32x32xf32>
    %203 = arith.mulf %124, %202 : vector<32x32xf32>
    %cst_67 = arith.constant dense<0.000000e+00> : vector<32x32xf32>
    %204 = tpu.matmul %199, %186, %cst_67 {dimension_numbers = #tpu.dot_dimension_numbers<[1], [0], [0], [1], [0, 0, 1, 1], [], []>} : vector<32x32xf32>, vector<32x32xf32>, vector<32x32xf32> -> vector<32x32xf32>
    %cst_68 = arith.constant dense<0.000000e+00> : vector<32x32xf32>
    %205 = tpu.matmul %201, %203, %cst_68 {dimension_numbers = #tpu.dot_dimension_numbers<[1], [0], [0], [1], [0, 0, 1, 1], [], []>} : vector<32x32xf32>, vector<32x32xf32>, vector<32x32xf32> -> vector<32x32xf32>
    %206 = arith.addf %204, %205 : vector<32x32xf32>
    %207 = vector.extract_strided_slice %81 {offsets = [4, 0], sizes = [1, 32], strides = [1, 1]} : vector<8x128xf32> to vector<1x32xf32>
    %208 = vector.extract_strided_slice %81 {offsets = [4, 32], sizes = [1, 32], strides = [1, 1]} : vector<8x128xf32> to vector<1x32xf32>
    %209 = vector.extract_strided_slice %81 {offsets = [4, 64], sizes = [1, 32], strides = [1, 1]} : vector<8x128xf32> to vector<1x32xf32>
    %210 = vector.extract_strided_slice %94 {offsets = [4, 0], sizes = [1, 32], strides = [1, 1]} : vector<8x32xf32> to vector<1x32xf32>
    %211 = arith.mulf %207, %125 : vector<1x32xf32>
    %212 = arith.mulf %211, %208 : vector<1x32xf32>
    %cst_69 = arith.constant dense<0.000000e+00> : vector<1x32xf32>
    %213 = tpu.matmul %212, %124, %cst_69 {dimension_numbers = #tpu.dot_dimension_numbers<[1], [0], [0], [1], [0, 0, 1, 1], [], []>} : vector<1x32xf32>, vector<32x32xf32>, vector<1x32xf32> -> vector<1x32xf32>
    %cst_70 = arith.constant dense<0.000000e+00> : vector<1x32xf32>
    %214 = tpu.matmul %207, %206, %cst_70 {dimension_numbers = #tpu.dot_dimension_numbers<[1], [0], [0], [1], [0, 0, 1, 1], [], []>} : vector<1x32xf32>, vector<32x32xf32>, vector<1x32xf32> -> vector<1x32xf32>
    %215 = arith.mulf %213, %209 : vector<1x32xf32>
    %216 = arith.addf %214, %215 : vector<1x32xf32>
    %c4 = arith.constant 4 : index
    %c0_71 = arith.constant 0 : index
    %217 = vector.load %arg21[%c4, %c0_71] : memref<8x32xf32, #tpu.memory_space<vmem>>, vector<1x32xf32>
    tpu.vector_store %arg21[%c4, %c0_71], %216 {strides = array<i32>} : memref<8x32xf32, #tpu.memory_space<vmem>>, vector<1x32xf32>,
    %218 = vector.broadcast %210 : vector<1x32xf32> to vector<32x32xf32>
    %219 = arith.mulf %99, %218 : vector<32x32xf32>
    %220 = vector.broadcast %208 : vector<1x32xf32> to vector<32x32xf32>
    %221 = arith.mulf %99, %220 : vector<32x32xf32>
    %222 = vector.broadcast %209 : vector<1x32xf32> to vector<32x32xf32>
    %223 = arith.mulf %124, %222 : vector<32x32xf32>
    %cst_72 = arith.constant dense<0.000000e+00> : vector<32x32xf32>
    %224 = tpu.matmul %219, %206, %cst_72 {dimension_numbers = #tpu.dot_dimension_numbers<[1], [0], [0], [1], [0, 0, 1, 1], [], []>} : vector<32x32xf32>, vector<32x32xf32>, vector<32x32xf32> -> vector<32x32xf32>
    %cst_73 = arith.constant dense<0.000000e+00> : vector<32x32xf32>
    %225 = tpu.matmul %221, %223, %cst_73 {dimension_numbers = #tpu.dot_dimension_numbers<[1], [0], [0], [1], [0, 0, 1, 1], [], []>} : vector<32x32xf32>, vector<32x32xf32>, vector<32x32xf32> -> vector<32x32xf32>
    %226 = arith.addf %224, %225 : vector<32x32xf32>
    %227 = vector.extract_strided_slice %81 {offsets = [5, 0], sizes = [1, 32], strides = [1, 1]} : vector<8x128xf32> to vector<1x32xf32>
    %228 = vector.extract_strided_slice %81 {offsets = [5, 32], sizes = [1, 32], strides = [1, 1]} : vector<8x128xf32> to vector<1x32xf32>
    %229 = vector.extract_strided_slice %81 {offsets = [5, 64], sizes = [1, 32], strides = [1, 1]} : vector<8x128xf32> to vector<1x32xf32>
    %230 = vector.extract_strided_slice %94 {offsets = [5, 0], sizes = [1, 32], strides = [1, 1]} : vector<8x32xf32> to vector<1x32xf32>
    %231 = arith.mulf %227, %125 : vector<1x32xf32>
    %232 = arith.mulf %231, %228 : vector<1x32xf32>
    %cst_74 = arith.constant dense<0.000000e+00> : vector<1x32xf32>
    %233 = tpu.matmul %232, %124, %cst_74 {dimension_numbers = #tpu.dot_dimension_numbers<[1], [0], [0], [1], [0, 0, 1, 1], [], []>} : vector<1x32xf32>, vector<32x32xf32>, vector<1x32xf32> -> vector<1x32xf32>
    %cst_75 = arith.constant dense<0.000000e+00> : vector<1x32xf32>
    %234 = tpu.matmul %227, %226, %cst_75 {dimension_numbers = #tpu.dot_dimension_numbers<[1], [0], [0], [1], [0, 0, 1, 1], [], []>} : vector<1x32xf32>, vector<32x32xf32>, vector<1x32xf32> -> vector<1x32xf32>
    %235 = arith.mulf %233, %229 : vector<1x32xf32>
    %236 = arith.addf %234, %235 : vector<1x32xf32>
    %c5 = arith.constant 5 : index
    %c0_76 = arith.constant 0 : index
    %237 = vector.load %arg21[%c5, %c0_76] : memref<8x32xf32, #tpu.memory_space<vmem>>, vector<1x32xf32>
    tpu.vector_store %arg21[%c5, %c0_76], %236 {strides = array<i32>} : memref<8x32xf32, #tpu.memory_space<vmem>>, vector<1x32xf32>,
    %238 = vector.broadcast %230 : vector<1x32xf32> to vector<32x32xf32>
    %239 = arith.mulf %99, %238 : vector<32x32xf32>
    %240 = vector.broadcast %228 : vector<1x32xf32> to vector<32x32xf32>
    %241 = arith.mulf %99, %240 : vector<32x32xf32>
    %242 = vector.broadcast %229 : vector<1x32xf32> to vector<32x32xf32>
    %243 = arith.mulf %124, %242 : vector<32x32xf32>
    %cst_77 = arith.constant dense<0.000000e+00> : vector<32x32xf32>
    %244 = tpu.matmul %239, %226, %cst_77 {dimension_numbers = #tpu.dot_dimension_numbers<[1], [0], [0], [1], [0, 0, 1, 1], [], []>} : vector<32x32xf32>, vector<32x32xf32>, vector<32x32xf32> -> vector<32x32xf32>
    %cst_78 = arith.constant dense<0.000000e+00> : vector<32x32xf32>
    %245 = tpu.matmul %241, %243, %cst_78 {dimension_numbers = #tpu.dot_dimension_numbers<[1], [0], [0], [1], [0, 0, 1, 1], [], []>} : vector<32x32xf32>, vector<32x32xf32>, vector<32x32xf32> -> vector<32x32xf32>
    %246 = arith.addf %244, %245 : vector<32x32xf32>
    %247 = vector.extract_strided_slice %81 {offsets = [6, 0], sizes = [1, 32], strides = [1, 1]} : vector<8x128xf32> to vector<1x32xf32>
    %248 = vector.extract_strided_slice %81 {offsets = [6, 32], sizes = [1, 32], strides = [1, 1]} : vector<8x128xf32> to vector<1x32xf32>
    %249 = vector.extract_strided_slice %81 {offsets = [6, 64], sizes = [1, 32], strides = [1, 1]} : vector<8x128xf32> to vector<1x32xf32>
    %250 = vector.extract_strided_slice %94 {offsets = [6, 0], sizes = [1, 32], strides = [1, 1]} : vector<8x32xf32> to vector<1x32xf32>
    %251 = arith.mulf %247, %125 : vector<1x32xf32>
    %252 = arith.mulf %251, %248 : vector<1x32xf32>
    %cst_79 = arith.constant dense<0.000000e+00> : vector<1x32xf32>
    %253 = tpu.matmul %252, %124, %cst_79 {dimension_numbers = #tpu.dot_dimension_numbers<[1], [0], [0], [1], [0, 0, 1, 1], [], []>} : vector<1x32xf32>, vector<32x32xf32>, vector<1x32xf32> -> vector<1x32xf32>
    %cst_80 = arith.constant dense<0.000000e+00> : vector<1x32xf32>
    %254 = tpu.matmul %247, %246, %cst_80 {dimension_numbers = #tpu.dot_dimension_numbers<[1], [0], [0], [1], [0, 0, 1, 1], [], []>} : vector<1x32xf32>, vector<32x32xf32>, vector<1x32xf32> -> vector<1x32xf32>
    %255 = arith.mulf %253, %249 : vector<1x32xf32>
    %256 = arith.addf %254, %255 : vector<1x32xf32>
    %c6 = arith.constant 6 : index
    %c0_81 = arith.constant 0 : index
    %257 = vector.load %arg21[%c6, %c0_81] : memref<8x32xf32, #tpu.memory_space<vmem>>, vector<1x32xf32>
    tpu.vector_store %arg21[%c6, %c0_81], %256 {strides = array<i32>} : memref<8x32xf32, #tpu.memory_space<vmem>>, vector<1x32xf32>,
    %258 = vector.broadcast %250 : vector<1x32xf32> to vector<32x32xf32>
    %259 = arith.mulf %99, %258 : vector<32x32xf32>
    %260 = vector.broadcast %248 : vector<1x32xf32> to vector<32x32xf32>
    %261 = arith.mulf %99, %260 : vector<32x32xf32>
    %262 = vector.broadcast %249 : vector<1x32xf32> to vector<32x32xf32>
    %263 = arith.mulf %124, %262 : vector<32x32xf32>
    %cst_82 = arith.constant dense<0.000000e+00> : vector<32x32xf32>
    %264 = tpu.matmul %259, %246, %cst_82 {dimension_numbers = #tpu.dot_dimension_numbers<[1], [0], [0], [1], [0, 0, 1, 1], [], []>} : vector<32x32xf32>, vector<32x32xf32>, vector<32x32xf32> -> vector<32x32xf32>
    %cst_83 = arith.constant dense<0.000000e+00> : vector<32x32xf32>
    %265 = tpu.matmul %261, %263, %cst_83 {dimension_numbers = #tpu.dot_dimension_numbers<[1], [0], [0], [1], [0, 0, 1, 1], [], []>} : vector<32x32xf32>, vector<32x32xf32>, vector<32x32xf32> -> vector<32x32xf32>
    %266 = arith.addf %264, %265 : vector<32x32xf32>
    %267 = vector.extract_strided_slice %81 {offsets = [7, 0], sizes = [1, 32], strides = [1, 1]} : vector<8x128xf32> to vector<1x32xf32>
    %268 = vector.extract_strided_slice %81 {offsets = [7, 32], sizes = [1, 32], strides = [1, 1]} : vector<8x128xf32> to vector<1x32xf32>
    %269 = vector.extract_strided_slice %81 {offsets = [7, 64], sizes = [1, 32], strides = [1, 1]} : vector<8x128xf32> to vector<1x32xf32>
    %270 = vector.extract_strided_slice %94 {offsets = [7, 0], sizes = [1, 32], strides = [1, 1]} : vector<8x32xf32> to vector<1x32xf32>
    %271 = arith.mulf %267, %125 : vector<1x32xf32>
    %272 = arith.mulf %271, %268 : vector<1x32xf32>
    %cst_84 = arith.constant dense<0.000000e+00> : vector<1x32xf32>
    %273 = tpu.matmul %272, %124, %cst_84 {dimension_numbers = #tpu.dot_dimension_numbers<[1], [0], [0], [1], [0, 0, 1, 1], [], []>} : vector<1x32xf32>, vector<32x32xf32>, vector<1x32xf32> -> vector<1x32xf32>
    %cst_85 = arith.constant dense<0.000000e+00> : vector<1x32xf32>
    %274 = tpu.matmul %267, %266, %cst_85 {dimension_numbers = #tpu.dot_dimension_numbers<[1], [0], [0], [1], [0, 0, 1, 1], [], []>} : vector<1x32xf32>, vector<32x32xf32>, vector<1x32xf32> -> vector<1x32xf32>
    %275 = arith.mulf %273, %269 : vector<1x32xf32>
    %276 = arith.addf %274, %275 : vector<1x32xf32>
    %c7 = arith.constant 7 : index
    %c0_86 = arith.constant 0 : index
    %277 = vector.load %arg21[%c7, %c0_86] : memref<8x32xf32, #tpu.memory_space<vmem>>, vector<1x32xf32>
    tpu.vector_store %arg21[%c7, %c0_86], %276 {strides = array<i32>} : memref<8x32xf32, #tpu.memory_space<vmem>>, vector<1x32xf32>,
    %278 = vector.broadcast %270 : vector<1x32xf32> to vector<32x32xf32>
    %279 = arith.mulf %99, %278 : vector<32x32xf32>
    %280 = vector.broadcast %268 : vector<1x32xf32> to vector<32x32xf32>
    %281 = arith.mulf %99, %280 : vector<32x32xf32>
    %282 = vector.broadcast %269 : vector<1x32xf32> to vector<32x32xf32>
    %283 = arith.mulf %124, %282 : vector<32x32xf32>
    %cst_87 = arith.constant dense<0.000000e+00> : vector<32x32xf32>
    %284 = tpu.matmul %279, %266, %cst_87 {dimension_numbers = #tpu.dot_dimension_numbers<[1], [0], [0], [1], [0, 0, 1, 1], [], []>} : vector<32x32xf32>, vector<32x32xf32>, vector<32x32xf32> -> vector<32x32xf32>
    %cst_88 = arith.constant dense<0.000000e+00> : vector<32x32xf32>
    %285 = tpu.matmul %281, %283, %cst_88 {dimension_numbers = #tpu.dot_dimension_numbers<[1], [0], [0], [1], [0, 0, 1, 1], [], []>} : vector<32x32xf32>, vector<32x32xf32>, vector<32x32xf32> -> vector<32x32xf32>
    %286 = arith.addf %284, %285 : vector<32x32xf32>
    %c0_89 = arith.constant 0 : index
    %c0_90 = arith.constant 0 : index
    %287 = vector.load %arg20[%c0_89, %c0_90] : memref<32x32xf32, #tpu.memory_space<vmem>>, vector<32x32xf32>
    tpu.vector_store %arg20[%c0_89, %c0_90], %286 {strides = array<i32>} : memref<32x32xf32, #tpu.memory_space<vmem>>, vector<32x32xf32>,
    %c0_91 = arith.constant 0 : index
    %c0_92 = arith.constant 0 : index
    %288 = vector.load %arg21[%c0_91, %c0_92] : memref<8x32xf32, #tpu.memory_space<vmem>>, vector<8x32xf32>
    %cst_93 = arith.constant dense<0.000000e+00> : vector<8x32xf32>
    %289 = tpu.matmul %288, %124, %cst_93 {dimension_numbers = #tpu.dot_dimension_numbers<[1], [0], [0], [1], [0, 0, 1, 1], [], []>} : vector<8x32xf32>, vector<32x32xf32>, vector<8x32xf32> -> vector<8x32xf32>
    %cst_94 = arith.constant 6.250000e-02 : f32
    %290 = vector.broadcast %cst_94 : f32 to vector<8x32xf32>
    %291 = arith.mulf %289, %290 : vector<8x32xf32>
    %292 = arith.subf %288, %291 : vector<8x32xf32>
    %293 = arith.mulf %292, %292 : vector<8x32xf32>
    %cst_95 = arith.constant dense<0.000000e+00> : vector<8x32xf32>
    %294 = tpu.matmul %293, %124, %cst_95 {dimension_numbers = #tpu.dot_dimension_numbers<[1], [0], [0], [1], [0, 0, 1, 1], [], []>} : vector<8x32xf32>, vector<32x32xf32>, vector<8x32xf32> -> vector<8x32xf32>
    %cst_96 = arith.constant 6.250000e-02 : f32
    %295 = vector.broadcast %cst_96 : f32 to vector<8x32xf32>
    %296 = arith.mulf %294, %295 : vector<8x32xf32>
    %cst_97 = arith.constant 6.400000e-04 : f32
    %297 = vector.broadcast %cst_97 : f32 to vector<8x32xf32>
    %298 = arith.addf %296, %297 : vector<8x32xf32>
    %299 = math.rsqrt %298 : vector<8x32xf32>
    %300 = arith.mulf %292, %299 : vector<8x32xf32>
    %c0_98 = arith.constant 0 : index
    %c0_99 = arith.constant 0 : index
    %301 = vector.load %arg15[%c0_98, %c0_99] : memref<1x32xf32, #tpu.memory_space<vmem>>, vector<1x32xf32>
    %302 = vector.broadcast %301 : vector<1x32xf32> to vector<8x32xf32>
    %303 = arith.mulf %300, %302 : vector<8x32xf32>
    %c0_100 = arith.constant 0 : index
    %c0_101 = arith.constant 0 : index
    %304 = vector.load %arg16[%c0_100, %c0_101] : memref<1x32xf32, #tpu.memory_space<vmem>>, vector<1x32xf32>
    %305 = vector.broadcast %304 : vector<1x32xf32> to vector<8x32xf32>
    %306 = arith.addf %303, %305 : vector<8x32xf32>
    %307 = arith.negf %82 : vector<8x32xf32>
    %308 = math.exp %307 : vector<8x32xf32>
    %cst_102 = arith.constant 1.000000e+00 : f32
    %309 = vector.broadcast %cst_102 : f32 to vector<8x32xf32>
    %310 = arith.addf %309, %308 : vector<8x32xf32>
    %311 = arith.divf %309, %310 : vector<8x32xf32>
    %312 = arith.mulf %82, %311 : vector<8x32xf32>
    %313 = arith.mulf %306, %312 : vector<8x32xf32>
    %c0_103 = arith.constant 0 : index
    %c0_104 = arith.constant 0 : index
    %314 = vector.load %arg17[%c0_103, %c0_104] : memref<32x32xf32, #tpu.memory_space<vmem>>, vector<32x32xf32>
    %cst_105 = arith.constant dense<0.000000e+00> : vector<8x32xf32>
    %315 = tpu.matmul %313, %314, %cst_105 {dimension_numbers = #tpu.dot_dimension_numbers<[1], [0], [0], [1], [0, 0, 1, 1], [], []>} : vector<8x32xf32>, vector<32x32xf32>, vector<8x32xf32> -> vector<8x32xf32>
    %316 = arith.addf %24, %315 : vector<8x32xf32>
    %c0_106 = arith.constant 0 : index
    %c0_107 = arith.constant 0 : index
    %317 = vector.load %arg18[%c0_106, %c0_107] : memref<8x32xf32, #tpu.memory_space<vmem>>, vector<8x32xf32>
    tpu.vector_store %arg18[%c0_106, %c0_107], %316 {strides = array<i32>} : memref<8x32xf32, #tpu.memory_space<vmem>>, vector<8x32xf32>,
    %318 = vector.extract_strided_slice %24 {offsets = [7, 0], sizes = [1, 32], strides = [1, 1]} : vector<8x32xf32> to vector<1x32xf32>
    %c0_108 = arith.constant 0 : index
    %c0_109 = arith.constant 0 : index
    %319 = vector.load %arg19[%c0_108, %c0_109] : memref<1x32xf32, #tpu.memory_space<vmem>>, vector<1x32xf32>
    tpu.vector_store %arg19[%c0_108, %c0_109], %318 {strides = array<i32>} : memref<1x32xf32, #tpu.memory_space<vmem>>, vector<1x32xf32>,
    return
  }
  func.func @transform_0(%arg0: i32) -> (i32, i32) {
    %c0_i32 = arith.constant 0 : i32
    %c0_i32_0 = arith.constant 0 : i32
    %c0_i32_1 = arith.constant 0 : i32
    return %c0_i32, %c0_i32_0 : i32, i32
  }
  func.func @transform_1(%arg0: i32) -> (i32, i32) {
    %c0_i32 = arith.constant 0 : i32
    %c0_i32_0 = arith.constant 0 : i32
    %c0_i32_1 = arith.constant 0 : i32
    return %c0_i32, %c0_i32_0 : i32, i32
  }
  func.func @transform_2(%arg0: i32) -> (i32, i32) {
    %c0_i32 = arith.constant 0 : i32
    %c0_i32_0 = arith.constant 0 : i32
    %c0_i32_1 = arith.constant 0 : i32
    return %c0_i32, %c0_i32_0 : i32, i32
  }
  func.func @transform_3(%arg0: i32) -> (i32, i32) {
    %c0_i32 = arith.constant 0 : i32
    %c0_i32_0 = arith.constant 0 : i32
    %c0_i32_1 = arith.constant 0 : i32
    return %c0_i32, %c0_i32_0 : i32, i32
  }
  func.func @transform_4(%arg0: i32) -> (i32, i32) {
    %c0_i32 = arith.constant 0 : i32
    %c0_i32_0 = arith.constant 0 : i32
    %c0_i32_1 = arith.constant 0 : i32
    return %c0_i32, %c0_i32_0 : i32, i32
  }
  func.func @transform_5(%arg0: i32) -> (i32, i32) {
    %c0_i32 = arith.constant 0 : i32
    %c0_i32_0 = arith.constant 0 : i32
    %c0_i32_1 = arith.constant 0 : i32
    return %c0_i32, %c0_i32_0 : i32, i32
  }
  func.func @transform_6(%arg0: i32) -> (i32, i32) {
    %c0_i32 = arith.constant 0 : i32
    %c0_i32_0 = arith.constant 0 : i32
    %c0_i32_1 = arith.constant 0 : i32
    return %c0_i32, %c0_i32_0 : i32, i32
  }
  func.func @transform_7(%arg0: i32) -> (i32, i32) {
    %c0_i32 = arith.constant 0 : i32
    %c0_i32_0 = arith.constant 0 : i32
    %c0_i32_1 = arith.constant 0 : i32
    return %c0_i32, %c0_i32_0 : i32, i32
  }
  func.func @transform_8(%arg0: i32) -> (i32, i32) {
    %c0_i32 = arith.constant 0 : i32
    %c0_i32_0 = arith.constant 0 : i32
    %c0_i32_1 = arith.constant 0 : i32
    return %c0_i32, %c0_i32_0 : i32, i32
  }
  func.func @transform_9(%arg0: i32) -> (i32, i32) {
    %c0_i32 = arith.constant 0 : i32
    %c0_i32_0 = arith.constant 0 : i32
    %c0_i32_1 = arith.constant 0 : i32
    return %c0_i32, %c0_i32_0 : i32, i32
  }
  func.func @transform_10(%arg0: i32) -> (i32, i32) {
    %c0_i32 = arith.constant 0 : i32
    %c0_i32_0 = arith.constant 0 : i32
    %c0_i32_1 = arith.constant 0 : i32
    return %c0_i32, %c0_i32_0 : i32, i32
  }
  func.func @transform_11(%arg0: i32) -> (i32, i32) {
    %c0_i32 = arith.constant 0 : i32
    %c0_i32_0 = arith.constant 0 : i32
    %c0_i32_1 = arith.constant 0 : i32
    return %c0_i32, %c0_i32_0 : i32, i32
  }
  func.func @transform_12(%arg0: i32) -> (i32, i32) {
    %c0_i32 = arith.constant 0 : i32
    %c0_i32_0 = arith.constant 0 : i32
    %c0_i32_1 = arith.constant 0 : i32
    return %c0_i32, %c0_i32_0 : i32, i32
  }
  func.func @transform_13(%arg0: i32) -> (i32, i32) {
    %c0_i32 = arith.constant 0 : i32
    %c0_i32_0 = arith.constant 0 : i32
    %c0_i32_1 = arith.constant 0 : i32
    return %c0_i32, %c0_i32_0 : i32, i32
  }
  func.func @transform_14(%arg0: i32) -> (i32, i32) {
    %c0_i32 = arith.constant 0 : i32
    %c0_i32_0 = arith.constant 0 : i32
    %c0_i32_1 = arith.constant 0 : i32
    return %c0_i32, %c0_i32_0 : i32, i32
  }
  func.func @transform_15(%arg0: i32) -> (i32, i32) {
    %c0_i32 = arith.constant 0 : i32
    %c0_i32_0 = arith.constant 0 : i32
    %c0_i32_1 = arith.constant 0 : i32
    return %c0_i32, %c0_i32_0 : i32, i32
  }
  func.func @transform_16(%arg0: i32) -> (i32, i32) {
    %c0_i32 = arith.constant 0 : i32
    %c0_i32_0 = arith.constant 0 : i32
    %c0_i32_1 = arith.constant 0 : i32
    return %c0_i32, %c0_i32_0 : i32, i32
  }
  func.func @transform_17(%arg0: i32) -> (i32, i32) {
    %c0_i32 = arith.constant 0 : i32
    %c0_i32_0 = arith.constant 0 : i32
    %c0_i32_1 = arith.constant 0 : i32
    return %c0_i32, %c0_i32_0 : i32, i32
  }
  func.func @transform_18(%arg0: i32) -> (i32, i32) {
    %c0_i32 = arith.constant 0 : i32
    %c0_i32_0 = arith.constant 0 : i32
    %c0_i32_1 = arith.constant 0 : i32
    return %c0_i32, %c0_i32_0 : i32, i32
  }
  func.func @transform_19(%arg0: i32) -> (i32, i32) {
    %c0_i32 = arith.constant 0 : i32
    %c0_i32_0 = arith.constant 0 : i32
    %c0_i32_1 = arith.constant 0 : i32
    return %c0_i32, %c0_i32_0 : i32, i32
  }
}

</mosaic_0001>

<llo_original>
// kernel: time_mixer_forward.1
$region0: #{time_mixer_forward.1}
  #allocation0 [shape = 'u32[]', space=smem, size = 0x4, offset = 0x4, fixed_abs, tag = 'smem constant byte address 0x4 - core index']
  #allocation1 [shape = 'u32[144,128]{1,0:T(1,128)}', space=vmem, size = 0x12000, scoped, tag = 'internal scratch']
  #allocation2 [shape = 'f32[8,32]{1,0:T(8,128)}', space=vmem, size = 0x1000, scoped, tag = 'scratch operand']
  %s0 = inlined_call_operand.vmem [shape: f32[8,32], index: 0, kind: input, shape index: {}]
  %s1 = inlined_call_operand.vmem [shape: f32[1,32], index: 1, kind: input, shape index: {}]
  %s2 = inlined_call_operand.vmem [shape: f32[32,32], index: 2, kind: input, shape index: {}]
  %s3 = inlined_call_operand.hbm [shape: f32[1,32], index: 3, kind: input, shape index: {}]
  %s4 = inlined_call_operand.hbm [shape: f32[1,32], index: 4, kind: input, shape index: {}]
  %s5 = inlined_call_operand.vmem [shape: f32[1,32], index: 5, kind: input, shape index: {}]
  %s6 = inlined_call_operand.vmem [shape: f32[32,160], index: 6, kind: input, shape index: {}]
  %s7 = inlined_call_operand.hbm [shape: f32[160,160], index: 7, kind: input, shape index: {}]
  %s8 = inlined_call_operand.hbm [shape: f32[1,160], index: 8, kind: input, shape index: {}]
  %s9 = inlined_call_operand.vmem [shape: f32[128,128], index: 9, kind: input, shape index: {}]
  %s10 = inlined_call_operand.vmem [shape: f32[32,64], index: 10, kind: input, shape index: {}]
  %s11 = inlined_call_operand.vmem [shape: f32[64,32], index: 11, kind: input, shape index: {}]
  %s12 = inlined_call_operand.hbm [shape: f32[1,32], index: 12, kind: input, shape index: {}]
  %s13 = inlined_call_operand.vmem [shape: f32[1,32], index: 13, kind: input, shape index: {}]
  %s14 = inlined_call_operand.hbm [shape: f32[1,32], index: 14, kind: input, shape index: {}]
  %s15 = inlined_call_operand.hbm [shape: f32[1,32], index: 15, kind: input, shape index: {}]
  %s16 = inlined_call_operand.vmem [shape: f32[32,32], index: 16, kind: input, shape index: {}]
  %s17 = inlined_call_operand.hbm [shape: f32[8,32], index: 17, kind: output, shape index: {0}]
  %s18 = inlined_call_operand.hbm [shape: f32[1,32], index: 18, kind: output, shape index: {1}]
  %s19 = inlined_call_operand.vmem [shape: f32[32,32], index: 19, kind: output, shape index: {2}]
  %20 = xla_tuple %s17, %s18, %s19
  %s21 = sld [smem:[#allocation0]]
  $region122: #{time_mixer_forward.1} parent=0
    _
  %s23 = ssub.s32 1, %s21
  %s24 = scalar_select 0, %s23, %s21
  $region1: #{time_mixer_forward.1} parent=0
    #allocation3 [shape = 'u8[512]{0}', space=vmem, size = 0x400, scoped, tag = 'input window, operand 3, single buffered']
    #allocation4 [shape = 's32[1]{0}', space=sflag, size = 0x4, scoped, tag = 'scoped memory for time_mixer_forward.1']
    #allocation5 [shape = 's32[1]{0}', space=sflag, size = 0x4, scoped, tag = 'scoped memory for time_mixer_forward.1']
    #allocation6 [shape = 'u8[512]{0}', space=vmem, size = 0x400, scoped, tag = 'input window, operand 4, single buffered']
    #allocation7 [shape = 's32[1]{0}', space=sflag, size = 0x4, scoped, tag = 'scoped memory for time_mixer_forward.1']
    #allocation8 [shape = 'u8[163840]{0}', space=vmem, size = 0x28000, scoped, tag = 'input window, operand 7, single buffered']
    #allocation9 [shape = 'u8[1024]{0}', space=vmem, size = 0x400, scoped, tag = 'input window, operand 8, single buffered']
    #allocation10 [shape = 's32[1]{0}', space=sflag, size = 0x4, scoped, tag = 'scoped memory for time_mixer_forward.1']
    #allocation11 [shape = 'u8[512]{0}', space=vmem, size = 0x400, scoped, tag = 'input window, operand 12, single buffered']
    #allocation12 [shape = 'u8[512]{0}', space=vmem, size = 0x400, scoped, tag = 'input window, operand 14, single buffered']
    #allocation13 [shape = 's32[1]{0}', space=sflag, size = 0x4, scoped, tag = 'scoped memory for time_mixer_forward.1']
    #allocation14 [shape = 'u8[512]{0}', space=vmem, size = 0x400, scoped, tag = 'input window, operand 15, single buffered']
    #allocation15 [shape = 'u8[4096]{0}', space=vmem, size = 0x1000, scoped, tag = 'output window, operand 0, single buffered']
    #allocation16 [shape = 'u8[512]{0}', space=vmem, size = 0x400, scoped, tag = 'output window, operand 1, single buffered']
    #allocation17 [shape = 's32[1]{0}', space=sflag, size = 0x4, scoped, tag = 'scoped memory for time_mixer_forward.1']
    %25 = vsyncpa [#allocation4], 0
    %26 = vsyncpa [#allocation7], 0
    %27 = vsyncpa [#allocation10], 0
    %28 = vsyncpa [#allocation13], 0
    %29 = vsyncpa [#allocation5], 0
    %30 = vsyncpa [#allocation17], 0
    // Predicated region
    $region2: #{time_mixer_forward.1} parent=1 // pred_check
      _
    $region3: #{time_mixer_forward.1} parent=1 // pred_check_branch
      %32 = sbr.rel (0) target = $region5
    $region4: #{time_mixer_forward.1} parent=1 // pred_region
      _
    $region5: #{time_mixer_forward.1} parent=1 // pred_fallthru
      _
    // Predicated region
    $region6: #{time_mixer_forward.1} parent=1 // pred_check
      _
    $region7: #{time_mixer_forward.1} parent=1 // pred_check_branch
      %34 = sbr.rel (0) target = $region9
    $region8: #{time_mixer_forward.1} parent=1 // pred_region
      _
    $region9: #{time_mixer_forward.1} parent=1 // pred_fallthru
      _
    // Predicated region
    $region10: #{time_mixer_forward.1} parent=1 // pred_check
      _
    $region11: #{time_mixer_forward.1} parent=1 // pred_check_branch
      %36 = sbr.rel (0) target = $region13
    $region12: #{time_mixer_forward.1} parent=1 // pred_region
      _
    $region13: #{time_mixer_forward.1} parent=1 // pred_fallthru
      _
    // Predicated region
    $region14: #{time_mixer_forward.1} parent=1 // pred_check
      _
    $region15: #{time_mixer_forward.1} parent=1 // pred_check_branch
      %38 = sbr.rel (0) target = $region17
    $region16: #{time_mixer_forward.1} parent=1 // pred_region
      %s40 = ssub.s32 16, 16
      %41 = vsyncadd [#allocation4], %s40
      %s43 = sshll.u32 [#allocation3], 4
      %s44 = int_to_ptr.vmem [resolvable:$true] %s43
      %46 = dma.hbm_to_vmem [thread:$0]  %s3, 16, %s44, [#allocation4]
    $region17: #{time_mixer_forward.1} parent=1 // pred_fallthru
      _
    // Predicated region
    $region18: #{time_mixer_forward.1} parent=1 // pred_check
      _
    $region19: #{time_mixer_forward.1} parent=1 // pred_check_branch
      %48 = sbr.rel (0) target = $region21
    $region20: #{time_mixer_forward.1} parent=1 // pred_region
      %s50 = ssub.s32 16, 16
      %51 = vsyncadd [#allocation7], %s50
      %s53 = sshll.u32 [#allocation6], 4
      %s54 = int_to_ptr.vmem [resolvable:$true] %s53
      %56 = dma.hbm_to_vmem [thread:$0]  %s4, 16, %s54, [#allocation7]
    $region21: #{time_mixer_forward.1} parent=1 // pred_fallthru
      _
    // Predicated region
    $region22: #{time_mixer_forward.1} parent=1 // pred_check
      _
    $region23: #{time_mixer_forward.1} parent=1 // pred_check_branch
      %58 = sbr.rel (0) target = $region25
    $region24: #{time_mixer_forward.1} parent=1 // pred_region
      _
    $region25: #{time_mixer_forward.1} parent=1 // pred_fallthru
      _
    // Predicated region
    $region26: #{time_mixer_forward.1} parent=1 // pred_check
      _
    $region27: #{time_mixer_forward.1} parent=1 // pred_check_branch
      %60 = sbr.rel (0) target = $region29
    $region28: #{time_mixer_forward.1} parent=1 // pred_region
      _
    $region29: #{time_mixer_forward.1} parent=1 // pred_fallthru
      _
    // Predicated region
    $region30: #{time_mixer_forward.1} parent=1 // pred_check
      _
    $region31: #{time_mixer_forward.1} parent=1 // pred_check_branch
      %62 = sbr.rel (0) target = $region33
    $region32: #{time_mixer_forward.1} parent=1 // pred_region
      %s64 = ssub.s32 5120, 5120
      %65 = vsyncadd [#allocation7], %s64
      %s66 = sshll.u32 [#allocation8], 4
      %s67 = int_to_ptr.vmem [resolvable:$true] %s66
      %72 = dma.hbm_to_vmem [thread:$0]  %s7, 5120, %s67, [#allocation7], 256, 256, 16
    $region33: #{time_mixer_forward.1} parent=1 // pred_fallthru
      _
    // Predicated region
    $region34: #{time_mixer_forward.1} parent=1 // pred_check
      _
    $region35: #{time_mixer_forward.1} parent=1 // pred_check_branch
      %74 = sbr.rel (0) target = $region37
    $region36: #{time_mixer_forward.1} parent=1 // pred_region
      %s76 = ssub.s32 32, 32
      %77 = vsyncadd [#allocation10], %s76
      %s79 = sshll.u32 [#allocation9], 4
      %s80 = int_to_ptr.vmem [resolvable:$true] %s79
      %82 = dma.hbm_to_vmem [thread:$0]  %s8, 32, %s80, [#allocation10]
    $region37: #{time_mixer_forward.1} parent=1 // pred_fallthru
      _
    // Predicated region
    $region38: #{time_mixer_forward.1} parent=1 // pred_check
      _
    $region39: #{time_mixer_forward.1} parent=1 // pred_check_branch
      %84 = sbr.rel (0) target = $region41
    $region40: #{time_mixer_forward.1} parent=1 // pred_region
      _
    $region41: #{time_mixer_forward.1} parent=1 // pred_fallthru
      _
    // Predicated region
    $region42: #{time_mixer_forward.1} parent=1 // pred_check
      _
    $region43: #{time_mixer_forward.1} parent=1 // pred_check_branch
      %86 = sbr.rel (0) target = $region45
    $region44: #{time_mixer_forward.1} parent=1 // pred_region
      _
    $region45: #{time_mixer_forward.1} parent=1 // pred_fallthru
      _
    // Predicated region
    $region46: #{time_mixer_forward.1} parent=1 // pred_check
      _
    $region47: #{time_mixer_forward.1} parent=1 // pred_check_branch
      %88 = sbr.rel (0) target = $region49
    $region48: #{time_mixer_forward.1} parent=1 // pred_region
      _
    $region49: #{time_mixer_forward.1} parent=1 // pred_fallthru
      _
    // Predicated region
    $region50: #{time_mixer_forward.1} parent=1 // pred_check
      _
    $region51: #{time_mixer_forward.1} parent=1 // pred_check_branch
      %90 = sbr.rel (0) target = $region53
    $region52: #{time_mixer_forward.1} parent=1 // pred_region
      %s92 = ssub.s32 16, 16
      %93 = vsyncadd [#allocation10], %s92
      %s95 = sshll.u32 [#allocation11], 4
      %s96 = int_to_ptr.vmem [resolvable:$true] %s95
      %98 = dma.hbm_to_vmem [thread:$0]  %s12, 16, %s96, [#allocation10]
    $region53: #{time_mixer_forward.1} parent=1 // pred_fallthru
      _
    // Predicated region
    $region54: #{time_mixer_forward.1} parent=1 // pred_check
      _
    $region55: #{time_mixer_forward.1} parent=1 // pred_check_branch
      %100 = sbr.rel (0) target = $region57
    $region56: #{time_mixer_forward.1} parent=1 // pred_region
      _
    $region57: #{time_mixer_forward.1} parent=1 // pred_fallthru
      _
    // Predicated region
    $region58: #{time_mixer_forward.1} parent=1 // pred_check
      _
    $region59: #{time_mixer_forward.1} parent=1 // pred_check_branch
      %102 = sbr.rel (0) target = $region61
    $region60: #{time_mixer_forward.1} parent=1 // pred_region
      %s104 = ssub.s32 16, 16
      %105 = vsyncadd [#allocation13], %s104
      %s107 = sshll.u32 [#allocation12], 4
      %s108 = int_to_ptr.vmem [resolvable:$true] %s107
      %110 = dma.hbm_to_vmem [thread:$0]  %s14, 16, %s108, [#allocation13]
    $region61: #{time_mixer_forward.1} parent=1 // pred_fallthru
      _
    // Predicated region
    $region62: #{time_mixer_forward.1} parent=1 // pred_check
      _
    $region63: #{time_mixer_forward.1} parent=1 // pred_check_branch
      %112 = sbr.rel (0) target = $region65
    $region64: #{time_mixer_forward.1} parent=1 // pred_region
      %s114 = ssub.s32 16, 16
      %115 = vsyncadd [#allocation13], %s114
      %s117 = sshll.u32 [#allocation14], 4
      %s118 = int_to_ptr.vmem [resolvable:$true] %s117
      %120 = dma.hbm_to_vmem [thread:$0]  %s15, 16, %s118, [#allocation13]
    $region65: #{time_mixer_forward.1} parent=1 // pred_fallthru
      _
    // Predicated region
    $region66: #{time_mixer_forward.1} parent=1 // pred_check
      _
    $region67: #{time_mixer_forward.1} parent=1 // pred_check_branch
      %122 = sbr.rel (0) target = $region69
    $region68: #{time_mixer_forward.1} parent=1 // pred_region
      _
    $region69: #{time_mixer_forward.1} parent=1 // pred_fallthru
      _
    // Predicated region
    $region70: #{time_mixer_forward.1} parent=1 // pred_check
      _
    $region71: #{time_mixer_forward.1} parent=1 // pred_check_branch
      %124 = sbr.rel (0) target = $region73
    $region72: #{time_mixer_forward.1} parent=1 // pred_region
      %125 = dma.done [#allocation4], 16
    $region73: #{time_mixer_forward.1} parent=1 // pred_fallthru
      _
    // Predicated region
    $region74: #{time_mixer_forward.1} parent=1 // pred_check
      _
    $region75: #{time_mixer_forward.1} parent=1 // pred_check_branch
      %127 = sbr.rel (0) target = $region77
    $region76: #{time_mixer_forward.1} parent=1 // pred_region
      %128 = dma.done [#allocation7], 16
    $region77: #{time_mixer_forward.1} parent=1 // pred_fallthru
      _
    // Predicated region
    $region78: #{time_mixer_forward.1} parent=1 // pred_check
      _
    $region79: #{time_mixer_forward.1} parent=1 // pred_check_branch
      %130 = sbr.rel (0) target = $region81
    $region80: #{time_mixer_forward.1} parent=1 // pred_region
      %131 = dma.done [#allocation7], 5120
    $region81: #{time_mixer_forward.1} parent=1 // pred_fallthru
      _
    // Predicated region
    $region82: #{time_mixer_forward.1} parent=1 // pred_check
      _
    $region83: #{time_mixer_forward.1} parent=1 // pred_check_branch
      %133 = sbr.rel (0) target = $region85
    $region84: #{time_mixer_forward.1} parent=1 // pred_region
      %134 = dma.done [#allocation10], 32
    $region85: #{time_mixer_forward.1} parent=1 // pred_fallthru
      _
    // Predicated region
    $region86: #{time_mixer_forward.1} parent=1 // pred_check
      _
    $region87: #{time_mixer_forward.1} parent=1 // pred_check_branch
      %136 = sbr.rel (0) target = $region89
    $region88: #{time_mixer_forward.1} parent=1 // pred_region
      %137 = dma.done [#allocation10], 16
    $region89: #{time_mixer_forward.1} parent=1 // pred_fallthru
      _
    // Predicated region
    $region90: #{time_mixer_forward.1} parent=1 // pred_check
      _
    $region91: #{time_mixer_forward.1} parent=1 // pred_check_branch
      %139 = sbr.rel (0) target = $region93
    $region92: #{time_mixer_forward.1} parent=1 // pred_region
      %140 = dma.done [#allocation13], 16
    $region93: #{time_mixer_forward.1} parent=1 // pred_fallthru
      _
    // Predicated region
    $region94: #{time_mixer_forward.1} parent=1 // pred_check
      _
    $region95: #{time_mixer_forward.1} parent=1 // pred_check_branch
      %142 = sbr.rel (0) target = $region97
    $region96: #{time_mixer_forward.1} parent=1 // pred_region
      %143 = dma.done [#allocation13], 16
    $region97: #{time_mixer_forward.1} parent=1 // pred_fallthru
      _
    %v144 = vld [vmem:[%s0] sm:$0xff]
    %vm145 = vcmask 261120
    %v146 = vsel %vm145, %v144, 0.0
    %147 = vadd.xlane.f32.xlu0 %v146
    %v148 = vpop.xlane.xlu0 %147
    %v149 = vrcp.pop 32.0
    %v150 = vmul.f32 %v148, %v149
    %v151 = vsub.f32 %v144, %v150
    %v152 = vmul.f32 %v151, %v151
    %v153 = vsel %vm145, %v152, 0.0
    %154 = vadd.xlane.f32.xlu0 %v153
    %v155 = vpop.xlane.xlu0 %154
    %v156 = vmul.f32 %v155, %v149
    %v157 = vadd.f32 %v156, 1e-05
    %v158 = vrsqrt.pop %v157
    %v159 = vmul.f32 %v151, %v158
    %v160 = vld [vmem:[#allocation3] sm:$0x1]
    %v162 = vlaneseq
    %v163 = vshrl.u32 %v162, 7
    %v164 = vsub.s32 0, %v163
    %v165 = vrot.slane %v160, %v164
    %v167 = vmul.f32 %v159, %v165
    %v168 = vld [vmem:[#allocation6] sm:$0x1]
    %v170 = vlaneseq
    %v171 = vshrl.u32 %v170, 7
    %v172 = vsub.s32 0, %v171
    %v173 = vrot.slane %v168, %v172
    %v175 = vadd.f32 %v167, %v173
    %v176 = vlaneseq
    %v177 = vshrl.u32 %v176, 7
    %v178 = vlaneseq
    %v179 = vand.u32 %v178, 127
    %v180 = vadd.s32 %v179, 1
    %vm181 = vcmp.eq.s32.totalorder %v177, %v180
    %v182 = vsel %vm181, 1, 0
    %v183 = vcvt.s32.f32 %v182
    %vm184 = vcmask 64512
    %v186 = vsel %vm184, %v183, 0
    %188 = vmatprep.subr.mxu0 0.0
    %189 = vmatpush1.msra.mxu0 0.0
    %190 = vmatprep.subr.mxu0 0.0
    %191 = vmatpush1.msra.mxu0 0.0
    %192 = vmatprep.subr.mxu0 0.0
    %193 = vmatpush1.msra.mxu0 0.0
    %194 = vmatprep.subr.mxu0 0.0
    %195 = vmatpush1.msra.mxu0 0.0
    %196 = vmatprep.subr.mxu0 0.0
    %197 = vmatpush1.msra.mxu0 0.0
    %198 = vmatprep.subr.mxu0 0.0
    %199 = vmatpush1.msra.mxu0 0.0
    %200 = vmatprep.subr.mxu0 0.0
    %201 = vmatpush1.msra.mxu0 0.0
    %202 = vmatprep.subr.mxu0 0.0
    %203 = vmatpush1.msra.mxu0 0.0
    %204 = vmatprep.subr.mxu0 0.0
    %205 = vmatpush1.msra.mxu0 0.0
    %206 = vmatprep.subr.mxu0 0.0
    %207 = vmatpush1.msra.mxu0 0.0
    %208 = vmatprep.subr.mxu0 0.0
    %209 = vmatpush1.msra.mxu0 0.0
    %210 = vmatprep.subr.mxu0 0.0
    %211 = vmatpush1.msra.mxu0 0.0
    %212 = vmatprep.subr.mxu0 0.0
    %213 = vmatpush1.msra.mxu0 0.0
    %214 = vmatprep.subr.mxu0 0.0
    %215 = vmatpush1.msra.mxu0 0.0
    %216 = vmatprep.subr.mxu0 0.0
    %217 = vmatpush1.msra.mxu0 0.0
    %218 = vmatprep.subr.mxu0 0.0
    %219 = vmatpush1.msra.mxu0 %v175
    %220 = vmatprep.subr.mxu0 0.0
    %221 = vmatpush2.msra.mxu0 0.0
    %222 = vmatprep.subr.mxu0 0.0
    %223 = vmatpush2.msra.mxu0 0.0
    %224 = vmatprep.subr.mxu0 0.0
    %225 = vmatpush2.msra.mxu0 0.0
    %226 = vmatprep.subr.mxu0 0.0
    %227 = vmatpush2.msra.mxu0 0.0
    %228 = vmatprep.subr.mxu0 0.0
    %229 = vmatpush2.msra.mxu0 0.0
    %230 = vmatprep.subr.mxu0 0.0
    %231 = vmatpush2.msra.mxu0 0.0
    %232 = vmatprep.subr.mxu0 0.0
    %233 = vmatpush2.msra.mxu0 0.0
    %234 = vmatprep.subr.mxu0 0.0
    %235 = vmatpush2.msra.mxu0 0.0
    %236 = vmatprep.subr.mxu0 0.0
    %237 = vmatpush2.msra.mxu0 0.0
    %238 = vmatprep.subr.mxu0 0.0
    %239 = vmatpush2.msra.mxu0 0.0
    %240 = vmatprep.subr.mxu0 0.0
    %241 = vmatpush2.msra.mxu0 0.0
    %242 = vmatprep.subr.mxu0 0.0
    %243 = vmatpush2.msra.mxu0 0.0
    %244 = vmatprep.subr.mxu0 0.0
    %245 = vmatpush2.msra.mxu0 0.0
    %246 = vmatprep.subr.mxu0 0.0
    %247 = vmatpush2.msra.mxu0 0.0
    %248 = vmatprep.subr.mxu0 0.0
    %249 = vmatpush2.msra.mxu0 0.0
    %250 = vmatprep.subr.mxu0 0.0
    %251 = vmatpush2.msra.mxu0 0.0
    %252 = vmatprep.mubr.f32.mxu0 0.0
    %253 = vmatmul.mubr.f32.gmra.mxu0 %v186
    %v254 = vpop.f32.mrf.mxu0
    %v255 = vadd.f32 0.0, %v254
    %v256 = vpop.f32.mrf.mxu0
    %257 = vdwg.mxu0
    %vm258 = vcmp.eq.s32.totalorder %v177, 0
    %v259 = vld [vmem:[%s1] sm:$0x1]
    %v261 = vlaneseq
    %v262 = vshrl.u32 %v261, 7
    %v263 = vsub.s32 0, %v262
    %v264 = vrot.slane %v259, %v263
    %v266 = vsel %vm258, %v264, %v255
    %v267 = vsub.f32 %v266, %v175
    %v268 = vld [vmem:[%s5] sm:$0x1]
    %v270 = vlaneseq
    %v271 = vshrl.u32 %v270, 7
    %v272 = vsub.s32 0, %v271
    %v273 = vrot.slane %v268, %v272
    %v275 = vmul.f32 %v273, %v267
    %v276 = vadd.f32 %v175, %v275
    %v277 = vld [vmem:[%s6] sm:$0xff]
    %v278 = vld [vmem:[%s6 + $0x8] sm:$0xff]
    %v279 = vld [vmem:[%s6 + $0x10] sm:$0xff]
    %v280 = vld [vmem:[%s6 + $0x18] sm:$0xff]
    %v281 = vld [vmem:[%s6 + $0x20] sm:$0xff]
    %v282 = vld [vmem:[%s6 + $0x28] sm:$0xff]
    %v283 = vld [vmem:[%s6 + $0x30] sm:$0xff]
    %v284 = vld [vmem:[%s6 + $0x38] sm:$0xff]
    %v286 = vsel %vm145, %v276, 0
    %288 = vmatprep.subr.mxu0 0.0
    %289 = vmatpush1.msra.mxu0 0.0
    %290 = vmatprep.subr.mxu0 0.0
    %291 = vmatpush1.msra.mxu0 0.0
    %292 = vmatprep.subr.mxu0 0.0
    %293 = vmatpush1.msra.mxu0 0.0
    %294 = vmatprep.subr.mxu0 0.0
    %295 = vmatpush1.msra.mxu0 0.0
    %296 = vmatprep.subr.mxu0 0.0
    %297 = vmatpush1.msra.mxu0 0.0
    %298 = vmatprep.subr.mxu0 0.0
    %299 = vmatpush1.msra.mxu0 0.0
    %300 = vmatprep.subr.mxu0 0.0
    %301 = vmatpush1.msra.mxu0 0.0
    %302 = vmatprep.subr.mxu0 0.0
    %303 = vmatpush1.msra.mxu0 0.0
    %304 = vmatprep.subr.mxu0 0.0
    %305 = vmatpush1.msra.mxu0 0.0
    %306 = vmatprep.subr.mxu0 0.0
    %307 = vmatpush1.msra.mxu0 0.0
    %308 = vmatprep.subr.mxu0 0.0
    %309 = vmatpush1.msra.mxu0 0.0
    %310 = vmatprep.subr.mxu0 0.0
    %311 = vmatpush1.msra.mxu0 0.0
    %312 = vmatprep.subr.mxu0 %v284
    %313 = vmatpush1.msra.mxu0 %v283
    %314 = vmatprep.subr.mxu0 %v282
    %315 = vmatpush1.msra.mxu0 %v281
    %316 = vmatprep.subr.mxu0 %v280
    %317 = vmatpush1.msra.mxu0 %v279
    %318 = vmatprep.subr.mxu0 %v278
    %319 = vmatpush1.msra.mxu0 %v277
    %320 = vmatprep.subr.mxu0 0.0
    %321 = vmatpush2.msra.mxu0 0.0
    %322 = vmatprep.subr.mxu0 0.0
    %323 = vmatpush2.msra.mxu0 0.0
    %324 = vmatprep.subr.mxu0 0.0
    %325 = vmatpush2.msra.mxu0 0.0
    %326 = vmatprep.subr.mxu0 0.0
    %327 = vmatpush2.msra.mxu0 0.0
    %328 = vmatprep.subr.mxu0 0.0
    %329 = vmatpush2.msra.mxu0 0.0
    %330 = vmatprep.subr.mxu0 0.0
    %331 = vmatpush2.msra.mxu0 0.0
    %332 = vmatprep.subr.mxu0 0.0
    %333 = vmatpush2.msra.mxu0 0.0
    %334 = vmatprep.subr.mxu0 0.0
    %335 = vmatpush2.msra.mxu0 0.0
    %336 = vmatprep.subr.mxu0 0.0
    %337 = vmatpush2.msra.mxu0 0.0
    %338 = vmatprep.subr.mxu0 0.0
    %339 = vmatpush2.msra.mxu0 0.0
    %340 = vmatprep.subr.mxu0 0.0
    %341 = vmatpush2.msra.mxu0 0.0
    %342 = vmatprep.subr.mxu0 0.0
    %343 = vmatpush2.msra.mxu0 0.0
    %344 = vmatprep.subr.mxu0 0.0
    %345 = vmatpush2.msra.mxu0 0.0
    %346 = vmatprep.subr.mxu0 0.0
    %347 = vmatpush2.msra.mxu0 0.0
    %348 = vmatprep.subr.mxu0 0.0
    %349 = vmatpush2.msra.mxu0 0.0
    %350 = vmatprep.subr.mxu0 0.0
    %351 = vmatpush2.msra.mxu0 0.0
    %352 = vmatprep.mubr.f32.mxu0 0.0
    %353 = vmatmul.mubr.f32.gmra.mxu0 %v286
    %v354 = vpop.f32.mrf.mxu0
    %v355 = vadd.f32 0.0, %v354
    %v356 = vpop.f32.mrf.mxu0
    %v357 = vadd.f32 0.0, %v356
    %358 = vdwg.mxu0
    %v359 = vtanh.pop %v355
    %v360 = vtanh.pop %v357
    %v361 = vld [vmem:[#allocation9] sm:$0x3]
    %v362 = vld [vmem:[#allocation8] sm:$0xff]
    %v363 = vld [vmem:[#allocation8 + $0x8] sm:$0xff]
    %v364 = vld [vmem:[#allocation8 + $0x10] sm:$0xff]
    %v365 = vld [vmem:[#allocation8 + $0x18] sm:$0xff]
    %v366 = vld [vmem:[#allocation8 + $0x20] sm:$0xff]
    %v367 = vld [vmem:[#allocation8 + $0x28] sm:$0xff]
    %v368 = vld [vmem:[#allocation8 + $0x30] sm:$0xff]
    %v369 = vld [vmem:[#allocation8 + $0x38] sm:$0xff]
    %v370 = vld [vmem:[#allocation8 + $0x40] sm:$0xff]
    %v371 = vld [vmem:[#allocation8 + $0x48] sm:$0xff]
    %v372 = vld [vmem:[#allocation8 + $0x50] sm:$0xff]
    %v373 = vld [vmem:[#allocation8 + $0x58] sm:$0xff]
    %v374 = vld [vmem:[#allocation8 + $0x60] sm:$0xff]
    %v375 = vld [vmem:[#allocation8 + $0x68] sm:$0xff]
    %v376 = vld [vmem:[#allocation8 + $0x70] sm:$0xff]
    %v377 = vld [vmem:[#allocation8 + $0x78] sm:$0xff]
    %v378 = vld [vmem:[#allocation8 + $0x80] sm:$0xff]
    %v379 = vld [vmem:[#allocation8 + $0x88] sm:$0xff]
    %v380 = vld [vmem:[#allocation8 + $0x90] sm:$0xff]
    %v381 = vld [vmem:[#allocation8 + $0x98] sm:$0xff]
    %v382 = vld [vmem:[#allocation8 + $0xa0] sm:$0xff]
    %v383 = vld [vmem:[#allocation8 + $0xa8] sm:$0xff]
    %v384 = vld [vmem:[#allocation8 + $0xb0] sm:$0xff]
    %v385 = vld [vmem:[#allocation8 + $0xb8] sm:$0xff]
    %v386 = vld [vmem:[#allocation8 + $0xc0] sm:$0xff]
    %v387 = vld [vmem:[#allocation8 + $0xc8] sm:$0xff]
    %v388 = vld [vmem:[#allocation8 + $0xd0] sm:$0xff]
    %v389 = vld [vmem:[#allocation8 + $0xd8] sm:$0xff]
    %v390 = vld [vmem:[#allocation8 + $0xe0] sm:$0xff]
    %v391 = vld [vmem:[#allocation8 + $0xe8] sm:$0xff]
    %v392 = vld [vmem:[#allocation8 + $0xf0] sm:$0xff]
    %v393 = vld [vmem:[#allocation8 + $0xf8] sm:$0xff]
    %v394 = vld [vmem:[#allocation8 + $0x100] sm:$0xff]
    %v395 = vld [vmem:[#allocation8 + $0x108] sm:$0xff]
    %v396 = vld [vmem:[#allocation8 + $0x110] sm:$0xff]
    %v397 = vld [vmem:[#allocation8 + $0x118] sm:$0xff]
    %v398 = vld [vmem:[#allocation8 + $0x120] sm:$0xff]
    %v399 = vld [vmem:[#allocation8 + $0x128] sm:$0xff]
    %v400 = vld [vmem:[#allocation8 + $0x130] sm:$0xff]
    %v401 = vld [vmem:[#allocation8 + $0x138] sm:$0xff]
    %v403 = vsel %vm145, %v360, 0
    %405 = vmatprep.subr.mxu0 %v393
    %406 = vmatpush1.msra.mxu0 %v392
    %407 = vmatprep.subr.mxu0 %v391
    %408 = vmatpush1.msra.mxu0 %v390
    %409 = vmatprep.subr.mxu0 %v389
    %410 = vmatpush1.msra.mxu0 %v388
    %411 = vmatprep.subr.mxu0 %v387
    %412 = vmatpush1.msra.mxu0 %v386
    %413 = vmatprep.subr.mxu0 %v385
    %414 = vmatpush1.msra.mxu0 %v384
    %415 = vmatprep.subr.mxu0 %v383
    %416 = vmatpush1.msra.mxu0 %v382
    %417 = vmatprep.subr.mxu0 %v381
    %418 = vmatpush1.msra.mxu0 %v380
    %419 = vmatprep.subr.mxu0 %v379
    %420 = vmatpush1.msra.mxu0 %v378
    %421 = vmatprep.subr.mxu0 %v377
    %422 = vmatpush1.msra.mxu0 %v376
    %423 = vmatprep.subr.mxu0 %v375
    %424 = vmatpush1.msra.mxu0 %v374
    %425 = vmatprep.subr.mxu0 %v373
    %426 = vmatpush1.msra.mxu0 %v372
    %427 = vmatprep.subr.mxu0 %v371
    %428 = vmatpush1.msra.mxu0 %v370
    %429 = vmatprep.subr.mxu0 %v369
    %430 = vmatpush1.msra.mxu0 %v368
    %431 = vmatprep.subr.mxu0 %v367
    %432 = vmatpush1.msra.mxu0 %v366
    %433 = vmatprep.subr.mxu0 %v365
    %434 = vmatpush1.msra.mxu0 %v364
    %435 = vmatprep.subr.mxu0 %v363
    %436 = vmatpush1.msra.mxu0 %v362
    %437 = vmatprep.subr.mxu0 0.0
    %438 = vmatpush2.msra.mxu0 0.0
    %439 = vmatprep.subr.mxu0 0.0
    %440 = vmatpush2.msra.mxu0 0.0
    %441 = vmatprep.subr.mxu0 0.0
    %442 = vmatpush2.msra.mxu0 0.0
    %443 = vmatprep.subr.mxu0 0.0
    %444 = vmatpush2.msra.mxu0 0.0
    %445 = vmatprep.subr.mxu0 0.0
    %446 = vmatpush2.msra.mxu0 0.0
    %447 = vmatprep.subr.mxu0 0.0
    %448 = vmatpush2.msra.mxu0 0.0
    %449 = vmatprep.subr.mxu0 0.0
    %450 = vmatpush2.msra.mxu0 0.0
    %451 = vmatprep.subr.mxu0 0.0
    %452 = vmatpush2.msra.mxu0 0.0
    %453 = vmatprep.subr.mxu0 0.0
    %454 = vmatpush2.msra.mxu0 0.0
    %455 = vmatprep.subr.mxu0 0.0
    %456 = vmatpush2.msra.mxu0 0.0
    %457 = vmatprep.subr.mxu0 0.0
    %458 = vmatpush2.msra.mxu0 0.0
    %459 = vmatprep.subr.mxu0 0.0
    %460 = vmatpush2.msra.mxu0 0.0
    %461 = vmatprep.subr.mxu0 %v401
    %462 = vmatpush2.msra.mxu0 %v400
    %463 = vmatprep.subr.mxu0 %v399
    %464 = vmatpush2.msra.mxu0 %v398
    %465 = vmatprep.subr.mxu0 %v397
    %466 = vmatpush2.msra.mxu0 %v396
    %467 = vmatprep.subr.mxu0 %v395
    %468 = vmatpush2.msra.mxu0 %v394
    %469 = vmatprep.mubr.f32.mxu0 %v403
    %470 = vmatmul.mubr.f32.gmra.mxu0 %v359
    %v471 = vpop.f32.mrf.mxu0
    %v472 = vadd.f32 0.0, %v471
    %v473 = vpop.f32.mrf.mxu0
    %v474 = vadd.f32 0.0, %v473
    %475 = vdwg.mxu0
    %v477 = vlaneseq
    %v478 = vshrl.u32 %v477, 7
    %v479 = vsub.s32 0, %v478
    %v480 = vrot.slane %v361, %v479
    %v481 = vlaneseq
    %v482 = vshrl.u32 %v481, 7
    %v483 = vsub.s32 1, %v482
    %v484 = vrot.slane %v361, %v483
    %v487 = vadd.f32 %v480, %v472
    %v488 = vadd.f32 %v484, %v474
    %v489 = vadd.s32 %v177, 8
    %v490 = vadd.s32 %v177, 16
    %v491 = vadd.s32 %v177, 24
    %vm492 = vcmp.eq.s32.totalorder %v179, %v177
    %vm493 = vcmp.eq.s32.totalorder %v179, %v489
    %vm494 = vcmp.eq.s32.totalorder %v179, %v490
    %vm495 = vcmp.eq.s32.totalorder %v179, %v491
    %v496 = vadd.s32 %v177, 32
    %v497 = vadd.s32 %v489, 32
    %v498 = vadd.s32 %v490, 32
    %v499 = vadd.s32 %v491, 32
    %vm500 = vcmp.eq.s32.totalorder %v179, %v496
    %vm501 = vcmp.eq.s32.totalorder %v179, %v497
    %vm502 = vcmp.eq.s32.totalorder %v179, %v498
    %vm503 = vcmp.eq.s32.totalorder %v179, %v499
    %vm504 = vmor %vm492, %vm500
    %vm505 = vmor %vm493, %vm501
    %vm506 = vmor %vm494, %vm502
    %vm507 = vmor %vm495, %vm503
    %v508 = vadd.s32 %v177, 64
    %v509 = vadd.s32 %v489, 64
    %v510 = vadd.s32 %v490, 64
    %v511 = vadd.s32 %v491, 64
    %vm512 = vcmp.eq.s32.totalorder %v179, %v508
    %vm513 = vcmp.eq.s32.totalorder %v179, %v509
    %vm514 = vcmp.eq.s32.totalorder %v179, %v510
    %vm515 = vcmp.eq.s32.totalorder %v179, %v511
    %vm516 = vmor %vm504, %vm512
    %vm517 = vmor %vm505, %vm513
    %vm518 = vmor %vm506, %vm514
    %vm519 = vmor %vm507, %vm515
    %v520 = vadd.s32 %v177, 96
    %v521 = vadd.s32 %v489, 96
    %v522 = vadd.s32 %v490, 96
    %v523 = vadd.s32 %v491, 96
    %vm524 = vcmp.eq.s32.totalorder %v179, %v520
    %vm525 = vcmp.eq.s32.totalorder %v179, %v521
    %vm526 = vcmp.eq.s32.totalorder %v179, %v522
    %vm527 = vcmp.eq.s32.totalorder %v179, %v523
    %vm528 = vmor %vm516, %vm524
    %vm529 = vmor %vm517, %vm525
    %vm530 = vmor %vm518, %vm526
    %vm531 = vmor %vm519, %vm527
    %v532 = vsel %vm528, 1, 0
    %v533 = vsel %vm529, 1, 0
    %v534 = vsel %vm530, 1, 0
    %v535 = vsel %vm531, 1, 0
    %v536 = vcvt.s32.f32 %v532
    %v537 = vcvt.s32.f32 %v533
    %v538 = vcvt.s32.f32 %v534
    %v539 = vcvt.s32.f32 %v535
    %v541 = vsel %vm145, %v267, 0
    %543 = vmatprep.subr.mxu0 0.0
    %544 = vmatpush1.msra.mxu0 0.0
    %545 = vmatprep.subr.mxu0 0.0
    %546 = vmatpush1.msra.mxu0 0.0
    %547 = vmatprep.subr.mxu0 0.0
    %548 = vmatpush1.msra.mxu0 0.0
    %549 = vmatprep.subr.mxu0 0.0
    %550 = vmatpush1.msra.mxu0 0.0
    %551 = vmatprep.subr.mxu0 0.0
    %552 = vmatpush1.msra.mxu0 0.0
    %553 = vmatprep.subr.mxu0 0.0
    %554 = vmatpush1.msra.mxu0 0.0
    %555 = vmatprep.subr.mxu0 0.0
    %556 = vmatpush1.msra.mxu0 0.0
    %557 = vmatprep.subr.mxu0 0.0
    %558 = vmatpush1.msra.mxu0 0.0
    %559 = vmatprep.subr.mxu0 0.0
    %560 = vmatpush1.msra.mxu0 0.0
    %561 = vmatprep.subr.mxu0 0.0
    %562 = vmatpush1.msra.mxu0 0.0
    %563 = vmatprep.subr.mxu0 0.0
    %564 = vmatpush1.msra.mxu0 0.0
    %565 = vmatprep.subr.mxu0 0.0
    %566 = vmatpush1.msra.mxu0 0.0
    %567 = vmatprep.subr.mxu0 0.0
    %568 = vmatpush1.msra.mxu0 %v539
    %569 = vmatprep.subr.mxu0 0.0
    %570 = vmatpush1.msra.mxu0 %v538
    %571 = vmatprep.subr.mxu0 0.0
    %572 = vmatpush1.msra.mxu0 %v537
    %573 = vmatprep.subr.mxu0 0.0
    %574 = vmatpush1.msra.mxu0 %v536
    %575 = vmatprep.subr.mxu0 0.0
    %576 = vmatpush2.msra.mxu0 0.0
    %577 = vmatprep.subr.mxu0 0.0
    %578 = vmatpush2.msra.mxu0 0.0
    %579 = vmatprep.subr.mxu0 0.0
    %580 = vmatpush2.msra.mxu0 0.0
    %581 = vmatprep.subr.mxu0 0.0
    %582 = vmatpush2.msra.mxu0 0.0
    %583 = vmatprep.subr.mxu0 0.0
    %584 = vmatpush2.msra.mxu0 0.0
    %585 = vmatprep.subr.mxu0 0.0
    %586 = vmatpush2.msra.mxu0 0.0
    %587 = vmatprep.subr.mxu0 0.0
    %588 = vmatpush2.msra.mxu0 0.0
    %589 = vmatprep.subr.mxu0 0.0
    %590 = vmatpush2.msra.mxu0 0.0
    %591 = vmatprep.subr.mxu0 0.0
    %592 = vmatpush2.msra.mxu0 0.0
    %593 = vmatprep.subr.mxu0 0.0
    %594 = vmatpush2.msra.mxu0 0.0
    %595 = vmatprep.subr.mxu0 0.0
    %596 = vmatpush2.msra.mxu0 0.0
    %597 = vmatprep.subr.mxu0 0.0
    %598 = vmatpush2.msra.mxu0 0.0
    %599 = vmatprep.subr.mxu0 0.0
    %600 = vmatpush2.msra.mxu0 0.0
    %601 = vmatprep.subr.mxu0 0.0
    %602 = vmatpush2.msra.mxu0 0.0
    %603 = vmatprep.subr.mxu0 0.0
    %604 = vmatpush2.msra.mxu0 0.0
    %605 = vmatprep.subr.mxu0 0.0
    %606 = vmatpush2.msra.mxu0 0.0
    %607 = vmatprep.mubr.f32.mxu0 0.0
    %608 = vmatmul.mubr.f32.gmra.mxu0 %v541
    %v609 = vpop.f32.mrf.mxu0
    %v610 = vadd.f32 0.0, %v609
    %v611 = vpop.f32.mrf.mxu0
    %612 = vdwg.mxu0
    %v613 = vmul.f32 %v487, %v610
    %v615 = vsel %vm145, %v175, 0
    %617 = vmatprep.subr.mxu0 0.0
    %618 = vmatpush1.msra.mxu0 0.0
    %619 = vmatprep.subr.mxu0 0.0
    %620 = vmatpush1.msra.mxu0 0.0
    %621 = vmatprep.subr.mxu0 0.0
    %622 = vmatpush1.msra.mxu0 0.0
    %623 = vmatprep.subr.mxu0 0.0
    %624 = vmatpush1.msra.mxu0 0.0
    %625 = vmatprep.subr.mxu0 0.0
    %626 = vmatpush1.msra.mxu0 0.0
    %627 = vmatprep.subr.mxu0 0.0
    %628 = vmatpush1.msra.mxu0 0.0
    %629 = vmatprep.subr.mxu0 0.0
    %630 = vmatpush1.msra.mxu0 0.0
    %631 = vmatprep.subr.mxu0 0.0
    %632 = vmatpush1.msra.mxu0 0.0
    %633 = vmatprep.subr.mxu0 0.0
    %634 = vmatpush1.msra.mxu0 0.0
    %635 = vmatprep.subr.mxu0 0.0
    %636 = vmatpush1.msra.mxu0 0.0
    %637 = vmatprep.subr.mxu0 0.0
    %638 = vmatpush1.msra.mxu0 0.0
    %639 = vmatprep.subr.mxu0 0.0
    %640 = vmatpush1.msra.mxu0 0.0
    %641 = vmatprep.subr.mxu0 0.0
    %642 = vmatpush1.msra.mxu0 %v539
    %643 = vmatprep.subr.mxu0 0.0
    %644 = vmatpush1.msra.mxu0 %v538
    %645 = vmatprep.subr.mxu0 0.0
    %646 = vmatpush1.msra.mxu0 %v537
    %647 = vmatprep.subr.mxu0 0.0
    %648 = vmatpush1.msra.mxu0 %v536
    %649 = vmatprep.subr.mxu0 0.0
    %650 = vmatpush2.msra.mxu0 0.0
    %651 = vmatprep.subr.mxu0 0.0
    %652 = vmatpush2.msra.mxu0 0.0
    %653 = vmatprep.subr.mxu0 0.0
    %654 = vmatpush2.msra.mxu0 0.0
    %655 = vmatprep.subr.mxu0 0.0
    %656 = vmatpush2.msra.mxu0 0.0
    %657 = vmatprep.subr.mxu0 0.0
    %658 = vmatpush2.msra.mxu0 0.0
    %659 = vmatprep.subr.mxu0 0.0
    %660 = vmatpush2.msra.mxu0 0.0
    %661 = vmatprep.subr.mxu0 0.0
    %662 = vmatpush2.msra.mxu0 0.0
    %663 = vmatprep.subr.mxu0 0.0
    %664 = vmatpush2.msra.mxu0 0.0
    %665 = vmatprep.subr.mxu0 0.0
    %666 = vmatpush2.msra.mxu0 0.0
    %667 = vmatprep.subr.mxu0 0.0
    %668 = vmatpush2.msra.mxu0 0.0
    %669 = vmatprep.subr.mxu0 0.0
    %670 = vmatpush2.msra.mxu0 0.0
    %671 = vmatprep.subr.mxu0 0.0
    %672 = vmatpush2.msra.mxu0 0.0
    %673 = vmatprep.subr.mxu0 0.0
    %674 = vmatpush2.msra.mxu0 0.0
    %675 = vmatprep.subr.mxu0 0.0
    %676 = vmatpush2.msra.mxu0 0.0
    %677 = vmatprep.subr.mxu0 0.0
    %678 = vmatpush2.msra.mxu0 0.0
    %679 = vmatprep.subr.mxu0 0.0
    %680 = vmatpush2.msra.mxu0 0.0
    %681 = vmatprep.mubr.f32.mxu0 0.0
    %682 = vmatmul.mubr.f32.gmra.mxu0 %v615
    %v683 = vpop.f32.mrf.mxu0
    %v684 = vadd.f32 %v613, %v683
    %v685 = vpop.f32.mrf.mxu0
    %686 = vdwg.mxu0
    %v687 = vmul.f32 %v488, %v267
    %v688 = vadd.f32 %v175, %v687
    %v689 = vld [vmem:[%s9] sm:$0xff]
    %v690 = vld [vmem:[%s9 + $0x8] sm:$0xff]
    %v691 = vld [vmem:[%s9 + $0x10] sm:$0xff]
    %v692 = vld [vmem:[%s9 + $0x18] sm:$0xff]
    %v693 = vld [vmem:[%s9 + $0x20] sm:$0xff]
    %v694 = vld [vmem:[%s9 + $0x28] sm:$0xff]
    %v695 = vld [vmem:[%s9 + $0x30] sm:$0xff]
    %v696 = vld [vmem:[%s9 + $0x38] sm:$0xff]
    %v697 = vld [vmem:[%s9 + $0x40] sm:$0xff]
    %v698 = vld [vmem:[%s9 + $0x48] sm:$0xff]
    %v699 = vld [vmem:[%s9 + $0x50] sm:$0xff]
    %v700 = vld [vmem:[%s9 + $0x58] sm:$0xff]
    %v701 = vld [vmem:[%s9 + $0x60] sm:$0xff]
    %v702 = vld [vmem:[%s9 + $0x68] sm:$0xff]
    %v703 = vld [vmem:[%s9 + $0x70] sm:$0xff]
    %v704 = vld [vmem:[%s9 + $0x78] sm:$0xff]
    %705 = vmatprep.subr.mxu0 0.0
    %706 = vmatpush1.msra.mxu0 %v704
    %707 = vmatprep.subr.mxu0 0.0
    %708 = vmatpush1.msra.mxu0 %v703
    %709 = vmatprep.subr.mxu0 0.0
    %710 = vmatpush1.msra.mxu0 %v702
    %711 = vmatprep.subr.mxu0 0.0
    %712 = vmatpush1.msra.mxu0 %v701
    %713 = vmatprep.subr.mxu0 0.0
    %714 = vmatpush1.msra.mxu0 %v700
    %715 = vmatprep.subr.mxu0 0.0
    %716 = vmatpush1.msra.mxu0 %v699
    %717 = vmatprep.subr.mxu0 0.0
    %718 = vmatpush1.msra.mxu0 %v698
    %719 = vmatprep.subr.mxu0 0.0
    %720 = vmatpush1.msra.mxu0 %v697
    %721 = vmatprep.subr.mxu0 0.0
    %722 = vmatpush1.msra.mxu0 %v696
    %723 = vmatprep.subr.mxu0 0.0
    %724 = vmatpush1.msra.mxu0 %v695
    %725 = vmatprep.subr.mxu0 0.0
    %726 = vmatpush1.msra.mxu0 %v694
    %727 = vmatprep.subr.mxu0 0.0
    %728 = vmatpush1.msra.mxu0 %v693
    %729 = vmatprep.subr.mxu0 0.0
    %730 = vmatpush1.msra.mxu0 %v692
    %731 = vmatprep.subr.mxu0 0.0
    %732 = vmatpush1.msra.mxu0 %v691
    %733 = vmatprep.subr.mxu0 0.0
    %734 = vmatpush1.msra.mxu0 %v690
    %735 = vmatprep.subr.mxu0 0.0
    %736 = vmatpush1.msra.mxu0 %v689
    %737 = vmatprep.subr.mxu0 0.0
    %738 = vmatpush2.msra.mxu0 0.0
    %739 = vmatprep.subr.mxu0 0.0
    %740 = vmatpush2.msra.mxu0 0.0
    %741 = vmatprep.subr.mxu0 0.0
    %742 = vmatpush2.msra.mxu0 0.0
    %743 = vmatprep.subr.mxu0 0.0
    %744 = vmatpush2.msra.mxu0 0.0
    %745 = vmatprep.subr.mxu0 0.0
    %746 = vmatpush2.msra.mxu0 0.0
    %747 = vmatprep.subr.mxu0 0.0
    %748 = vmatpush2.msra.mxu0 0.0
    %749 = vmatprep.subr.mxu0 0.0
    %750 = vmatpush2.msra.mxu0 0.0
    %751 = vmatprep.subr.mxu0 0.0
    %752 = vmatpush2.msra.mxu0 0.0
    %753 = vmatprep.subr.mxu0 0.0
    %754 = vmatpush2.msra.mxu0 0.0
    %755 = vmatprep.subr.mxu0 0.0
    %756 = vmatpush2.msra.mxu0 0.0
    %757 = vmatprep.subr.mxu0 0.0
    %758 = vmatpush2.msra.mxu0 0.0
    %759 = vmatprep.subr.mxu0 0.0
    %760 = vmatpush2.msra.mxu0 0.0
    %761 = vmatprep.subr.mxu0 0.0
    %762 = vmatpush2.msra.mxu0 0.0
    %763 = vmatprep.subr.mxu0 0.0
    %764 = vmatpush2.msra.mxu0 0.0
    %765 = vmatprep.subr.mxu0 0.0
    %766 = vmatpush2.msra.mxu0 0.0
    %767 = vmatprep.subr.mxu0 0.0
    %768 = vmatpush2.msra.mxu0 0.0
    %769 = vmatprep.mubr.f32.mxu0 0.0
    %770 = vmatmul.mubr.f32.gmra.mxu0 %v684
    %v771 = vpop.f32.mrf.mxu0
    %v772 = vadd.f32 0.0, %v771
    %v773 = vpop.f32.mrf.mxu0
    %774 = vdwg.mxu0
    %v775 = vld [vmem:[%s10] sm:$0xff]
    %v776 = vld [vmem:[%s10 + $0x8] sm:$0xff]
    %v777 = vld [vmem:[%s10 + $0x10] sm:$0xff]
    %v778 = vld [vmem:[%s10 + $0x18] sm:$0xff]
    %v780 = vsel %vm145, %v688, 0
    %782 = vmatprep.subr.mxu0 0.0
    %783 = vmatpush1.msra.mxu0 0.0
    %784 = vmatprep.subr.mxu0 0.0
    %785 = vmatpush1.msra.mxu0 0.0
    %786 = vmatprep.subr.mxu0 0.0
    %787 = vmatpush1.msra.mxu0 0.0
    %788 = vmatprep.subr.mxu0 0.0
    %789 = vmatpush1.msra.mxu0 0.0
    %790 = vmatprep.subr.mxu0 0.0
    %791 = vmatpush1.msra.mxu0 0.0
    %792 = vmatprep.subr.mxu0 0.0
    %793 = vmatpush1.msra.mxu0 0.0
    %794 = vmatprep.subr.mxu0 0.0
    %795 = vmatpush1.msra.mxu0 0.0
    %796 = vmatprep.subr.mxu0 0.0
    %797 = vmatpush1.msra.mxu0 0.0
    %798 = vmatprep.subr.mxu0 0.0
    %799 = vmatpush1.msra.mxu0 0.0
    %800 = vmatprep.subr.mxu0 0.0
    %801 = vmatpush1.msra.mxu0 0.0
    %802 = vmatprep.subr.mxu0 0.0
    %803 = vmatpush1.msra.mxu0 0.0
    %804 = vmatprep.subr.mxu0 0.0
    %805 = vmatpush1.msra.mxu0 0.0
    %806 = vmatprep.subr.mxu0 0.0
    %807 = vmatpush1.msra.mxu0 %v778
    %808 = vmatprep.subr.mxu0 0.0
    %809 = vmatpush1.msra.mxu0 %v777
    %810 = vmatprep.subr.mxu0 0.0
    %811 = vmatpush1.msra.mxu0 %v776
    %812 = vmatprep.subr.mxu0 0.0
    %813 = vmatpush1.msra.mxu0 %v775
    %814 = vmatprep.subr.mxu0 0.0
    %815 = vmatpush2.msra.mxu0 0.0
    %816 = vmatprep.subr.mxu0 0.0
    %817 = vmatpush2.msra.mxu0 0.0
    %818 = vmatprep.subr.mxu0 0.0
    %819 = vmatpush2.msra.mxu0 0.0
    %820 = vmatprep.subr.mxu0 0.0
    %821 = vmatpush2.msra.mxu0 0.0
    %822 = vmatprep.subr.mxu0 0.0
    %823 = vmatpush2.msra.mxu0 0.0
    %824 = vmatprep.subr.mxu0 0.0
    %825 = vmatpush2.msra.mxu0 0.0
    %826 = vmatprep.subr.mxu0 0.0
    %827 = vmatpush2.msra.mxu0 0.0
    %828 = vmatprep.subr.mxu0 0.0
    %829 = vmatpush2.msra.mxu0 0.0
    %830 = vmatprep.subr.mxu0 0.0
    %831 = vmatpush2.msra.mxu0 0.0
    %832 = vmatprep.subr.mxu0 0.0
    %833 = vmatpush2.msra.mxu0 0.0
    %834 = vmatprep.subr.mxu0 0.0
    %835 = vmatpush2.msra.mxu0 0.0
    %836 = vmatprep.subr.mxu0 0.0
    %837 = vmatpush2.msra.mxu0 0.0
    %838 = vmatprep.subr.mxu0 0.0
    %839 = vmatpush2.msra.mxu0 0.0
    %840 = vmatprep.subr.mxu0 0.0
    %841 = vmatpush2.msra.mxu0 0.0
    %842 = vmatprep.subr.mxu0 0.0
    %843 = vmatpush2.msra.mxu0 0.0
    %844 = vmatprep.subr.mxu0 0.0
    %845 = vmatpush2.msra.mxu0 0.0
    %846 = vmatprep.mubr.f32.mxu0 0.0
    %847 = vmatmul.mubr.f32.gmra.mxu0 %v780
    %v848 = vpop.f32.mrf.mxu0
    %v849 = vadd.f32 0.0, %v848
    %v850 = vpop.f32.mrf.mxu0
    %851 = vdwg.mxu0
    %v852 = vtanh.pop %v849
    %v853 = vld [vmem:[#allocation11] sm:$0x1]
    %v854 = vld [vmem:[%s11] sm:$0xff]
    %v855 = vld [vmem:[%s11 + $0x8] sm:$0xff]
    %v856 = vld [vmem:[%s11 + $0x10] sm:$0xff]
    %v857 = vld [vmem:[%s11 + $0x18] sm:$0xff]
    %v858 = vld [vmem:[%s11 + $0x20] sm:$0xff]
    %v859 = vld [vmem:[%s11 + $0x28] sm:$0xff]
    %v860 = vld [vmem:[%s11 + $0x30] sm:$0xff]
    %v861 = vld [vmem:[%s11 + $0x38] sm:$0xff]
    %vm862 = vcmask 523264
    %v864 = vsel %vm862, %v852, 0
    %866 = vmatprep.subr.mxu0 0.0
    %867 = vmatpush1.msra.mxu0 0.0
    %868 = vmatprep.subr.mxu0 0.0
    %869 = vmatpush1.msra.mxu0 0.0
    %870 = vmatprep.subr.mxu0 0.0
    %871 = vmatpush1.msra.mxu0 0.0
    %872 = vmatprep.subr.mxu0 0.0
    %873 = vmatpush1.msra.mxu0 0.0
    %874 = vmatprep.subr.mxu0 0.0
    %875 = vmatpush1.msra.mxu0 0.0
    %876 = vmatprep.subr.mxu0 0.0
    %877 = vmatpush1.msra.mxu0 0.0
    %878 = vmatprep.subr.mxu0 0.0
    %879 = vmatpush1.msra.mxu0 0.0
    %880 = vmatprep.subr.mxu0 0.0
    %881 = vmatpush1.msra.mxu0 0.0
    %882 = vmatprep.subr.mxu0 0.0
    %883 = vmatpush1.msra.mxu0 %v861
    %884 = vmatprep.subr.mxu0 0.0
    %885 = vmatpush1.msra.mxu0 %v860
    %886 = vmatprep.subr.mxu0 0.0
    %887 = vmatpush1.msra.mxu0 %v859
    %888 = vmatprep.subr.mxu0 0.0
    %889 = vmatpush1.msra.mxu0 %v858
    %890 = vmatprep.subr.mxu0 0.0
    %891 = vmatpush1.msra.mxu0 %v857
    %892 = vmatprep.subr.mxu0 0.0
    %893 = vmatpush1.msra.mxu0 %v856
    %894 = vmatprep.subr.mxu0 0.0
    %895 = vmatpush1.msra.mxu0 %v855
    %896 = vmatprep.subr.mxu0 0.0
    %897 = vmatpush1.msra.mxu0 %v854
    %898 = vmatprep.subr.mxu0 0.0
    %899 = vmatpush2.msra.mxu0 0.0
    %900 = vmatprep.subr.mxu0 0.0
    %901 = vmatpush2.msra.mxu0 0.0
    %902 = vmatprep.subr.mxu0 0.0
    %903 = vmatpush2.msra.mxu0 0.0
    %904 = vmatprep.subr.mxu0 0.0
    %905 = vmatpush2.msra.mxu0 0.0
    %906 = vmatprep.subr.mxu0 0.0
    %907 = vmatpush2.msra.mxu0 0.0
    %908 = vmatprep.subr.mxu0 0.0
    %909 = vmatpush2.msra.mxu0 0.0
    %910 = vmatprep.subr.mxu0 0.0
    %911 = vmatpush2.msra.mxu0 0.0
    %912 = vmatprep.subr.mxu0 0.0
    %913 = vmatpush2.msra.mxu0 0.0
    %914 = vmatprep.subr.mxu0 0.0
    %915 = vmatpush2.msra.mxu0 0.0
    %916 = vmatprep.subr.mxu0 0.0
    %917 = vmatpush2.msra.mxu0 0.0
    %918 = vmatprep.subr.mxu0 0.0
    %919 = vmatpush2.msra.mxu0 0.0
    %920 = vmatprep.subr.mxu0 0.0
    %921 = vmatpush2.msra.mxu0 0.0
    %922 = vmatprep.subr.mxu0 0.0
    %923 = vmatpush2.msra.mxu0 0.0
    %924 = vmatprep.subr.mxu0 0.0
    %925 = vmatpush2.msra.mxu0 0.0
    %926 = vmatprep.subr.mxu0 0.0
    %927 = vmatpush2.msra.mxu0 0.0
    %928 = vmatprep.subr.mxu0 0.0
    %929 = vmatpush2.msra.mxu0 0.0
    %930 = vmatprep.mubr.f32.mxu0 0.0
    %931 = vmatmul.mubr.f32.gmra.mxu0 %v864
    %v932 = vpop.f32.mrf.mxu0
    %v933 = vadd.f32 0.0, %v932
    %v934 = vpop.f32.mrf.mxu0
    %935 = vdwg.mxu0
    %v937 = vlaneseq
    %v938 = vshrl.u32 %v937, 7
    %v939 = vsub.s32 0, %v938
    %v940 = vrot.slane %v853, %v939
    %v942 = vadd.f32 %v940, %v933
    %v943 = vmul.f32 %v942, 1.442695
    %v944 = vpow.pop %v943
    %v945 = vsub.f32 0.0, %v944
    %v946 = vmul.f32 %v945, 1.442695
    %v947 = vpow.pop %v946
    %vm948 = vcmp.eq.s32.totalorder %v177, %v179
    %vm949 = vcmp.eq.s32.totalorder %v489, %v179
    %vm950 = vcmp.eq.s32.totalorder %v490, %v179
    %vm951 = vcmp.eq.s32.totalorder %v491, %v179
    %v952 = vsel %vm948, 1, 0
    %v953 = vsel %vm949, 1, 0
    %v954 = vsel %vm950, 1, 0
    %v955 = vsel %vm951, 1, 0
    %v956 = vcvt.s32.f32 %v952
    %v957 = vcvt.s32.f32 %v953
    %v958 = vcvt.s32.f32 %v954
    %v959 = vcvt.s32.f32 %v955
    %vm960 = vcmp.ge.s32.totalorder %v177, 0
    %vm961 = vcmp.ge.s32.totalorder %v489, 0
    %vm962 = vcmp.ge.s32.totalorder %v490, 0
    %vm963 = vcmp.ge.s32.totalorder %v491, 0
    %vm964 = vcmp.lt.s32.totalorder %v177, 16
    %vm965 = vcmp.lt.s32.totalorder %v489, 16
    %vm966 = vcmp.lt.s32.totalorder %v490, 16
    %vm967 = vcmp.lt.s32.totalorder %v491, 16
    %vm968 = vmand %vm960, %vm964
    %vm969 = vmand %vm961, %vm965
    %vm970 = vmand %vm962, %vm966
    %vm971 = vmand %vm963, %vm967
    %vm972 = vcmp.ge.s32.totalorder %v179, 0
    %vm973 = vcmp.lt.s32.totalorder %v179, 16
    %vm974 = vmand %vm972, %vm973
    %vm975 = vmand %vm968, %vm974
    %vm976 = vmand %vm969, %vm974
    %vm977 = vmand %vm970, %vm974
    %vm978 = vmand %vm971, %vm974
    %vm979 = vcmp.ge.s32.totalorder %v177, 16
    %vm980 = vcmp.ge.s32.totalorder %v489, 16
    %vm981 = vcmp.ge.s32.totalorder %v490, 16
    %vm982 = vcmp.ge.s32.totalorder %v491, 16
    %vm983 = vcmp.lt.s32.totalorder %v177, 32
    %vm984 = vcmp.lt.s32.totalorder %v489, 32
    %vm985 = vcmp.lt.s32.totalorder %v490, 32
    %vm986 = vcmp.lt.s32.totalorder %v491, 32
    %vm987 = vmand %vm979, %vm983
    %vm988 = vmand %vm980, %vm984
    %vm989 = vmand %vm981, %vm985
    %vm990 = vmand %vm982, %vm986
    %vm991 = vcmp.ge.s32.totalorder %v179, 16
    %vm992 = vcmp.lt.s32.totalorder %v179, 32
    %vm993 = vmand %vm991, %vm992
    %vm994 = vmand %vm987, %vm993
    %vm995 = vmand %vm988, %vm993
    %vm996 = vmand %vm989, %vm993
    %vm997 = vmand %vm990, %vm993
    %vm998 = vmor %vm975, %vm994
    %vm999 = vmor %vm976, %vm995
    %vm1000 = vmor %vm977, %vm996
    %vm1001 = vmor %vm978, %vm997
    %v1002 = vsel %vm998, 1, 0
    %v1003 = vsel %vm999, 1, 0
    %v1004 = vsel %vm1000, 1, 0
    %v1005 = vsel %vm1001, 1, 0
    %v1006 = vcvt.s32.f32 %v1002
    %v1007 = vcvt.s32.f32 %v1003
    %v1008 = vcvt.s32.f32 %v1004
    %v1009 = vcvt.s32.f32 %v1005
    %v1010 = vld [vmem:[%s13] sm:$0x1]
    %v1011 = vld [vmem:[%s2] sm:$0xff]
    %v1012 = vld [vmem:[%s2 + $0x8] sm:$0xff]
    %v1013 = vld [vmem:[%s2 + $0x10] sm:$0xff]
    %v1014 = vld [vmem:[%s2 + $0x18] sm:$0xff]
    %v1015 = vmul.f32 %v772, %v1010
    %1017 = vrot.lane.b32.xlu0 %v772, 96
    %v1018 = vpop.permute.xlu0 %1017
    %v1020 = vmul.f32 %v1015, %v1018
    %v1022 = vsel %vm145, %v1020, 0
    %1024 = vmatprep.subr.mxu0 0.0
    %1025 = vmatpush1.msra.mxu0 0.0
    %1026 = vmatprep.subr.mxu0 0.0
    %1027 = vmatpush1.msra.mxu0 0.0
    %1028 = vmatprep.subr.mxu0 0.0
    %1029 = vmatpush1.msra.mxu0 0.0
    %1030 = vmatprep.subr.mxu0 0.0
    %1031 = vmatpush1.msra.mxu0 0.0
    %1032 = vmatprep.subr.mxu0 0.0
    %1033 = vmatpush1.msra.mxu0 0.0
    %1034 = vmatprep.subr.mxu0 0.0
    %1035 = vmatpush1.msra.mxu0 0.0
    %1036 = vmatprep.subr.mxu0 0.0
    %1037 = vmatpush1.msra.mxu0 0.0
    %1038 = vmatprep.subr.mxu0 0.0
    %1039 = vmatpush1.msra.mxu0 0.0
    %1040 = vmatprep.subr.mxu0 0.0
    %1041 = vmatpush1.msra.mxu0 0.0
    %1042 = vmatprep.subr.mxu0 0.0
    %1043 = vmatpush1.msra.mxu0 0.0
    %1044 = vmatprep.subr.mxu0 0.0
    %1045 = vmatpush1.msra.mxu0 0.0
    %1046 = vmatprep.subr.mxu0 0.0
    %1047 = vmatpush1.msra.mxu0 0.0
    %1048 = vmatprep.subr.mxu0 0.0
    %1049 = vmatpush1.msra.mxu0 %v1009
    %1050 = vmatprep.subr.mxu0 0.0
    %1051 = vmatpush1.msra.mxu0 %v1008
    %1052 = vmatprep.subr.mxu0 0.0
    %1053 = vmatpush1.msra.mxu0 %v1007
    %1054 = vmatprep.subr.mxu0 0.0
    %1055 = vmatpush1.msra.mxu0 %v1006
    %1056 = vmatprep.subr.mxu0 0.0
    %1057 = vmatpush2.msra.mxu0 0.0
    %1058 = vmatprep.subr.mxu0 0.0
    %1059 = vmatpush2.msra.mxu0 0.0
    %1060 = vmatprep.subr.mxu0 0.0
    %1061 = vmatpush2.msra.mxu0 0.0
    %1062 = vmatprep.subr.mxu0 0.0
    %1063 = vmatpush2.msra.mxu0 0.0
    %1064 = vmatprep.subr.mxu0 0.0
    %1065 = vmatpush2.msra.mxu0 0.0
    %1066 = vmatprep.subr.mxu0 0.0
    %1067 = vmatpush2.msra.mxu0 0.0
    %1068 = vmatprep.subr.mxu0 0.0
    %1069 = vmatpush2.msra.mxu0 0.0
    %1070 = vmatprep.subr.mxu0 0.0
    %1071 = vmatpush2.msra.mxu0 0.0
    %1072 = vmatprep.subr.mxu0 0.0
    %1073 = vmatpush2.msra.mxu0 0.0
    %1074 = vmatprep.subr.mxu0 0.0
    %1075 = vmatpush2.msra.mxu0 0.0
    %1076 = vmatprep.subr.mxu0 0.0
    %1077 = vmatpush2.msra.mxu0 0.0
    %1078 = vmatprep.subr.mxu0 0.0
    %1079 = vmatpush2.msra.mxu0 0.0
    %1080 = vmatprep.subr.mxu0 0.0
    %1081 = vmatpush2.msra.mxu0 0.0
    %1082 = vmatprep.subr.mxu0 0.0
    %1083 = vmatpush2.msra.mxu0 0.0
    %1084 = vmatprep.subr.mxu0 0.0
    %1085 = vmatpush2.msra.mxu0 0.0
    %1086 = vmatprep.subr.mxu0 0.0
    %1087 = vmatpush2.msra.mxu0 0.0
    %1088 = vmatprep.mubr.f32.mxu0 0.0
    %1089 = vmatmul.mubr.f32.gmra.mxu0 %v1022
    %v1090 = vpop.f32.mrf.mxu0
    %v1091 = vadd.f32 0.0, %v1090
    %v1092 = vpop.f32.mrf.mxu0
    %1093 = vdwg.mxu0
    %1094 = vrot.lane.b32.xlu0 %v772, 64
    %v1095 = vpop.permute.xlu0 %1094
    %v1097 = vmul.f32 %v1091, %v1095
    %v1098 = vsel %vm145, %v772, 0
    %1100 = vmatprep.subr.mxu0 0.0
    %1101 = vmatpush1.msra.mxu0 0.0
    %1102 = vmatprep.subr.mxu0 0.0
    %1103 = vmatpush1.msra.mxu0 0.0
    %1104 = vmatprep.subr.mxu0 0.0
    %1105 = vmatpush1.msra.mxu0 0.0
    %1106 = vmatprep.subr.mxu0 0.0
    %1107 = vmatpush1.msra.mxu0 0.0
    %1108 = vmatprep.subr.mxu0 0.0
    %1109 = vmatpush1.msra.mxu0 0.0
    %1110 = vmatprep.subr.mxu0 0.0
    %1111 = vmatpush1.msra.mxu0 0.0
    %1112 = vmatprep.subr.mxu0 0.0
    %1113 = vmatpush1.msra.mxu0 0.0
    %1114 = vmatprep.subr.mxu0 0.0
    %1115 = vmatpush1.msra.mxu0 0.0
    %1116 = vmatprep.subr.mxu0 0.0
    %1117 = vmatpush1.msra.mxu0 0.0
    %1118 = vmatprep.subr.mxu0 0.0
    %1119 = vmatpush1.msra.mxu0 0.0
    %1120 = vmatprep.subr.mxu0 0.0
    %1121 = vmatpush1.msra.mxu0 0.0
    %1122 = vmatprep.subr.mxu0 0.0
    %1123 = vmatpush1.msra.mxu0 0.0
    %1124 = vmatprep.subr.mxu0 0.0
    %1125 = vmatpush1.msra.mxu0 %v1014
    %1126 = vmatprep.subr.mxu0 0.0
    %1127 = vmatpush1.msra.mxu0 %v1013
    %1128 = vmatprep.subr.mxu0 0.0
    %1129 = vmatpush1.msra.mxu0 %v1012
    %1130 = vmatprep.subr.mxu0 0.0
    %1131 = vmatpush1.msra.mxu0 %v1011
    %1132 = vmatprep.subr.mxu0 0.0
    %1133 = vmatpush2.msra.mxu0 0.0
    %1134 = vmatprep.subr.mxu0 0.0
    %1135 = vmatpush2.msra.mxu0 0.0
    %1136 = vmatprep.subr.mxu0 0.0
    %1137 = vmatpush2.msra.mxu0 0.0
    %1138 = vmatprep.subr.mxu0 0.0
    %1139 = vmatpush2.msra.mxu0 0.0
    %1140 = vmatprep.subr.mxu0 0.0
    %1141 = vmatpush2.msra.mxu0 0.0
    %1142 = vmatprep.subr.mxu0 0.0
    %1143 = vmatpush2.msra.mxu0 0.0
    %1144 = vmatprep.subr.mxu0 0.0
    %1145 = vmatpush2.msra.mxu0 0.0
    %1146 = vmatprep.subr.mxu0 0.0
    %1147 = vmatpush2.msra.mxu0 0.0
    %1148 = vmatprep.subr.mxu0 0.0
    %1149 = vmatpush2.msra.mxu0 0.0
    %1150 = vmatprep.subr.mxu0 0.0
    %1151 = vmatpush2.msra.mxu0 0.0
    %1152 = vmatprep.subr.mxu0 0.0
    %1153 = vmatpush2.msra.mxu0 0.0
    %1154 = vmatprep.subr.mxu0 0.0
    %1155 = vmatpush2.msra.mxu0 0.0
    %1156 = vmatprep.subr.mxu0 0.0
    %1157 = vmatpush2.msra.mxu0 0.0
    %1158 = vmatprep.subr.mxu0 0.0
    %1159 = vmatpush2.msra.mxu0 0.0
    %1160 = vmatprep.subr.mxu0 0.0
    %1161 = vmatpush2.msra.mxu0 0.0
    %1162 = vmatprep.subr.mxu0 0.0
    %1163 = vmatpush2.msra.mxu0 0.0
    %1164 = vmatprep.mubr.f32.mxu0 0.0
    %1165 = vmatmul.mubr.f32.gmra.mxu0 %v1098
    %v1166 = vpop.f32.mrf.mxu0
    %v1167 = vadd.f32 %v1097, %v1166
    %v1168 = vpop.f32.mrf.mxu0
    %1169 = vdwg.mxu0
    %vm1170 = vcmask 253952
    %1171 = vst.msk [vmem:[#allocation2] sm:$0x1] %vm1170, %v1167
    %v1172 = vlaneseq
    %v1173 = vshrl.u32 %v1172, 7
    %v1174 = vsub.s32 0, %v1173
    %v1175 = vrot.slane %v947, %v1174
    %v1176 = vmul.f32 %v956, %v1175
    %v1177 = vmul.f32 %v957, %v1175
    %v1178 = vmul.f32 %v958, %v1175
    %v1179 = vmul.f32 %v959, %v1175
    %v1180 = vlaneseq
    %v1181 = vshrl.u32 %v1180, 7
    %v1182 = vsub.s32 0, %v1181
    %v1183 = vrot.slane %v772, %v1182
    %1185 = vrot.lane.b32.xlu0 %v1183, 96
    %v1186 = vpop.permute.xlu0 %1185
    %v1188 = vmul.f32 %v956, %v1186
    %v1189 = vmul.f32 %v957, %v1186
    %v1190 = vmul.f32 %v958, %v1186
    %v1191 = vmul.f32 %v959, %v1186
    %1192 = vrot.lane.b32.xlu0 %v1183, 64
    %v1193 = vpop.permute.xlu0 %1192
    %v1195 = vmul.f32 %v1006, %v1193
    %v1196 = vmul.f32 %v1007, %v1193
    %v1197 = vmul.f32 %v1008, %v1193
    %v1198 = vmul.f32 %v1009, %v1193
    %v1200 = vsel %vm145, %v1188, 0
    %v1203 = vsel %vm145, %v1189, 0
    %v1206 = vsel %vm145, %v1190, 0
    %v1209 = vsel %vm145, %v1191, 0
    %1211 = vmatprep.subr.mxu0 0.0
    %1212 = vmatpush1.msra.mxu0 0.0
    %1213 = vmatprep.subr.mxu0 0.0
    %1214 = vmatpush1.msra.mxu0 0.0
    %1215 = vmatprep.subr.mxu0 0.0
    %1216 = vmatpush1.msra.mxu0 0.0
    %1217 = vmatprep.subr.mxu0 0.0
    %1218 = vmatpush1.msra.mxu0 0.0
    %1219 = vmatprep.subr.mxu0 0.0
    %1220 = vmatpush1.msra.mxu0 0.0
    %1221 = vmatprep.subr.mxu0 0.0
    %1222 = vmatpush1.msra.mxu0 0.0
    %1223 = vmatprep.subr.mxu0 0.0
    %1224 = vmatpush1.msra.mxu0 0.0
    %1225 = vmatprep.subr.mxu0 0.0
    %1226 = vmatpush1.msra.mxu0 0.0
    %1227 = vmatprep.subr.mxu0 0.0
    %1228 = vmatpush1.msra.mxu0 0.0
    %1229 = vmatprep.subr.mxu0 0.0
    %1230 = vmatpush1.msra.mxu0 0.0
    %1231 = vmatprep.subr.mxu0 0.0
    %1232 = vmatpush1.msra.mxu0 0.0
    %1233 = vmatprep.subr.mxu0 0.0
    %1234 = vmatpush1.msra.mxu0 0.0
    %1235 = vmatprep.subr.mxu0 0.0
    %1236 = vmatpush1.msra.mxu0 %v1198
    %1237 = vmatprep.subr.mxu0 0.0
    %1238 = vmatpush1.msra.mxu0 %v1197
    %1239 = vmatprep.subr.mxu0 0.0
    %1240 = vmatpush1.msra.mxu0 %v1196
    %1241 = vmatprep.subr.mxu0 0.0
    %1242 = vmatpush1.msra.mxu0 %v1195
    %1243 = vmatprep.subr.mxu0 0.0
    %1244 = vmatpush2.msra.mxu0 0.0
    %1245 = vmatprep.subr.mxu0 0.0
    %1246 = vmatpush2.msra.mxu0 0.0
    %1247 = vmatprep.subr.mxu0 0.0
    %1248 = vmatpush2.msra.mxu0 0.0
    %1249 = vmatprep.subr.mxu0 0.0
    %1250 = vmatpush2.msra.mxu0 0.0
    %1251 = vmatprep.subr.mxu0 0.0
    %1252 = vmatpush2.msra.mxu0 0.0
    %1253 = vmatprep.subr.mxu0 0.0
    %1254 = vmatpush2.msra.mxu0 0.0
    %1255 = vmatprep.subr.mxu0 0.0
    %1256 = vmatpush2.msra.mxu0 0.0
    %1257 = vmatprep.subr.mxu0 0.0
    %1258 = vmatpush2.msra.mxu0 0.0
    %1259 = vmatprep.subr.mxu0 0.0
    %1260 = vmatpush2.msra.mxu0 0.0
    %1261 = vmatprep.subr.mxu0 0.0
    %1262 = vmatpush2.msra.mxu0 0.0
    %1263 = vmatprep.subr.mxu0 0.0
    %1264 = vmatpush2.msra.mxu0 0.0
    %1265 = vmatprep.subr.mxu0 0.0
    %1266 = vmatpush2.msra.mxu0 0.0
    %1267 = vmatprep.subr.mxu0 0.0
    %1268 = vmatpush2.msra.mxu0 0.0
    %1269 = vmatprep.subr.mxu0 0.0
    %1270 = vmatpush2.msra.mxu0 0.0
    %1271 = vmatprep.subr.mxu0 0.0
    %1272 = vmatpush2.msra.mxu0 0.0
    %1273 = vmatprep.subr.mxu0 0.0
    %1274 = vmatpush2.msra.mxu0 0.0
    %1275 = vmatprep.mubr.f32.mxu0 0.0
    %1276 = vmatmul.mubr.f32.gmra.mxu0 %v1200
    %v1277 = vpop.f32.mrf.mxu0
    %v1278 = vadd.f32 0.0, %v1277
    %v1279 = vpop.f32.mrf.mxu0
    %1280 = vmatprep.mubr.f32.mxu0 0.0
    %1281 = vmatmul.mubr.f32.gmra.mxu0 %v1203
    %v1282 = vpop.f32.mrf.mxu0
    %v1283 = vadd.f32 0.0, %v1282
    %v1284 = vpop.f32.mrf.mxu0
    %1285 = vmatprep.mubr.f32.mxu0 0.0
    %1286 = vmatmul.mubr.f32.gmra.mxu0 %v1206
    %v1287 = vpop.f32.mrf.mxu0
    %v1288 = vadd.f32 0.0, %v1287
    %v1289 = vpop.f32.mrf.mxu0
    %1290 = vmatprep.mubr.f32.mxu0 0.0
    %1291 = vmatmul.mubr.f32.gmra.mxu0 %v1209
    %v1292 = vpop.f32.mrf.mxu0
    %v1293 = vadd.f32 0.0, %v1292
    %v1294 = vpop.f32.mrf.mxu0
    %1295 = vdwg.mxu0
    %v1297 = vsel %vm145, %v1176, 0
    %v1300 = vsel %vm145, %v1177, 0
    %v1303 = vsel %vm145, %v1178, 0
    %v1306 = vsel %vm145, %v1179, 0
    %1308 = vmatprep.subr.mxu0 0.0
    %1309 = vmatpush1.msra.mxu0 0.0
    %1310 = vmatprep.subr.mxu0 0.0
    %1311 = vmatpush1.msra.mxu0 0.0
    %1312 = vmatprep.subr.mxu0 0.0
    %1313 = vmatpush1.msra.mxu0 0.0
    %1314 = vmatprep.subr.mxu0 0.0
    %1315 = vmatpush1.msra.mxu0 0.0
    %1316 = vmatprep.subr.mxu0 0.0
    %1317 = vmatpush1.msra.mxu0 0.0
    %1318 = vmatprep.subr.mxu0 0.0
    %1319 = vmatpush1.msra.mxu0 0.0
    %1320 = vmatprep.subr.mxu0 0.0
    %1321 = vmatpush1.msra.mxu0 0.0
    %1322 = vmatprep.subr.mxu0 0.0
    %1323 = vmatpush1.msra.mxu0 0.0
    %1324 = vmatprep.subr.mxu0 0.0
    %1325 = vmatpush1.msra.mxu0 0.0
    %1326 = vmatprep.subr.mxu0 0.0
    %1327 = vmatpush1.msra.mxu0 0.0
    %1328 = vmatprep.subr.mxu0 0.0
    %1329 = vmatpush1.msra.mxu0 0.0
    %1330 = vmatprep.subr.mxu0 0.0
    %1331 = vmatpush1.msra.mxu0 0.0
    %1332 = vmatprep.subr.mxu0 0.0
    %1333 = vmatpush1.msra.mxu0 %v1014
    %1334 = vmatprep.subr.mxu0 0.0
    %1335 = vmatpush1.msra.mxu0 %v1013
    %1336 = vmatprep.subr.mxu0 0.0
    %1337 = vmatpush1.msra.mxu0 %v1012
    %1338 = vmatprep.subr.mxu0 0.0
    %1339 = vmatpush1.msra.mxu0 %v1011
    %1340 = vmatprep.subr.mxu0 0.0
    %1341 = vmatpush2.msra.mxu0 0.0
    %1342 = vmatprep.subr.mxu0 0.0
    %1343 = vmatpush2.msra.mxu0 0.0
    %1344 = vmatprep.subr.mxu0 0.0
    %1345 = vmatpush2.msra.mxu0 0.0
    %1346 = vmatprep.subr.mxu0 0.0
    %1347 = vmatpush2.msra.mxu0 0.0
    %1348 = vmatprep.subr.mxu0 0.0
    %1349 = vmatpush2.msra.mxu0 0.0
    %1350 = vmatprep.subr.mxu0 0.0
    %1351 = vmatpush2.msra.mxu0 0.0
    %1352 = vmatprep.subr.mxu0 0.0
    %1353 = vmatpush2.msra.mxu0 0.0
    %1354 = vmatprep.subr.mxu0 0.0
    %1355 = vmatpush2.msra.mxu0 0.0
    %1356 = vmatprep.subr.mxu0 0.0
    %1357 = vmatpush2.msra.mxu0 0.0
    %1358 = vmatprep.subr.mxu0 0.0
    %1359 = vmatpush2.msra.mxu0 0.0
    %1360 = vmatprep.subr.mxu0 0.0
    %1361 = vmatpush2.msra.mxu0 0.0
    %1362 = vmatprep.subr.mxu0 0.0
    %1363 = vmatpush2.msra.mxu0 0.0
    %1364 = vmatprep.subr.mxu0 0.0
    %1365 = vmatpush2.msra.mxu0 0.0
    %1366 = vmatprep.subr.mxu0 0.0
    %1367 = vmatpush2.msra.mxu0 0.0
    %1368 = vmatprep.subr.mxu0 0.0
    %1369 = vmatpush2.msra.mxu0 0.0
    %1370 = vmatprep.subr.mxu0 0.0
    %1371 = vmatpush2.msra.mxu0 0.0
    %1372 = vmatprep.mubr.f32.mxu0 0.0
    %1373 = vmatmul.mubr.f32.gmra.mxu0 %v1297
    %v1374 = vpop.f32.mrf.mxu0
    %v1375 = vadd.f32 %v1278, %v1374
    %v1376 = vpop.f32.mrf.mxu0
    %1377 = vmatprep.mubr.f32.mxu0 0.0
    %1378 = vmatmul.mubr.f32.gmra.mxu0 %v1300
    %v1379 = vpop.f32.mrf.mxu0
    %v1380 = vadd.f32 %v1283, %v1379
    %v1381 = vpop.f32.mrf.mxu0
    %1382 = vmatprep.mubr.f32.mxu0 0.0
    %1383 = vmatmul.mubr.f32.gmra.mxu0 %v1303
    %v1384 = vpop.f32.mrf.mxu0
    %v1385 = vadd.f32 %v1288, %v1384
    %v1386 = vpop.f32.mrf.mxu0
    %1387 = vmatprep.mubr.f32.mxu0 0.0
    %1388 = vmatmul.mubr.f32.gmra.mxu0 %v1306
    %v1389 = vpop.f32.mrf.mxu0
    %v1390 = vadd.f32 %v1293, %v1389
    %v1391 = vpop.f32.mrf.mxu0
    %1392 = vdwg.mxu0
    %v1394 = vlaneseq
    %v1395 = vshrl.u32 %v1394, 7
    %v1396 = vsub.s32 0, %v1395
    %v1397 = vrot.slane %v1010, %v1396
    %v1399 = vmul.f32 %v772, %v1397
    %v1400 = vmul.f32 %v1399, %v1018
    %v1402 = vrot.slane %v1400, 1
    %v1403 = vsel %vm145, %v1402, 0
    %1405 = vmatprep.subr.mxu0 0.0
    %1406 = vmatpush1.msra.mxu0 0.0
    %1407 = vmatprep.subr.mxu0 0.0
    %1408 = vmatpush1.msra.mxu0 0.0
    %1409 = vmatprep.subr.mxu0 0.0
    %1410 = vmatpush1.msra.mxu0 0.0
    %1411 = vmatprep.subr.mxu0 0.0
    %1412 = vmatpush1.msra.mxu0 0.0
    %1413 = vmatprep.subr.mxu0 0.0
    %1414 = vmatpush1.msra.mxu0 0.0
    %1415 = vmatprep.subr.mxu0 0.0
    %1416 = vmatpush1.msra.mxu0 0.0
    %1417 = vmatprep.subr.mxu0 0.0
    %1418 = vmatpush1.msra.mxu0 0.0
    %1419 = vmatprep.subr.mxu0 0.0
    %1420 = vmatpush1.msra.mxu0 0.0
    %1421 = vmatprep.subr.mxu0 0.0
    %1422 = vmatpush1.msra.mxu0 0.0
    %1423 = vmatprep.subr.mxu0 0.0
    %1424 = vmatpush1.msra.mxu0 0.0
    %1425 = vmatprep.subr.mxu0 0.0
    %1426 = vmatpush1.msra.mxu0 0.0
    %1427 = vmatprep.subr.mxu0 0.0
    %1428 = vmatpush1.msra.mxu0 0.0
    %1429 = vmatprep.subr.mxu0 0.0
    %1430 = vmatpush1.msra.mxu0 %v1009
    %1431 = vmatprep.subr.mxu0 0.0
    %1432 = vmatpush1.msra.mxu0 %v1008
    %1433 = vmatprep.subr.mxu0 0.0
    %1434 = vmatpush1.msra.mxu0 %v1007
    %1435 = vmatprep.subr.mxu0 0.0
    %1436 = vmatpush1.msra.mxu0 %v1006
    %1437 = vmatprep.subr.mxu0 0.0
    %1438 = vmatpush2.msra.mxu0 0.0
    %1439 = vmatprep.subr.mxu0 0.0
    %1440 = vmatpush2.msra.mxu0 0.0
    %1441 = vmatprep.subr.mxu0 0.0
    %1442 = vmatpush2.msra.mxu0 0.0
    %1443 = vmatprep.subr.mxu0 0.0
    %1444 = vmatpush2.msra.mxu0 0.0
    %1445 = vmatprep.subr.mxu0 0.0
    %1446 = vmatpush2.msra.mxu0 0.0
    %1447 = vmatprep.subr.mxu0 0.0
    %1448 = vmatpush2.msra.mxu0 0.0
    %1449 = vmatprep.subr.mxu0 0.0
    %1450 = vmatpush2.msra.mxu0 0.0
    %1451 = vmatprep.subr.mxu0 0.0
    %1452 = vmatpush2.msra.mxu0 0.0
    %1453 = vmatprep.subr.mxu0 0.0
    %1454 = vmatpush2.msra.mxu0 0.0
    %1455 = vmatprep.subr.mxu0 0.0
    %1456 = vmatpush2.msra.mxu0 0.0
    %1457 = vmatprep.subr.mxu0 0.0
    %1458 = vmatpush2.msra.mxu0 0.0
    %1459 = vmatprep.subr.mxu0 0.0
    %1460 = vmatpush2.msra.mxu0 0.0
    %1461 = vmatprep.subr.mxu0 0.0
    %1462 = vmatpush2.msra.mxu0 0.0
    %1463 = vmatprep.subr.mxu0 0.0
    %1464 = vmatpush2.msra.mxu0 0.0
    %1465 = vmatprep.subr.mxu0 0.0
    %1466 = vmatpush2.msra.mxu0 0.0
    %1467 = vmatprep.subr.mxu0 0.0
    %1468 = vmatpush2.msra.mxu0 0.0
    %1469 = vmatprep.mubr.f32.mxu0 0.0
    %1470 = vmatmul.mubr.f32.gmra.mxu0 %v1403
    %v1471 = vpop.f32.mrf.mxu0
    %v1472 = vadd.f32 0.0, %v1471
    %v1473 = vpop.f32.mrf.mxu0
    %1474 = vdwg.mxu0
    %v1475 = vrot.slane %v772, 1
    %1476 = vrot.lane.b32.xlu0 %v1475, 64
    %v1477 = vpop.permute.xlu0 %1476
    %v1479 = vmul.f32 %v1472, %v1477
    %v1480 = vsel %vm145, %v1475, 0
    %1482 = vmatprep.subr.mxu0 0.0
    %1483 = vmatpush1.msra.mxu0 0.0
    %1484 = vmatprep.subr.mxu0 0.0
    %1485 = vmatpush1.msra.mxu0 0.0
    %1486 = vmatprep.subr.mxu0 0.0
    %1487 = vmatpush1.msra.mxu0 0.0
    %1488 = vmatprep.subr.mxu0 0.0
    %1489 = vmatpush1.msra.mxu0 0.0
    %1490 = vmatprep.subr.mxu0 0.0
    %1491 = vmatpush1.msra.mxu0 0.0
    %1492 = vmatprep.subr.mxu0 0.0
    %1493 = vmatpush1.msra.mxu0 0.0
    %1494 = vmatprep.subr.mxu0 0.0
    %1495 = vmatpush1.msra.mxu0 0.0
    %1496 = vmatprep.subr.mxu0 0.0
    %1497 = vmatpush1.msra.mxu0 0.0
    %1498 = vmatprep.subr.mxu0 0.0
    %1499 = vmatpush1.msra.mxu0 0.0
    %1500 = vmatprep.subr.mxu0 0.0
    %1501 = vmatpush1.msra.mxu0 0.0
    %1502 = vmatprep.subr.mxu0 0.0
    %1503 = vmatpush1.msra.mxu0 0.0
    %1504 = vmatprep.subr.mxu0 0.0
    %1505 = vmatpush1.msra.mxu0 0.0
    %1506 = vmatprep.subr.mxu0 0.0
    %1507 = vmatpush1.msra.mxu0 %v1390
    %1508 = vmatprep.subr.mxu0 0.0
    %1509 = vmatpush1.msra.mxu0 %v1385
    %1510 = vmatprep.subr.mxu0 0.0
    %1511 = vmatpush1.msra.mxu0 %v1380
    %1512 = vmatprep.subr.mxu0 0.0
    %1513 = vmatpush1.msra.mxu0 %v1375
    %1514 = vmatprep.subr.mxu0 0.0
    %1515 = vmatpush2.msra.mxu0 0.0
    %1516 = vmatprep.subr.mxu0 0.0
    %1517 = vmatpush2.msra.mxu0 0.0
    %1518 = vmatprep.subr.mxu0 0.0
    %1519 = vmatpush2.msra.mxu0 0.0
    %1520 = vmatprep.subr.mxu0 0.0
    %1521 = vmatpush2.msra.mxu0 0.0
    %1522 = vmatprep.subr.mxu0 0.0
    %1523 = vmatpush2.msra.mxu0 0.0
    %1524 = vmatprep.subr.mxu0 0.0
    %1525 = vmatpush2.msra.mxu0 0.0
    %1526 = vmatprep.subr.mxu0 0.0
    %1527 = vmatpush2.msra.mxu0 0.0
    %1528 = vmatprep.subr.mxu0 0.0
    %1529 = vmatpush2.msra.mxu0 0.0
    %1530 = vmatprep.subr.mxu0 0.0
    %1531 = vmatpush2.msra.mxu0 0.0
    %1532 = vmatprep.subr.mxu0 0.0
    %1533 = vmatpush2.msra.mxu0 0.0
    %1534 = vmatprep.subr.mxu0 0.0
    %1535 = vmatpush2.msra.mxu0 0.0
    %1536 = vmatprep.subr.mxu0 0.0
    %1537 = vmatpush2.msra.mxu0 0.0
    %1538 = vmatprep.subr.mxu0 0.0
    %1539 = vmatpush2.msra.mxu0 0.0
    %1540 = vmatprep.subr.mxu0 0.0
    %1541 = vmatpush2.msra.mxu0 0.0
    %1542 = vmatprep.subr.mxu0 0.0
    %1543 = vmatpush2.msra.mxu0 0.0
    %1544 = vmatprep.subr.mxu0 0.0
    %1545 = vmatpush2.msra.mxu0 0.0
    %1546 = vmatprep.mubr.f32.mxu0 0.0
    %1547 = vmatmul.mubr.f32.gmra.mxu0 %v1480
    %v1548 = vpop.f32.mrf.mxu0
    %v1549 = vadd.f32 %v1479, %v1548
    %v1550 = vpop.f32.mrf.mxu0
    %1551 = vdwg.mxu0
    %1552 = vst.msk [vmem:[#allocation2 + $0x1] sm:$0x1] %vm1170, %v1549
    %v1553 = vlaneseq
    %v1554 = vshrl.u32 %v1553, 7
    %v1555 = vsub.s32 1, %v1554
    %v1556 = vrot.slane %v947, %v1555
    %v1557 = vmul.f32 %v956, %v1556
    %v1558 = vmul.f32 %v957, %v1556
    %v1559 = vmul.f32 %v958, %v1556
    %v1560 = vmul.f32 %v959, %v1556
    %v1561 = vlaneseq
    %v1562 = vshrl.u32 %v1561, 7
    %v1563 = vsub.s32 1, %v1562
    %v1564 = vrot.slane %v772, %v1563
    %1566 = vrot.lane.b32.xlu0 %v1564, 96
    %v1567 = vpop.permute.xlu0 %1566
    %v1569 = vmul.f32 %v956, %v1567
    %v1570 = vmul.f32 %v957, %v1567
    %v1571 = vmul.f32 %v958, %v1567
    %v1572 = vmul.f32 %v959, %v1567
    %1573 = vrot.lane.b32.xlu0 %v1564, 64
    %v1574 = vpop.permute.xlu0 %1573
    %v1576 = vmul.f32 %v1006, %v1574
    %v1577 = vmul.f32 %v1007, %v1574
    %v1578 = vmul.f32 %v1008, %v1574
    %v1579 = vmul.f32 %v1009, %v1574
    %v1581 = vsel %vm145, %v1569, 0
    %v1584 = vsel %vm145, %v1570, 0
    %v1587 = vsel %vm145, %v1571, 0
    %v1590 = vsel %vm145, %v1572, 0
    %1592 = vmatprep.subr.mxu0 0.0
    %1593 = vmatpush1.msra.mxu0 0.0
    %1594 = vmatprep.subr.mxu0 0.0
    %1595 = vmatpush1.msra.mxu0 0.0
    %1596 = vmatprep.subr.mxu0 0.0
    %1597 = vmatpush1.msra.mxu0 0.0
    %1598 = vmatprep.subr.mxu0 0.0
    %1599 = vmatpush1.msra.mxu0 0.0
    %1600 = vmatprep.subr.mxu0 0.0
    %1601 = vmatpush1.msra.mxu0 0.0
    %1602 = vmatprep.subr.mxu0 0.0
    %1603 = vmatpush1.msra.mxu0 0.0
    %1604 = vmatprep.subr.mxu0 0.0
    %1605 = vmatpush1.msra.mxu0 0.0
    %1606 = vmatprep.subr.mxu0 0.0
    %1607 = vmatpush1.msra.mxu0 0.0
    %1608 = vmatprep.subr.mxu0 0.0
    %1609 = vmatpush1.msra.mxu0 0.0
    %1610 = vmatprep.subr.mxu0 0.0
    %1611 = vmatpush1.msra.mxu0 0.0
    %1612 = vmatprep.subr.mxu0 0.0
    %1613 = vmatpush1.msra.mxu0 0.0
    %1614 = vmatprep.subr.mxu0 0.0
    %1615 = vmatpush1.msra.mxu0 0.0
    %1616 = vmatprep.subr.mxu0 0.0
    %1617 = vmatpush1.msra.mxu0 %v1579
    %1618 = vmatprep.subr.mxu0 0.0
    %1619 = vmatpush1.msra.mxu0 %v1578
    %1620 = vmatprep.subr.mxu0 0.0
    %1621 = vmatpush1.msra.mxu0 %v1577
    %1622 = vmatprep.subr.mxu0 0.0
    %1623 = vmatpush1.msra.mxu0 %v1576
    %1624 = vmatprep.subr.mxu0 0.0
    %1625 = vmatpush2.msra.mxu0 0.0
    %1626 = vmatprep.subr.mxu0 0.0
    %1627 = vmatpush2.msra.mxu0 0.0
    %1628 = vmatprep.subr.mxu0 0.0
    %1629 = vmatpush2.msra.mxu0 0.0
    %1630 = vmatprep.subr.mxu0 0.0
    %1631 = vmatpush2.msra.mxu0 0.0
    %1632 = vmatprep.subr.mxu0 0.0
    %1633 = vmatpush2.msra.mxu0 0.0
    %1634 = vmatprep.subr.mxu0 0.0
    %1635 = vmatpush2.msra.mxu0 0.0
    %1636 = vmatprep.subr.mxu0 0.0
    %1637 = vmatpush2.msra.mxu0 0.0
    %1638 = vmatprep.subr.mxu0 0.0
    %1639 = vmatpush2.msra.mxu0 0.0
    %1640 = vmatprep.subr.mxu0 0.0
    %1641 = vmatpush2.msra.mxu0 0.0
    %1642 = vmatprep.subr.mxu0 0.0
    %1643 = vmatpush2.msra.mxu0 0.0
    %1644 = vmatprep.subr.mxu0 0.0
    %1645 = vmatpush2.msra.mxu0 0.0
    %1646 = vmatprep.subr.mxu0 0.0
    %1647 = vmatpush2.msra.mxu0 0.0
    %1648 = vmatprep.subr.mxu0 0.0
    %1649 = vmatpush2.msra.mxu0 0.0
    %1650 = vmatprep.subr.mxu0 0.0
    %1651 = vmatpush2.msra.mxu0 0.0
    %1652 = vmatprep.subr.mxu0 0.0
    %1653 = vmatpush2.msra.mxu0 0.0
    %1654 = vmatprep.subr.mxu0 0.0
    %1655 = vmatpush2.msra.mxu0 0.0
    %1656 = vmatprep.mubr.f32.mxu0 0.0
    %1657 = vmatmul.mubr.f32.gmra.mxu0 %v1581
    %v1658 = vpop.f32.mrf.mxu0
    %v1659 = vadd.f32 0.0, %v1658
    %v1660 = vpop.f32.mrf.mxu0
    %1661 = vmatprep.mubr.f32.mxu0 0.0
    %1662 = vmatmul.mubr.f32.gmra.mxu0 %v1584
    %v1663 = vpop.f32.mrf.mxu0
    %v1664 = vadd.f32 0.0, %v1663
    %v1665 = vpop.f32.mrf.mxu0
    %1666 = vmatprep.mubr.f32.mxu0 0.0
    %1667 = vmatmul.mubr.f32.gmra.mxu0 %v1587
    %v1668 = vpop.f32.mrf.mxu0
    %v1669 = vadd.f32 0.0, %v1668
    %v1670 = vpop.f32.mrf.mxu0
    %1671 = vmatprep.mubr.f32.mxu0 0.0
    %1672 = vmatmul.mubr.f32.gmra.mxu0 %v1590
    %v1673 = vpop.f32.mrf.mxu0
    %v1674 = vadd.f32 0.0, %v1673
    %v1675 = vpop.f32.mrf.mxu0
    %1676 = vdwg.mxu0
    %v1678 = vsel %vm145, %v1557, 0
    %v1681 = vsel %vm145, %v1558, 0
    %v1684 = vsel %vm145, %v1559, 0
    %v1687 = vsel %vm145, %v1560, 0
    %1689 = vmatprep.subr.mxu0 0.0
    %1690 = vmatpush1.msra.mxu0 0.0
    %1691 = vmatprep.subr.mxu0 0.0
    %1692 = vmatpush1.msra.mxu0 0.0
    %1693 = vmatprep.subr.mxu0 0.0
    %1694 = vmatpush1.msra.mxu0 0.0
    %1695 = vmatprep.subr.mxu0 0.0
    %1696 = vmatpush1.msra.mxu0 0.0
    %1697 = vmatprep.subr.mxu0 0.0
    %1698 = vmatpush1.msra.mxu0 0.0
    %1699 = vmatprep.subr.mxu0 0.0
    %1700 = vmatpush1.msra.mxu0 0.0
    %1701 = vmatprep.subr.mxu0 0.0
    %1702 = vmatpush1.msra.mxu0 0.0
    %1703 = vmatprep.subr.mxu0 0.0
    %1704 = vmatpush1.msra.mxu0 0.0
    %1705 = vmatprep.subr.mxu0 0.0
    %1706 = vmatpush1.msra.mxu0 0.0
    %1707 = vmatprep.subr.mxu0 0.0
    %1708 = vmatpush1.msra.mxu0 0.0
    %1709 = vmatprep.subr.mxu0 0.0
    %1710 = vmatpush1.msra.mxu0 0.0
    %1711 = vmatprep.subr.mxu0 0.0
    %1712 = vmatpush1.msra.mxu0 0.0
    %1713 = vmatprep.subr.mxu0 0.0
    %1714 = vmatpush1.msra.mxu0 %v1390
    %1715 = vmatprep.subr.mxu0 0.0
    %1716 = vmatpush1.msra.mxu0 %v1385
    %1717 = vmatprep.subr.mxu0 0.0
    %1718 = vmatpush1.msra.mxu0 %v1380
    %1719 = vmatprep.subr.mxu0 0.0
    %1720 = vmatpush1.msra.mxu0 %v1375
    %1721 = vmatprep.subr.mxu0 0.0
    %1722 = vmatpush2.msra.mxu0 0.0
    %1723 = vmatprep.subr.mxu0 0.0
    %1724 = vmatpush2.msra.mxu0 0.0
    %1725 = vmatprep.subr.mxu0 0.0
    %1726 = vmatpush2.msra.mxu0 0.0
    %1727 = vmatprep.subr.mxu0 0.0
    %1728 = vmatpush2.msra.mxu0 0.0
    %1729 = vmatprep.subr.mxu0 0.0
    %1730 = vmatpush2.msra.mxu0 0.0
    %1731 = vmatprep.subr.mxu0 0.0
    %1732 = vmatpush2.msra.mxu0 0.0
    %1733 = vmatprep.subr.mxu0 0.0
    %1734 = vmatpush2.msra.mxu0 0.0
    %1735 = vmatprep.subr.mxu0 0.0
    %1736 = vmatpush2.msra.mxu0 0.0
    %1737 = vmatprep.subr.mxu0 0.0
    %1738 = vmatpush2.msra.mxu0 0.0
    %1739 = vmatprep.subr.mxu0 0.0
    %1740 = vmatpush2.msra.mxu0 0.0
    %1741 = vmatprep.subr.mxu0 0.0
    %1742 = vmatpush2.msra.mxu0 0.0
    %1743 = vmatprep.subr.mxu0 0.0
    %1744 = vmatpush2.msra.mxu0 0.0
    %1745 = vmatprep.subr.mxu0 0.0
    %1746 = vmatpush2.msra.mxu0 0.0
    %1747 = vmatprep.subr.mxu0 0.0
    %1748 = vmatpush2.msra.mxu0 0.0
    %1749 = vmatprep.subr.mxu0 0.0
    %1750 = vmatpush2.msra.mxu0 0.0
    %1751 = vmatprep.subr.mxu0 0.0
    %1752 = vmatpush2.msra.mxu0 0.0
    %1753 = vmatprep.mubr.f32.mxu0 0.0
    %1754 = vmatmul.mubr.f32.gmra.mxu0 %v1678
    %v1755 = vpop.f32.mrf.mxu0
    %v1756 = vadd.f32 %v1659, %v1755
    %v1757 = vpop.f32.mrf.mxu0
    %1758 = vmatprep.mubr.f32.mxu0 0.0
    %1759 = vmatmul.mubr.f32.gmra.mxu0 %v1681
    %v1760 = vpop.f32.mrf.mxu0
    %v1761 = vadd.f32 %v1664, %v1760
    %v1762 = vpop.f32.mrf.mxu0
    %1763 = vmatprep.mubr.f32.mxu0 0.0
    %1764 = vmatmul.mubr.f32.gmra.mxu0 %v1684
    %v1765 = vpop.f32.mrf.mxu0
    %v1766 = vadd.f32 %v1669, %v1765
    %v1767 = vpop.f32.mrf.mxu0
    %1768 = vmatprep.mubr.f32.mxu0 0.0
    %1769 = vmatmul.mubr.f32.gmra.mxu0 %v1687
    %v1770 = vpop.f32.mrf.mxu0
    %v1771 = vadd.f32 %v1674, %v1770
    %v1772 = vpop.f32.mrf.mxu0
    %1773 = vdwg.mxu0
    %v1774 = vrot.slane %v1400, 2
    %v1775 = vsel %vm145, %v1774, 0
    %1777 = vmatprep.subr.mxu0 0.0
    %1778 = vmatpush1.msra.mxu0 0.0
    %1779 = vmatprep.subr.mxu0 0.0
    %1780 = vmatpush1.msra.mxu0 0.0
    %1781 = vmatprep.subr.mxu0 0.0
    %1782 = vmatpush1.msra.mxu0 0.0
    %1783 = vmatprep.subr.mxu0 0.0
    %1784 = vmatpush1.msra.mxu0 0.0
    %1785 = vmatprep.subr.mxu0 0.0
    %1786 = vmatpush1.msra.mxu0 0.0
    %1787 = vmatprep.subr.mxu0 0.0
    %1788 = vmatpush1.msra.mxu0 0.0
    %1789 = vmatprep.subr.mxu0 0.0
    %1790 = vmatpush1.msra.mxu0 0.0
    %1791 = vmatprep.subr.mxu0 0.0
    %1792 = vmatpush1.msra.mxu0 0.0
    %1793 = vmatprep.subr.mxu0 0.0
    %1794 = vmatpush1.msra.mxu0 0.0
    %1795 = vmatprep.subr.mxu0 0.0
    %1796 = vmatpush1.msra.mxu0 0.0
    %1797 = vmatprep.subr.mxu0 0.0
    %1798 = vmatpush1.msra.mxu0 0.0
    %1799 = vmatprep.subr.mxu0 0.0
    %1800 = vmatpush1.msra.mxu0 0.0
    %1801 = vmatprep.subr.mxu0 0.0
    %1802 = vmatpush1.msra.mxu0 %v1009
    %1803 = vmatprep.subr.mxu0 0.0
    %1804 = vmatpush1.msra.mxu0 %v1008
    %1805 = vmatprep.subr.mxu0 0.0
    %1806 = vmatpush1.msra.mxu0 %v1007
    %1807 = vmatprep.subr.mxu0 0.0
    %1808 = vmatpush1.msra.mxu0 %v1006
    %1809 = vmatprep.subr.mxu0 0.0
    %1810 = vmatpush2.msra.mxu0 0.0
    %1811 = vmatprep.subr.mxu0 0.0
    %1812 = vmatpush2.msra.mxu0 0.0
    %1813 = vmatprep.subr.mxu0 0.0
    %1814 = vmatpush2.msra.mxu0 0.0
    %1815 = vmatprep.subr.mxu0 0.0
    %1816 = vmatpush2.msra.mxu0 0.0
    %1817 = vmatprep.subr.mxu0 0.0
    %1818 = vmatpush2.msra.mxu0 0.0
    %1819 = vmatprep.subr.mxu0 0.0
    %1820 = vmatpush2.msra.mxu0 0.0
    %1821 = vmatprep.subr.mxu0 0.0
    %1822 = vmatpush2.msra.mxu0 0.0
    %1823 = vmatprep.subr.mxu0 0.0
    %1824 = vmatpush2.msra.mxu0 0.0
    %1825 = vmatprep.subr.mxu0 0.0
    %1826 = vmatpush2.msra.mxu0 0.0
    %1827 = vmatprep.subr.mxu0 0.0
    %1828 = vmatpush2.msra.mxu0 0.0
    %1829 = vmatprep.subr.mxu0 0.0
    %1830 = vmatpush2.msra.mxu0 0.0
    %1831 = vmatprep.subr.mxu0 0.0
    %1832 = vmatpush2.msra.mxu0 0.0
    %1833 = vmatprep.subr.mxu0 0.0
    %1834 = vmatpush2.msra.mxu0 0.0
    %1835 = vmatprep.subr.mxu0 0.0
    %1836 = vmatpush2.msra.mxu0 0.0
    %1837 = vmatprep.subr.mxu0 0.0
    %1838 = vmatpush2.msra.mxu0 0.0
    %1839 = vmatprep.subr.mxu0 0.0
    %1840 = vmatpush2.msra.mxu0 0.0
    %1841 = vmatprep.mubr.f32.mxu0 0.0
    %1842 = vmatmul.mubr.f32.gmra.mxu0 %v1775
    %v1843 = vpop.f32.mrf.mxu0
    %v1844 = vadd.f32 0.0, %v1843
    %v1845 = vpop.f32.mrf.mxu0
    %1846 = vdwg.mxu0
    %v1847 = vrot.slane %v772, 2
    %1848 = vrot.lane.b32.xlu0 %v1847, 64
    %v1849 = vpop.permute.xlu0 %1848
    %v1851 = vmul.f32 %v1844, %v1849
    %v1852 = vsel %vm145, %v1847, 0
    %1854 = vmatprep.subr.mxu0 0.0
    %1855 = vmatpush1.msra.mxu0 0.0
    %1856 = vmatprep.subr.mxu0 0.0
    %1857 = vmatpush1.msra.mxu0 0.0
    %1858 = vmatprep.subr.mxu0 0.0
    %1859 = vmatpush1.msra.mxu0 0.0
    %1860 = vmatprep.subr.mxu0 0.0
    %1861 = vmatpush1.msra.mxu0 0.0
    %1862 = vmatprep.subr.mxu0 0.0
    %1863 = vmatpush1.msra.mxu0 0.0
    %1864 = vmatprep.subr.mxu0 0.0
    %1865 = vmatpush1.msra.mxu0 0.0
    %1866 = vmatprep.subr.mxu0 0.0
    %1867 = vmatpush1.msra.mxu0 0.0
    %1868 = vmatprep.subr.mxu0 0.0
    %1869 = vmatpush1.msra.mxu0 0.0
    %1870 = vmatprep.subr.mxu0 0.0
    %1871 = vmatpush1.msra.mxu0 0.0
    %1872 = vmatprep.subr.mxu0 0.0
    %1873 = vmatpush1.msra.mxu0 0.0
    %1874 = vmatprep.subr.mxu0 0.0
    %1875 = vmatpush1.msra.mxu0 0.0
    %1876 = vmatprep.subr.mxu0 0.0
    %1877 = vmatpush1.msra.mxu0 0.0
    %1878 = vmatprep.subr.mxu0 0.0
    %1879 = vmatpush1.msra.mxu0 %v1771
    %1880 = vmatprep.subr.mxu0 0.0
    %1881 = vmatpush1.msra.mxu0 %v1766
    %1882 = vmatprep.subr.mxu0 0.0
    %1883 = vmatpush1.msra.mxu0 %v1761
    %1884 = vmatprep.subr.mxu0 0.0
    %1885 = vmatpush1.msra.mxu0 %v1756
    %1886 = vmatprep.subr.mxu0 0.0
    %1887 = vmatpush2.msra.mxu0 0.0
    %1888 = vmatprep.subr.mxu0 0.0
    %1889 = vmatpush2.msra.mxu0 0.0
    %1890 = vmatprep.subr.mxu0 0.0
    %1891 = vmatpush2.msra.mxu0 0.0
    %1892 = vmatprep.subr.mxu0 0.0
    %1893 = vmatpush2.msra.mxu0 0.0
    %1894 = vmatprep.subr.mxu0 0.0
    %1895 = vmatpush2.msra.mxu0 0.0
    %1896 = vmatprep.subr.mxu0 0.0
    %1897 = vmatpush2.msra.mxu0 0.0
    %1898 = vmatprep.subr.mxu0 0.0
    %1899 = vmatpush2.msra.mxu0 0.0
    %1900 = vmatprep.subr.mxu0 0.0
    %1901 = vmatpush2.msra.mxu0 0.0
    %1902 = vmatprep.subr.mxu0 0.0
    %1903 = vmatpush2.msra.mxu0 0.0
    %1904 = vmatprep.subr.mxu0 0.0
    %1905 = vmatpush2.msra.mxu0 0.0
    %1906 = vmatprep.subr.mxu0 0.0
    %1907 = vmatpush2.msra.mxu0 0.0
    %1908 = vmatprep.subr.mxu0 0.0
    %1909 = vmatpush2.msra.mxu0 0.0
    %1910 = vmatprep.subr.mxu0 0.0
    %1911 = vmatpush2.msra.mxu0 0.0
    %1912 = vmatprep.subr.mxu0 0.0
    %1913 = vmatpush2.msra.mxu0 0.0
    %1914 = vmatprep.subr.mxu0 0.0
    %1915 = vmatpush2.msra.mxu0 0.0
    %1916 = vmatprep.subr.mxu0 0.0
    %1917 = vmatpush2.msra.mxu0 0.0
    %1918 = vmatprep.mubr.f32.mxu0 0.0
    %1919 = vmatmul.mubr.f32.gmra.mxu0 %v1852
    %v1920 = vpop.f32.mrf.mxu0
    %v1921 = vadd.f32 %v1851, %v1920
    %v1922 = vpop.f32.mrf.mxu0
    %1923 = vdwg.mxu0
    %1924 = vst.msk [vmem:[#allocation2 + $0x2] sm:$0x1] %vm1170, %v1921
    %v1925 = vlaneseq
    %v1926 = vshrl.u32 %v1925, 7
    %v1927 = vsub.s32 2, %v1926
    %v1928 = vrot.slane %v947, %v1927
    %v1929 = vmul.f32 %v956, %v1928
    %v1930 = vmul.f32 %v957, %v1928
    %v1931 = vmul.f32 %v958, %v1928
    %v1932 = vmul.f32 %v959, %v1928
    %v1933 = vlaneseq
    %v1934 = vshrl.u32 %v1933, 7
    %v1935 = vsub.s32 2, %v1934
    %v1936 = vrot.slane %v772, %v1935
    %1938 = vrot.lane.b32.xlu0 %v1936, 96
    %v1939 = vpop.permute.xlu0 %1938
    %v1941 = vmul.f32 %v956, %v1939
    %v1942 = vmul.f32 %v957, %v1939
    %v1943 = vmul.f32 %v958, %v1939
    %v1944 = vmul.f32 %v959, %v1939
    %1945 = vrot.lane.b32.xlu0 %v1936, 64
    %v1946 = vpop.permute.xlu0 %1945
    %v1948 = vmul.f32 %v1006, %v1946
    %v1949 = vmul.f32 %v1007, %v1946
    %v1950 = vmul.f32 %v1008, %v1946
    %v1951 = vmul.f32 %v1009, %v1946
    %v1953 = vsel %vm145, %v1941, 0
    %v1956 = vsel %vm145, %v1942, 0
    %v1959 = vsel %vm145, %v1943, 0
    %v1962 = vsel %vm145, %v1944, 0
    %1964 = vmatprep.subr.mxu0 0.0
    %1965 = vmatpush1.msra.mxu0 0.0
    %1966 = vmatprep.subr.mxu0 0.0
    %1967 = vmatpush1.msra.mxu0 0.0
    %1968 = vmatprep.subr.mxu0 0.0
    %1969 = vmatpush1.msra.mxu0 0.0
    %1970 = vmatprep.subr.mxu0 0.0
    %1971 = vmatpush1.msra.mxu0 0.0
    %1972 = vmatprep.subr.mxu0 0.0
    %1973 = vmatpush1.msra.mxu0 0.0
    %1974 = vmatprep.subr.mxu0 0.0
    %1975 = vmatpush1.msra.mxu0 0.0
    %1976 = vmatprep.subr.mxu0 0.0
    %1977 = vmatpush1.msra.mxu0 0.0
    %1978 = vmatprep.subr.mxu0 0.0
    %1979 = vmatpush1.msra.mxu0 0.0
    %1980 = vmatprep.subr.mxu0 0.0
    %1981 = vmatpush1.msra.mxu0 0.0
    %1982 = vmatprep.subr.mxu0 0.0
    %1983 = vmatpush1.msra.mxu0 0.0
    %1984 = vmatprep.subr.mxu0 0.0
    %1985 = vmatpush1.msra.mxu0 0.0
    %1986 = vmatprep.subr.mxu0 0.0
    %1987 = vmatpush1.msra.mxu0 0.0
    %1988 = vmatprep.subr.mxu0 0.0
    %1989 = vmatpush1.msra.mxu0 %v1951
    %1990 = vmatprep.subr.mxu0 0.0
    %1991 = vmatpush1.msra.mxu0 %v1950
    %1992 = vmatprep.subr.mxu0 0.0
    %1993 = vmatpush1.msra.mxu0 %v1949
    %1994 = vmatprep.subr.mxu0 0.0
    %1995 = vmatpush1.msra.mxu0 %v1948
    %1996 = vmatprep.subr.mxu0 0.0
    %1997 = vmatpush2.msra.mxu0 0.0
    %1998 = vmatprep.subr.mxu0 0.0
    %1999 = vmatpush2.msra.mxu0 0.0
    %2000 = vmatprep.subr.mxu0 0.0
    %2001 = vmatpush2.msra.mxu0 0.0
    %2002 = vmatprep.subr.mxu0 0.0
    %2003 = vmatpush2.msra.mxu0 0.0
    %2004 = vmatprep.subr.mxu0 0.0
    %2005 = vmatpush2.msra.mxu0 0.0
    %2006 = vmatprep.subr.mxu0 0.0
    %2007 = vmatpush2.msra.mxu0 0.0
    %2008 = vmatprep.subr.mxu0 0.0
    %2009 = vmatpush2.msra.mxu0 0.0
    %2010 = vmatprep.subr.mxu0 0.0
    %2011 = vmatpush2.msra.mxu0 0.0
    %2012 = vmatprep.subr.mxu0 0.0
    %2013 = vmatpush2.msra.mxu0 0.0
    %2014 = vmatprep.subr.mxu0 0.0
    %2015 = vmatpush2.msra.mxu0 0.0
    %2016 = vmatprep.subr.mxu0 0.0
    %2017 = vmatpush2.msra.mxu0 0.0
    %2018 = vmatprep.subr.mxu0 0.0
    %2019 = vmatpush2.msra.mxu0 0.0
    %2020 = vmatprep.subr.mxu0 0.0
    %2021 = vmatpush2.msra.mxu0 0.0
    %2022 = vmatprep.subr.mxu0 0.0
    %2023 = vmatpush2.msra.mxu0 0.0
    %2024 = vmatprep.subr.mxu0 0.0
    %2025 = vmatpush2.msra.mxu0 0.0
    %2026 = vmatprep.subr.mxu0 0.0
    %2027 = vmatpush2.msra.mxu0 0.0
    %2028 = vmatprep.mubr.f32.mxu0 0.0
    %2029 = vmatmul.mubr.f32.gmra.mxu0 %v1953
    %v2030 = vpop.f32.mrf.mxu0
    %v2031 = vadd.f32 0.0, %v2030
    %v2032 = vpop.f32.mrf.mxu0
    %2033 = vmatprep.mubr.f32.mxu0 0.0
    %2034 = vmatmul.mubr.f32.gmra.mxu0 %v1956
    %v2035 = vpop.f32.mrf.mxu0
    %v2036 = vadd.f32 0.0, %v2035
    %v2037 = vpop.f32.mrf.mxu0
    %2038 = vmatprep.mubr.f32.mxu0 0.0
    %2039 = vmatmul.mubr.f32.gmra.mxu0 %v1959
    %v2040 = vpop.f32.mrf.mxu0
    %v2041 = vadd.f32 0.0, %v2040
    %v2042 = vpop.f32.mrf.mxu0
    %2043 = vmatprep.mubr.f32.mxu0 0.0
    %2044 = vmatmul.mubr.f32.gmra.mxu0 %v1962
    %v2045 = vpop.f32.mrf.mxu0
    %v2046 = vadd.f32 0.0, %v2045
    %v2047 = vpop.f32.mrf.mxu0
    %2048 = vdwg.mxu0
    %v2050 = vsel %vm145, %v1929, 0
    %v2053 = vsel %vm145, %v1930, 0
    %v2056 = vsel %vm145, %v1931, 0
    %v2059 = vsel %vm145, %v1932, 0
    %2061 = vmatprep.subr.mxu0 0.0
    %2062 = vmatpush1.msra.mxu0 0.0
    %2063 = vmatprep.subr.mxu0 0.0
    %2064 = vmatpush1.msra.mxu0 0.0
    %2065 = vmatprep.subr.mxu0 0.0
    %2066 = vmatpush1.msra.mxu0 0.0
    %2067 = vmatprep.subr.mxu0 0.0
    %2068 = vmatpush1.msra.mxu0 0.0
    %2069 = vmatprep.subr.mxu0 0.0
    %2070 = vmatpush1.msra.mxu0 0.0
    %2071 = vmatprep.subr.mxu0 0.0
    %2072 = vmatpush1.msra.mxu0 0.0
    %2073 = vmatprep.subr.mxu0 0.0
    %2074 = vmatpush1.msra.mxu0 0.0
    %2075 = vmatprep.subr.mxu0 0.0
    %2076 = vmatpush1.msra.mxu0 0.0
    %2077 = vmatprep.subr.mxu0 0.0
    %2078 = vmatpush1.msra.mxu0 0.0
    %2079 = vmatprep.subr.mxu0 0.0
    %2080 = vmatpush1.msra.mxu0 0.0
    %2081 = vmatprep.subr.mxu0 0.0
    %2082 = vmatpush1.msra.mxu0 0.0
    %2083 = vmatprep.subr.mxu0 0.0
    %2084 = vmatpush1.msra.mxu0 0.0
    %2085 = vmatprep.subr.mxu0 0.0
    %2086 = vmatpush1.msra.mxu0 %v1771
    %2087 = vmatprep.subr.mxu0 0.0
    %2088 = vmatpush1.msra.mxu0 %v1766
    %2089 = vmatprep.subr.mxu0 0.0
    %2090 = vmatpush1.msra.mxu0 %v1761
    %2091 = vmatprep.subr.mxu0 0.0
    %2092 = vmatpush1.msra.mxu0 %v1756
    %2093 = vmatprep.subr.mxu0 0.0
    %2094 = vmatpush2.msra.mxu0 0.0
    %2095 = vmatprep.subr.mxu0 0.0
    %2096 = vmatpush2.msra.mxu0 0.0
    %2097 = vmatprep.subr.mxu0 0.0
    %2098 = vmatpush2.msra.mxu0 0.0
    %2099 = vmatprep.subr.mxu0 0.0
    %2100 = vmatpush2.msra.mxu0 0.0
    %2101 = vmatprep.subr.mxu0 0.0
    %2102 = vmatpush2.msra.mxu0 0.0
    %2103 = vmatprep.subr.mxu0 0.0
    %2104 = vmatpush2.msra.mxu0 0.0
    %2105 = vmatprep.subr.mxu0 0.0
    %2106 = vmatpush2.msra.mxu0 0.0
    %2107 = vmatprep.subr.mxu0 0.0
    %2108 = vmatpush2.msra.mxu0 0.0
    %2109 = vmatprep.subr.mxu0 0.0
    %2110 = vmatpush2.msra.mxu0 0.0
    %2111 = vmatprep.subr.mxu0 0.0
    %2112 = vmatpush2.msra.mxu0 0.0
    %2113 = vmatprep.subr.mxu0 0.0
    %2114 = vmatpush2.msra.mxu0 0.0
    %2115 = vmatprep.subr.mxu0 0.0
    %2116 = vmatpush2.msra.mxu0 0.0
    %2117 = vmatprep.subr.mxu0 0.0
    %2118 = vmatpush2.msra.mxu0 0.0
    %2119 = vmatprep.subr.mxu0 0.0
    %2120 = vmatpush2.msra.mxu0 0.0
    %2121 = vmatprep.subr.mxu0 0.0
    %2122 = vmatpush2.msra.mxu0 0.0
    %2123 = vmatprep.subr.mxu0 0.0
    %2124 = vmatpush2.msra.mxu0 0.0
    %2125 = vmatprep.mubr.f32.mxu0 0.0
    %2126 = vmatmul.mubr.f32.gmra.mxu0 %v2050
    %v2127 = vpop.f32.mrf.mxu0
    %v2128 = vadd.f32 %v2031, %v2127
    %v2129 = vpop.f32.mrf.mxu0
    %2130 = vmatprep.mubr.f32.mxu0 0.0
    %2131 = vmatmul.mubr.f32.gmra.mxu0 %v2053
    %v2132 = vpop.f32.mrf.mxu0
    %v2133 = vadd.f32 %v2036, %v2132
    %v2134 = vpop.f32.mrf.mxu0
    %2135 = vmatprep.mubr.f32.mxu0 0.0
    %2136 = vmatmul.mubr.f32.gmra.mxu0 %v2056
    %v2137 = vpop.f32.mrf.mxu0
    %v2138 = vadd.f32 %v2041, %v2137
    %v2139 = vpop.f32.mrf.mxu0
    %2140 = vmatprep.mubr.f32.mxu0 0.0
    %2141 = vmatmul.mubr.f32.gmra.mxu0 %v2059
    %v2142 = vpop.f32.mrf.mxu0
    %v2143 = vadd.f32 %v2046, %v2142
    %v2144 = vpop.f32.mrf.mxu0
    %2145 = vdwg.mxu0
    %v2146 = vrot.slane %v1400, 3
    %v2147 = vsel %vm145, %v2146, 0
    %2149 = vmatprep.subr.mxu0 0.0
    %2150 = vmatpush1.msra.mxu0 0.0
    %2151 = vmatprep.subr.mxu0 0.0
    %2152 = vmatpush1.msra.mxu0 0.0
    %2153 = vmatprep.subr.mxu0 0.0
    %2154 = vmatpush1.msra.mxu0 0.0
    %2155 = vmatprep.subr.mxu0 0.0
    %2156 = vmatpush1.msra.mxu0 0.0
    %2157 = vmatprep.subr.mxu0 0.0
    %2158 = vmatpush1.msra.mxu0 0.0
    %2159 = vmatprep.subr.mxu0 0.0
    %2160 = vmatpush1.msra.mxu0 0.0
    %2161 = vmatprep.subr.mxu0 0.0
    %2162 = vmatpush1.msra.mxu0 0.0
    %2163 = vmatprep.subr.mxu0 0.0
    %2164 = vmatpush1.msra.mxu0 0.0
    %2165 = vmatprep.subr.mxu0 0.0
    %2166 = vmatpush1.msra.mxu0 0.0
    %2167 = vmatprep.subr.mxu0 0.0
    %2168 = vmatpush1.msra.mxu0 0.0
    %2169 = vmatprep.subr.mxu0 0.0
    %2170 = vmatpush1.msra.mxu0 0.0
    %2171 = vmatprep.subr.mxu0 0.0
    %2172 = vmatpush1.msra.mxu0 0.0
    %2173 = vmatprep.subr.mxu0 0.0
    %2174 = vmatpush1.msra.mxu0 %v1009
    %2175 = vmatprep.subr.mxu0 0.0
    %2176 = vmatpush1.msra.mxu0 %v1008
    %2177 = vmatprep.subr.mxu0 0.0
    %2178 = vmatpush1.msra.mxu0 %v1007
    %2179 = vmatprep.subr.mxu0 0.0
    %2180 = vmatpush1.msra.mxu0 %v1006
    %2181 = vmatprep.subr.mxu0 0.0
    %2182 = vmatpush2.msra.mxu0 0.0
    %2183 = vmatprep.subr.mxu0 0.0
    %2184 = vmatpush2.msra.mxu0 0.0
    %2185 = vmatprep.subr.mxu0 0.0
    %2186 = vmatpush2.msra.mxu0 0.0
    %2187 = vmatprep.subr.mxu0 0.0
    %2188 = vmatpush2.msra.mxu0 0.0
    %2189 = vmatprep.subr.mxu0 0.0
    %2190 = vmatpush2.msra.mxu0 0.0
    %2191 = vmatprep.subr.mxu0 0.0
    %2192 = vmatpush2.msra.mxu0 0.0
    %2193 = vmatprep.subr.mxu0 0.0
    %2194 = vmatpush2.msra.mxu0 0.0
    %2195 = vmatprep.subr.mxu0 0.0
    %2196 = vmatpush2.msra.mxu0 0.0
    %2197 = vmatprep.subr.mxu0 0.0
    %2198 = vmatpush2.msra.mxu0 0.0
    %2199 = vmatprep.subr.mxu0 0.0
    %2200 = vmatpush2.msra.mxu0 0.0
    %2201 = vmatprep.subr.mxu0 0.0
    %2202 = vmatpush2.msra.mxu0 0.0
    %2203 = vmatprep.subr.mxu0 0.0
    %2204 = vmatpush2.msra.mxu0 0.0
    %2205 = vmatprep.subr.mxu0 0.0
    %2206 = vmatpush2.msra.mxu0 0.0
    %2207 = vmatprep.subr.mxu0 0.0
    %2208 = vmatpush2.msra.mxu0 0.0
    %2209 = vmatprep.subr.mxu0 0.0
    %2210 = vmatpush2.msra.mxu0 0.0
    %2211 = vmatprep.subr.mxu0 0.0
    %2212 = vmatpush2.msra.mxu0 0.0
    %2213 = vmatprep.mubr.f32.mxu0 0.0
    %2214 = vmatmul.mubr.f32.gmra.mxu0 %v2147
    %v2215 = vpop.f32.mrf.mxu0
    %v2216 = vadd.f32 0.0, %v2215
    %v2217 = vpop.f32.mrf.mxu0
    %2218 = vdwg.mxu0
    %v2219 = vrot.slane %v772, 3
    %2220 = vrot.lane.b32.xlu0 %v2219, 64
    %v2221 = vpop.permute.xlu0 %2220
    %v2223 = vmul.f32 %v2216, %v2221
    %v2224 = vsel %vm145, %v2219, 0
    %2226 = vmatprep.subr.mxu0 0.0
    %2227 = vmatpush1.msra.mxu0 0.0
    %2228 = vmatprep.subr.mxu0 0.0
    %2229 = vmatpush1.msra.mxu0 0.0
    %2230 = vmatprep.subr.mxu0 0.0
    %2231 = vmatpush1.msra.mxu0 0.0
    %2232 = vmatprep.subr.mxu0 0.0
    %2233 = vmatpush1.msra.mxu0 0.0
    %2234 = vmatprep.subr.mxu0 0.0
    %2235 = vmatpush1.msra.mxu0 0.0
    %2236 = vmatprep.subr.mxu0 0.0
    %2237 = vmatpush1.msra.mxu0 0.0
    %2238 = vmatprep.subr.mxu0 0.0
    %2239 = vmatpush1.msra.mxu0 0.0
    %2240 = vmatprep.subr.mxu0 0.0
    %2241 = vmatpush1.msra.mxu0 0.0
    %2242 = vmatprep.subr.mxu0 0.0
    %2243 = vmatpush1.msra.mxu0 0.0
    %2244 = vmatprep.subr.mxu0 0.0
    %2245 = vmatpush1.msra.mxu0 0.0
    %2246 = vmatprep.subr.mxu0 0.0
    %2247 = vmatpush1.msra.mxu0 0.0
    %2248 = vmatprep.subr.mxu0 0.0
    %2249 = vmatpush1.msra.mxu0 0.0
    %2250 = vmatprep.subr.mxu0 0.0
    %2251 = vmatpush1.msra.mxu0 %v2143
    %2252 = vmatprep.subr.mxu0 0.0
    %2253 = vmatpush1.msra.mxu0 %v2138
    %2254 = vmatprep.subr.mxu0 0.0
    %2255 = vmatpush1.msra.mxu0 %v2133
    %2256 = vmatprep.subr.mxu0 0.0
    %2257 = vmatpush1.msra.mxu0 %v2128
    %2258 = vmatprep.subr.mxu0 0.0
    %2259 = vmatpush2.msra.mxu0 0.0
    %2260 = vmatprep.subr.mxu0 0.0
    %2261 = vmatpush2.msra.mxu0 0.0
    %2262 = vmatprep.subr.mxu0 0.0
    %2263 = vmatpush2.msra.mxu0 0.0
    %2264 = vmatprep.subr.mxu0 0.0
    %2265 = vmatpush2.msra.mxu0 0.0
    %2266 = vmatprep.subr.mxu0 0.0
    %2267 = vmatpush2.msra.mxu0 0.0
    %2268 = vmatprep.subr.mxu0 0.0
    %2269 = vmatpush2.msra.mxu0 0.0
    %2270 = vmatprep.subr.mxu0 0.0
    %2271 = vmatpush2.msra.mxu0 0.0
    %2272 = vmatprep.subr.mxu0 0.0
    %2273 = vmatpush2.msra.mxu0 0.0
    %2274 = vmatprep.subr.mxu0 0.0
    %2275 = vmatpush2.msra.mxu0 0.0
    %2276 = vmatprep.subr.mxu0 0.0
    %2277 = vmatpush2.msra.mxu0 0.0
    %2278 = vmatprep.subr.mxu0 0.0
    %2279 = vmatpush2.msra.mxu0 0.0
    %2280 = vmatprep.subr.mxu0 0.0
    %2281 = vmatpush2.msra.mxu0 0.0
    %2282 = vmatprep.subr.mxu0 0.0
    %2283 = vmatpush2.msra.mxu0 0.0
    %2284 = vmatprep.subr.mxu0 0.0
    %2285 = vmatpush2.msra.mxu0 0.0
    %2286 = vmatprep.subr.mxu0 0.0
    %2287 = vmatpush2.msra.mxu0 0.0
    %2288 = vmatprep.subr.mxu0 0.0
    %2289 = vmatpush2.msra.mxu0 0.0
    %2290 = vmatprep.mubr.f32.mxu0 0.0
    %2291 = vmatmul.mubr.f32.gmra.mxu0 %v2224
    %v2292 = vpop.f32.mrf.mxu0
    %v2293 = vadd.f32 %v2223, %v2292
    %v2294 = vpop.f32.mrf.mxu0
    %2295 = vdwg.mxu0
    %2296 = vst.msk [vmem:[#allocation2 + $0x3] sm:$0x1] %vm1170, %v2293
    %v2297 = vlaneseq
    %v2298 = vshrl.u32 %v2297, 7
    %v2299 = vsub.s32 3, %v2298
    %v2300 = vrot.slane %v947, %v2299
    %v2301 = vmul.f32 %v956, %v2300
    %v2302 = vmul.f32 %v957, %v2300
    %v2303 = vmul.f32 %v958, %v2300
    %v2304 = vmul.f32 %v959, %v2300
    %v2305 = vlaneseq
    %v2306 = vshrl.u32 %v2305, 7
    %v2307 = vsub.s32 3, %v2306
    %v2308 = vrot.slane %v772, %v2307
    %2310 = vrot.lane.b32.xlu0 %v2308, 96
    %v2311 = vpop.permute.xlu0 %2310
    %v2313 = vmul.f32 %v956, %v2311
    %v2314 = vmul.f32 %v957, %v2311
    %v2315 = vmul.f32 %v958, %v2311
    %v2316 = vmul.f32 %v959, %v2311
    %2317 = vrot.lane.b32.xlu0 %v2308, 64
    %v2318 = vpop.permute.xlu0 %2317
    %v2320 = vmul.f32 %v1006, %v2318
    %v2321 = vmul.f32 %v1007, %v2318
    %v2322 = vmul.f32 %v1008, %v2318
    %v2323 = vmul.f32 %v1009, %v2318
    %v2325 = vsel %vm145, %v2313, 0
    %v2328 = vsel %vm145, %v2314, 0
    %v2331 = vsel %vm145, %v2315, 0
    %v2334 = vsel %vm145, %v2316, 0
    %2336 = vmatprep.subr.mxu0 0.0
    %2337 = vmatpush1.msra.mxu0 0.0
    %2338 = vmatprep.subr.mxu0 0.0
    %2339 = vmatpush1.msra.mxu0 0.0
    %2340 = vmatprep.subr.mxu0 0.0
    %2341 = vmatpush1.msra.mxu0 0.0
    %2342 = vmatprep.subr.mxu0 0.0
    %2343 = vmatpush1.msra.mxu0 0.0
    %2344 = vmatprep.subr.mxu0 0.0
    %2345 = vmatpush1.msra.mxu0 0.0
    %2346 = vmatprep.subr.mxu0 0.0
    %2347 = vmatpush1.msra.mxu0 0.0
    %2348 = vmatprep.subr.mxu0 0.0
    %2349 = vmatpush1.msra.mxu0 0.0
    %2350 = vmatprep.subr.mxu0 0.0
    %2351 = vmatpush1.msra.mxu0 0.0
    %2352 = vmatprep.subr.mxu0 0.0
    %2353 = vmatpush1.msra.mxu0 0.0
    %2354 = vmatprep.subr.mxu0 0.0
    %2355 = vmatpush1.msra.mxu0 0.0
    %2356 = vmatprep.subr.mxu0 0.0
    %2357 = vmatpush1.msra.mxu0 0.0
    %2358 = vmatprep.subr.mxu0 0.0
    %2359 = vmatpush1.msra.mxu0 0.0
    %2360 = vmatprep.subr.mxu0 0.0
    %2361 = vmatpush1.msra.mxu0 %v2323
    %2362 = vmatprep.subr.mxu0 0.0
    %2363 = vmatpush1.msra.mxu0 %v2322
    %2364 = vmatprep.subr.mxu0 0.0
    %2365 = vmatpush1.msra.mxu0 %v2321
    %2366 = vmatprep.subr.mxu0 0.0
    %2367 = vmatpush1.msra.mxu0 %v2320
    %2368 = vmatprep.subr.mxu0 0.0
    %2369 = vmatpush2.msra.mxu0 0.0
    %2370 = vmatprep.subr.mxu0 0.0
    %2371 = vmatpush2.msra.mxu0 0.0
    %2372 = vmatprep.subr.mxu0 0.0
    %2373 = vmatpush2.msra.mxu0 0.0
    %2374 = vmatprep.subr.mxu0 0.0
    %2375 = vmatpush2.msra.mxu0 0.0
    %2376 = vmatprep.subr.mxu0 0.0
    %2377 = vmatpush2.msra.mxu0 0.0
    %2378 = vmatprep.subr.mxu0 0.0
    %2379 = vmatpush2.msra.mxu0 0.0
    %2380 = vmatprep.subr.mxu0 0.0
    %2381 = vmatpush2.msra.mxu0 0.0
    %2382 = vmatprep.subr.mxu0 0.0
    %2383 = vmatpush2.msra.mxu0 0.0
    %2384 = vmatprep.subr.mxu0 0.0
    %2385 = vmatpush2.msra.mxu0 0.0
    %2386 = vmatprep.subr.mxu0 0.0
    %2387 = vmatpush2.msra.mxu0 0.0
    %2388 = vmatprep.subr.mxu0 0.0
    %2389 = vmatpush2.msra.mxu0 0.0
    %2390 = vmatprep.subr.mxu0 0.0
    %2391 = vmatpush2.msra.mxu0 0.0
    %2392 = vmatprep.subr.mxu0 0.0
    %2393 = vmatpush2.msra.mxu0 0.0
    %2394 = vmatprep.subr.mxu0 0.0
    %2395 = vmatpush2.msra.mxu0 0.0
    %2396 = vmatprep.subr.mxu0 0.0
    %2397 = vmatpush2.msra.mxu0 0.0
    %2398 = vmatprep.subr.mxu0 0.0
    %2399 = vmatpush2.msra.mxu0 0.0
    %2400 = vmatprep.mubr.f32.mxu0 0.0
    %2401 = vmatmul.mubr.f32.gmra.mxu0 %v2325
    %v2402 = vpop.f32.mrf.mxu0
    %v2403 = vadd.f32 0.0, %v2402
    %v2404 = vpop.f32.mrf.mxu0
    %2405 = vmatprep.mubr.f32.mxu0 0.0
    %2406 = vmatmul.mubr.f32.gmra.mxu0 %v2328
    %v2407 = vpop.f32.mrf.mxu0
    %v2408 = vadd.f32 0.0, %v2407
    %v2409 = vpop.f32.mrf.mxu0
    %2410 = vmatprep.mubr.f32.mxu0 0.0
    %2411 = vmatmul.mubr.f32.gmra.mxu0 %v2331
    %v2412 = vpop.f32.mrf.mxu0
    %v2413 = vadd.f32 0.0, %v2412
    %v2414 = vpop.f32.mrf.mxu0
    %2415 = vmatprep.mubr.f32.mxu0 0.0
    %2416 = vmatmul.mubr.f32.gmra.mxu0 %v2334
    %v2417 = vpop.f32.mrf.mxu0
    %v2418 = vadd.f32 0.0, %v2417
    %v2419 = vpop.f32.mrf.mxu0
    %2420 = vdwg.mxu0
    %v2422 = vsel %vm145, %v2301, 0
    %v2425 = vsel %vm145, %v2302, 0
    %v2428 = vsel %vm145, %v2303, 0
    %v2431 = vsel %vm145, %v2304, 0
    %2433 = vmatprep.subr.mxu0 0.0
    %2434 = vmatpush1.msra.mxu0 0.0
    %2435 = vmatprep.subr.mxu0 0.0
    %2436 = vmatpush1.msra.mxu0 0.0
    %2437 = vmatprep.subr.mxu0 0.0
    %2438 = vmatpush1.msra.mxu0 0.0
    %2439 = vmatprep.subr.mxu0 0.0
    %2440 = vmatpush1.msra.mxu0 0.0
    %2441 = vmatprep.subr.mxu0 0.0
    %2442 = vmatpush1.msra.mxu0 0.0
    %2443 = vmatprep.subr.mxu0 0.0
    %2444 = vmatpush1.msra.mxu0 0.0
    %2445 = vmatprep.subr.mxu0 0.0
    %2446 = vmatpush1.msra.mxu0 0.0
    %2447 = vmatprep.subr.mxu0 0.0
    %2448 = vmatpush1.msra.mxu0 0.0
    %2449 = vmatprep.subr.mxu0 0.0
    %2450 = vmatpush1.msra.mxu0 0.0
    %2451 = vmatprep.subr.mxu0 0.0
    %2452 = vmatpush1.msra.mxu0 0.0
    %2453 = vmatprep.subr.mxu0 0.0
    %2454 = vmatpush1.msra.mxu0 0.0
    %2455 = vmatprep.subr.mxu0 0.0
    %2456 = vmatpush1.msra.mxu0 0.0
    %2457 = vmatprep.subr.mxu0 0.0
    %2458 = vmatpush1.msra.mxu0 %v2143
    %2459 = vmatprep.subr.mxu0 0.0
    %2460 = vmatpush1.msra.mxu0 %v2138
    %2461 = vmatprep.subr.mxu0 0.0
    %2462 = vmatpush1.msra.mxu0 %v2133
    %2463 = vmatprep.subr.mxu0 0.0
    %2464 = vmatpush1.msra.mxu0 %v2128
    %2465 = vmatprep.subr.mxu0 0.0
    %2466 = vmatpush2.msra.mxu0 0.0
    %2467 = vmatprep.subr.mxu0 0.0
    %2468 = vmatpush2.msra.mxu0 0.0
    %2469 = vmatprep.subr.mxu0 0.0
    %2470 = vmatpush2.msra.mxu0 0.0
    %2471 = vmatprep.subr.mxu0 0.0
    %2472 = vmatpush2.msra.mxu0 0.0
    %2473 = vmatprep.subr.mxu0 0.0
    %2474 = vmatpush2.msra.mxu0 0.0
    %2475 = vmatprep.subr.mxu0 0.0
    %2476 = vmatpush2.msra.mxu0 0.0
    %2477 = vmatprep.subr.mxu0 0.0
    %2478 = vmatpush2.msra.mxu0 0.0
    %2479 = vmatprep.subr.mxu0 0.0
    %2480 = vmatpush2.msra.mxu0 0.0
    %2481 = vmatprep.subr.mxu0 0.0
    %2482 = vmatpush2.msra.mxu0 0.0
    %2483 = vmatprep.subr.mxu0 0.0
    %2484 = vmatpush2.msra.mxu0 0.0
    %2485 = vmatprep.subr.mxu0 0.0
    %2486 = vmatpush2.msra.mxu0 0.0
    %2487 = vmatprep.subr.mxu0 0.0
    %2488 = vmatpush2.msra.mxu0 0.0
    %2489 = vmatprep.subr.mxu0 0.0
    %2490 = vmatpush2.msra.mxu0 0.0
    %2491 = vmatprep.subr.mxu0 0.0
    %2492 = vmatpush2.msra.mxu0 0.0
    %2493 = vmatprep.subr.mxu0 0.0
    %2494 = vmatpush2.msra.mxu0 0.0
    %2495 = vmatprep.subr.mxu0 0.0
    %2496 = vmatpush2.msra.mxu0 0.0
    %2497 = vmatprep.mubr.f32.mxu0 0.0
    %2498 = vmatmul.mubr.f32.gmra.mxu0 %v2422
    %v2499 = vpop.f32.mrf.mxu0
    %v2500 = vadd.f32 %v2403, %v2499
    %v2501 = vpop.f32.mrf.mxu0
    %2502 = vmatprep.mubr.f32.mxu0 0.0
    %2503 = vmatmul.mubr.f32.gmra.mxu0 %v2425
    %v2504 = vpop.f32.mrf.mxu0
    %v2505 = vadd.f32 %v2408, %v2504
    %v2506 = vpop.f32.mrf.mxu0
    %2507 = vmatprep.mubr.f32.mxu0 0.0
    %2508 = vmatmul.mubr.f32.gmra.mxu0 %v2428
    %v2509 = vpop.f32.mrf.mxu0
    %v2510 = vadd.f32 %v2413, %v2509
    %v2511 = vpop.f32.mrf.mxu0
    %2512 = vmatprep.mubr.f32.mxu0 0.0
    %2513 = vmatmul.mubr.f32.gmra.mxu0 %v2431
    %v2514 = vpop.f32.mrf.mxu0
    %v2515 = vadd.f32 %v2418, %v2514
    %v2516 = vpop.f32.mrf.mxu0
    %2517 = vdwg.mxu0
    %v2518 = vrot.slane %v1400, 4
    %v2519 = vsel %vm145, %v2518, 0
    %2521 = vmatprep.subr.mxu0 0.0
    %2522 = vmatpush1.msra.mxu0 0.0
    %2523 = vmatprep.subr.mxu0 0.0
    %2524 = vmatpush1.msra.mxu0 0.0
    %2525 = vmatprep.subr.mxu0 0.0
    %2526 = vmatpush1.msra.mxu0 0.0
    %2527 = vmatprep.subr.mxu0 0.0
    %2528 = vmatpush1.msra.mxu0 0.0
    %2529 = vmatprep.subr.mxu0 0.0
    %2530 = vmatpush1.msra.mxu0 0.0
    %2531 = vmatprep.subr.mxu0 0.0
    %2532 = vmatpush1.msra.mxu0 0.0
    %2533 = vmatprep.subr.mxu0 0.0
    %2534 = vmatpush1.msra.mxu0 0.0
    %2535 = vmatprep.subr.mxu0 0.0
    %2536 = vmatpush1.msra.mxu0 0.0
    %2537 = vmatprep.subr.mxu0 0.0
    %2538 = vmatpush1.msra.mxu0 0.0
    %2539 = vmatprep.subr.mxu0 0.0
    %2540 = vmatpush1.msra.mxu0 0.0
    %2541 = vmatprep.subr.mxu0 0.0
    %2542 = vmatpush1.msra.mxu0 0.0
    %2543 = vmatprep.subr.mxu0 0.0
    %2544 = vmatpush1.msra.mxu0 0.0
    %2545 = vmatprep.subr.mxu0 0.0
    %2546 = vmatpush1.msra.mxu0 %v1009
    %2547 = vmatprep.subr.mxu0 0.0
    %2548 = vmatpush1.msra.mxu0 %v1008
    %2549 = vmatprep.subr.mxu0 0.0
    %2550 = vmatpush1.msra.mxu0 %v1007
    %2551 = vmatprep.subr.mxu0 0.0
    %2552 = vmatpush1.msra.mxu0 %v1006
    %2553 = vmatprep.subr.mxu0 0.0
    %2554 = vmatpush2.msra.mxu0 0.0
    %2555 = vmatprep.subr.mxu0 0.0
    %2556 = vmatpush2.msra.mxu0 0.0
    %2557 = vmatprep.subr.mxu0 0.0
    %2558 = vmatpush2.msra.mxu0 0.0
    %2559 = vmatprep.subr.mxu0 0.0
    %2560 = vmatpush2.msra.mxu0 0.0
    %2561 = vmatprep.subr.mxu0 0.0
    %2562 = vmatpush2.msra.mxu0 0.0
    %2563 = vmatprep.subr.mxu0 0.0
    %2564 = vmatpush2.msra.mxu0 0.0
    %2565 = vmatprep.subr.mxu0 0.0
    %2566 = vmatpush2.msra.mxu0 0.0
    %2567 = vmatprep.subr.mxu0 0.0
    %2568 = vmatpush2.msra.mxu0 0.0
    %2569 = vmatprep.subr.mxu0 0.0
    %2570 = vmatpush2.msra.mxu0 0.0
    %2571 = vmatprep.subr.mxu0 0.0
    %2572 = vmatpush2.msra.mxu0 0.0
    %2573 = vmatprep.subr.mxu0 0.0
    %2574 = vmatpush2.msra.mxu0 0.0
    %2575 = vmatprep.subr.mxu0 0.0
    %2576 = vmatpush2.msra.mxu0 0.0
    %2577 = vmatprep.subr.mxu0 0.0
    %2578 = vmatpush2.msra.mxu0 0.0
    %2579 = vmatprep.subr.mxu0 0.0
    %2580 = vmatpush2.msra.mxu0 0.0
    %2581 = vmatprep.subr.mxu0 0.0
    %2582 = vmatpush2.msra.mxu0 0.0
    %2583 = vmatprep.subr.mxu0 0.0
    %2584 = vmatpush2.msra.mxu0 0.0
    %2585 = vmatprep.mubr.f32.mxu0 0.0
    %2586 = vmatmul.mubr.f32.gmra.mxu0 %v2519
    %v2587 = vpop.f32.mrf.mxu0
    %v2588 = vadd.f32 0.0, %v2587
    %v2589 = vpop.f32.mrf.mxu0
    %2590 = vdwg.mxu0
    %v2591 = vrot.slane %v772, 4
    %2592 = vrot.lane.b32.xlu0 %v2591, 64
    %v2593 = vpop.permute.xlu0 %2592
    %v2595 = vmul.f32 %v2588, %v2593
    %v2596 = vsel %vm145, %v2591, 0
    %2598 = vmatprep.subr.mxu0 0.0
    %2599 = vmatpush1.msra.mxu0 0.0
    %2600 = vmatprep.subr.mxu0 0.0
    %2601 = vmatpush1.msra.mxu0 0.0
    %2602 = vmatprep.subr.mxu0 0.0
    %2603 = vmatpush1.msra.mxu0 0.0
    %2604 = vmatprep.subr.mxu0 0.0
    %2605 = vmatpush1.msra.mxu0 0.0
    %2606 = vmatprep.subr.mxu0 0.0
    %2607 = vmatpush1.msra.mxu0 0.0
    %2608 = vmatprep.subr.mxu0 0.0
    %2609 = vmatpush1.msra.mxu0 0.0
    %2610 = vmatprep.subr.mxu0 0.0
    %2611 = vmatpush1.msra.mxu0 0.0
    %2612 = vmatprep.subr.mxu0 0.0
    %2613 = vmatpush1.msra.mxu0 0.0
    %2614 = vmatprep.subr.mxu0 0.0
    %2615 = vmatpush1.msra.mxu0 0.0
    %2616 = vmatprep.subr.mxu0 0.0
    %2617 = vmatpush1.msra.mxu0 0.0
    %2618 = vmatprep.subr.mxu0 0.0
    %2619 = vmatpush1.msra.mxu0 0.0
    %2620 = vmatprep.subr.mxu0 0.0
    %2621 = vmatpush1.msra.mxu0 0.0
    %2622 = vmatprep.subr.mxu0 0.0
    %2623 = vmatpush1.msra.mxu0 %v2515
    %2624 = vmatprep.subr.mxu0 0.0
    %2625 = vmatpush1.msra.mxu0 %v2510
    %2626 = vmatprep.subr.mxu0 0.0
    %2627 = vmatpush1.msra.mxu0 %v2505
    %2628 = vmatprep.subr.mxu0 0.0
    %2629 = vmatpush1.msra.mxu0 %v2500
    %2630 = vmatprep.subr.mxu0 0.0
    %2631 = vmatpush2.msra.mxu0 0.0
    %2632 = vmatprep.subr.mxu0 0.0
    %2633 = vmatpush2.msra.mxu0 0.0
    %2634 = vmatprep.subr.mxu0 0.0
    %2635 = vmatpush2.msra.mxu0 0.0
    %2636 = vmatprep.subr.mxu0 0.0
    %2637 = vmatpush2.msra.mxu0 0.0
    %2638 = vmatprep.subr.mxu0 0.0
    %2639 = vmatpush2.msra.mxu0 0.0
    %2640 = vmatprep.subr.mxu0 0.0
    %2641 = vmatpush2.msra.mxu0 0.0
    %2642 = vmatprep.subr.mxu0 0.0
    %2643 = vmatpush2.msra.mxu0 0.0
    %2644 = vmatprep.subr.mxu0 0.0
    %2645 = vmatpush2.msra.mxu0 0.0
    %2646 = vmatprep.subr.mxu0 0.0
    %2647 = vmatpush2.msra.mxu0 0.0
    %2648 = vmatprep.subr.mxu0 0.0
    %2649 = vmatpush2.msra.mxu0 0.0
    %2650 = vmatprep.subr.mxu0 0.0
    %2651 = vmatpush2.msra.mxu0 0.0
    %2652 = vmatprep.subr.mxu0 0.0
    %2653 = vmatpush2.msra.mxu0 0.0
    %2654 = vmatprep.subr.mxu0 0.0
    %2655 = vmatpush2.msra.mxu0 0.0
    %2656 = vmatprep.subr.mxu0 0.0
    %2657 = vmatpush2.msra.mxu0 0.0
    %2658 = vmatprep.subr.mxu0 0.0
    %2659 = vmatpush2.msra.mxu0 0.0
    %2660 = vmatprep.subr.mxu0 0.0
    %2661 = vmatpush2.msra.mxu0 0.0
    %2662 = vmatprep.mubr.f32.mxu0 0.0
    %2663 = vmatmul.mubr.f32.gmra.mxu0 %v2596
    %v2664 = vpop.f32.mrf.mxu0
    %v2665 = vadd.f32 %v2595, %v2664
    %v2666 = vpop.f32.mrf.mxu0
    %2667 = vdwg.mxu0
    %2668 = vst.msk [vmem:[#allocation2 + $0x4] sm:$0x1] %vm1170, %v2665
    %v2669 = vlaneseq
    %v2670 = vshrl.u32 %v2669, 7
    %v2671 = vsub.s32 4, %v2670
    %v2672 = vrot.slane %v947, %v2671
    %v2673 = vmul.f32 %v956, %v2672
    %v2674 = vmul.f32 %v957, %v2672
    %v2675 = vmul.f32 %v958, %v2672
    %v2676 = vmul.f32 %v959, %v2672
    %v2677 = vlaneseq
    %v2678 = vshrl.u32 %v2677, 7
    %v2679 = vsub.s32 4, %v2678
    %v2680 = vrot.slane %v772, %v2679
    %2682 = vrot.lane.b32.xlu0 %v2680, 96
    %v2683 = vpop.permute.xlu0 %2682
    %v2685 = vmul.f32 %v956, %v2683
    %v2686 = vmul.f32 %v957, %v2683
    %v2687 = vmul.f32 %v958, %v2683
    %v2688 = vmul.f32 %v959, %v2683
    %2689 = vrot.lane.b32.xlu0 %v2680, 64
    %v2690 = vpop.permute.xlu0 %2689
    %v2692 = vmul.f32 %v1006, %v2690
    %v2693 = vmul.f32 %v1007, %v2690
    %v2694 = vmul.f32 %v1008, %v2690
    %v2695 = vmul.f32 %v1009, %v2690
    %v2697 = vsel %vm145, %v2685, 0
    %v2700 = vsel %vm145, %v2686, 0
    %v2703 = vsel %vm145, %v2687, 0
    %v2706 = vsel %vm145, %v2688, 0
    %2708 = vmatprep.subr.mxu0 0.0
    %2709 = vmatpush1.msra.mxu0 0.0
    %2710 = vmatprep.subr.mxu0 0.0
    %2711 = vmatpush1.msra.mxu0 0.0
    %2712 = vmatprep.subr.mxu0 0.0
    %2713 = vmatpush1.msra.mxu0 0.0
    %2714 = vmatprep.subr.mxu0 0.0
    %2715 = vmatpush1.msra.mxu0 0.0
    %2716 = vmatprep.subr.mxu0 0.0
    %2717 = vmatpush1.msra.mxu0 0.0
    %2718 = vmatprep.subr.mxu0 0.0
    %2719 = vmatpush1.msra.mxu0 0.0
    %2720 = vmatprep.subr.mxu0 0.0
    %2721 = vmatpush1.msra.mxu0 0.0
    %2722 = vmatprep.subr.mxu0 0.0
    %2723 = vmatpush1.msra.mxu0 0.0
    %2724 = vmatprep.subr.mxu0 0.0
    %2725 = vmatpush1.msra.mxu0 0.0
    %2726 = vmatprep.subr.mxu0 0.0
    %2727 = vmatpush1.msra.mxu0 0.0
    %2728 = vmatprep.subr.mxu0 0.0
    %2729 = vmatpush1.msra.mxu0 0.0
    %2730 = vmatprep.subr.mxu0 0.0
    %2731 = vmatpush1.msra.mxu0 0.0
    %2732 = vmatprep.subr.mxu0 0.0
    %2733 = vmatpush1.msra.mxu0 %v2695
    %2734 = vmatprep.subr.mxu0 0.0
    %2735 = vmatpush1.msra.mxu0 %v2694
    %2736 = vmatprep.subr.mxu0 0.0
    %2737 = vmatpush1.msra.mxu0 %v2693
    %2738 = vmatprep.subr.mxu0 0.0
    %2739 = vmatpush1.msra.mxu0 %v2692
    %2740 = vmatprep.subr.mxu0 0.0
    %2741 = vmatpush2.msra.mxu0 0.0
    %2742 = vmatprep.subr.mxu0 0.0
    %2743 = vmatpush2.msra.mxu0 0.0
    %2744 = vmatprep.subr.mxu0 0.0
    %2745 = vmatpush2.msra.mxu0 0.0
    %2746 = vmatprep.subr.mxu0 0.0
    %2747 = vmatpush2.msra.mxu0 0.0
    %2748 = vmatprep.subr.mxu0 0.0
    %2749 = vmatpush2.msra.mxu0 0.0
    %2750 = vmatprep.subr.mxu0 0.0
    %2751 = vmatpush2.msra.mxu0 0.0
    %2752 = vmatprep.subr.mxu0 0.0
    %2753 = vmatpush2.msra.mxu0 0.0
    %2754 = vmatprep.subr.mxu0 0.0
    %2755 = vmatpush2.msra.mxu0 0.0
    %2756 = vmatprep.subr.mxu0 0.0
    %2757 = vmatpush2.msra.mxu0 0.0
    %2758 = vmatprep.subr.mxu0 0.0
    %2759 = vmatpush2.msra.mxu0 0.0
    %2760 = vmatprep.subr.mxu0 0.0
    %2761 = vmatpush2.msra.mxu0 0.0
    %2762 = vmatprep.subr.mxu0 0.0
    %2763 = vmatpush2.msra.mxu0 0.0
    %2764 = vmatprep.subr.mxu0 0.0
    %2765 = vmatpush2.msra.mxu0 0.0
    %2766 = vmatprep.subr.mxu0 0.0
    %2767 = vmatpush2.msra.mxu0 0.0
    %2768 = vmatprep.subr.mxu0 0.0
    %2769 = vmatpush2.msra.mxu0 0.0
    %2770 = vmatprep.subr.mxu0 0.0
    %2771 = vmatpush2.msra.mxu0 0.0
    %2772 = vmatprep.mubr.f32.mxu0 0.0
    %2773 = vmatmul.mubr.f32.gmra.mxu0 %v2697
    %v2774 = vpop.f32.mrf.mxu0
    %v2775 = vadd.f32 0.0, %v2774
    %v2776 = vpop.f32.mrf.mxu0
    %2777 = vmatprep.mubr.f32.mxu0 0.0
    %2778 = vmatmul.mubr.f32.gmra.mxu0 %v2700
    %v2779 = vpop.f32.mrf.mxu0
    %v2780 = vadd.f32 0.0, %v2779
    %v2781 = vpop.f32.mrf.mxu0
    %2782 = vmatprep.mubr.f32.mxu0 0.0
    %2783 = vmatmul.mubr.f32.gmra.mxu0 %v2703
    %v2784 = vpop.f32.mrf.mxu0
    %v2785 = vadd.f32 0.0, %v2784
    %v2786 = vpop.f32.mrf.mxu0
    %2787 = vmatprep.mubr.f32.mxu0 0.0
    %2788 = vmatmul.mubr.f32.gmra.mxu0 %v2706
    %v2789 = vpop.f32.mrf.mxu0
    %v2790 = vadd.f32 0.0, %v2789
    %v2791 = vpop.f32.mrf.mxu0
    %2792 = vdwg.mxu0
    %v2794 = vsel %vm145, %v2673, 0
    %v2797 = vsel %vm145, %v2674, 0
    %v2800 = vsel %vm145, %v2675, 0
    %v2803 = vsel %vm145, %v2676, 0
    %2805 = vmatprep.subr.mxu0 0.0
    %2806 = vmatpush1.msra.mxu0 0.0
    %2807 = vmatprep.subr.mxu0 0.0
    %2808 = vmatpush1.msra.mxu0 0.0
    %2809 = vmatprep.subr.mxu0 0.0
    %2810 = vmatpush1.msra.mxu0 0.0
    %2811 = vmatprep.subr.mxu0 0.0
    %2812 = vmatpush1.msra.mxu0 0.0
    %2813 = vmatprep.subr.mxu0 0.0
    %2814 = vmatpush1.msra.mxu0 0.0
    %2815 = vmatprep.subr.mxu0 0.0
    %2816 = vmatpush1.msra.mxu0 0.0
    %2817 = vmatprep.subr.mxu0 0.0
    %2818 = vmatpush1.msra.mxu0 0.0
    %2819 = vmatprep.subr.mxu0 0.0
    %2820 = vmatpush1.msra.mxu0 0.0
    %2821 = vmatprep.subr.mxu0 0.0
    %2822 = vmatpush1.msra.mxu0 0.0
    %2823 = vmatprep.subr.mxu0 0.0
    %2824 = vmatpush1.msra.mxu0 0.0
    %2825 = vmatprep.subr.mxu0 0.0
    %2826 = vmatpush1.msra.mxu0 0.0
    %2827 = vmatprep.subr.mxu0 0.0
    %2828 = vmatpush1.msra.mxu0 0.0
    %2829 = vmatprep.subr.mxu0 0.0
    %2830 = vmatpush1.msra.mxu0 %v2515
    %2831 = vmatprep.subr.mxu0 0.0
    %2832 = vmatpush1.msra.mxu0 %v2510
    %2833 = vmatprep.subr.mxu0 0.0
    %2834 = vmatpush1.msra.mxu0 %v2505
    %2835 = vmatprep.subr.mxu0 0.0
    %2836 = vmatpush1.msra.mxu0 %v2500
    %2837 = vmatprep.subr.mxu0 0.0
    %2838 = vmatpush2.msra.mxu0 0.0
    %2839 = vmatprep.subr.mxu0 0.0
    %2840 = vmatpush2.msra.mxu0 0.0
    %2841 = vmatprep.subr.mxu0 0.0
    %2842 = vmatpush2.msra.mxu0 0.0
    %2843 = vmatprep.subr.mxu0 0.0
    %2844 = vmatpush2.msra.mxu0 0.0
    %2845 = vmatprep.subr.mxu0 0.0
    %2846 = vmatpush2.msra.mxu0 0.0
    %2847 = vmatprep.subr.mxu0 0.0
    %2848 = vmatpush2.msra.mxu0 0.0
    %2849 = vmatprep.subr.mxu0 0.0
    %2850 = vmatpush2.msra.mxu0 0.0
    %2851 = vmatprep.subr.mxu0 0.0
    %2852 = vmatpush2.msra.mxu0 0.0
    %2853 = vmatprep.subr.mxu0 0.0
    %2854 = vmatpush2.msra.mxu0 0.0
    %2855 = vmatprep.subr.mxu0 0.0
    %2856 = vmatpush2.msra.mxu0 0.0
    %2857 = vmatprep.subr.mxu0 0.0
    %2858 = vmatpush2.msra.mxu0 0.0
    %2859 = vmatprep.subr.mxu0 0.0
    %2860 = vmatpush2.msra.mxu0 0.0
    %2861 = vmatprep.subr.mxu0 0.0
    %2862 = vmatpush2.msra.mxu0 0.0
    %2863 = vmatprep.subr.mxu0 0.0
    %2864 = vmatpush2.msra.mxu0 0.0
    %2865 = vmatprep.subr.mxu0 0.0
    %2866 = vmatpush2.msra.mxu0 0.0
    %2867 = vmatprep.subr.mxu0 0.0
    %2868 = vmatpush2.msra.mxu0 0.0
    %2869 = vmatprep.mubr.f32.mxu0 0.0
    %2870 = vmatmul.mubr.f32.gmra.mxu0 %v2794
    %v2871 = vpop.f32.mrf.mxu0
    %v2872 = vadd.f32 %v2775, %v2871
    %v2873 = vpop.f32.mrf.mxu0
    %2874 = vmatprep.mubr.f32.mxu0 0.0
    %2875 = vmatmul.mubr.f32.gmra.mxu0 %v2797
    %v2876 = vpop.f32.mrf.mxu0
    %v2877 = vadd.f32 %v2780, %v2876
    %v2878 = vpop.f32.mrf.mxu0
    %2879 = vmatprep.mubr.f32.mxu0 0.0
    %2880 = vmatmul.mubr.f32.gmra.mxu0 %v2800
    %v2881 = vpop.f32.mrf.mxu0
    %v2882 = vadd.f32 %v2785, %v2881
    %v2883 = vpop.f32.mrf.mxu0
    %2884 = vmatprep.mubr.f32.mxu0 0.0
    %2885 = vmatmul.mubr.f32.gmra.mxu0 %v2803
    %v2886 = vpop.f32.mrf.mxu0
    %v2887 = vadd.f32 %v2790, %v2886
    %v2888 = vpop.f32.mrf.mxu0
    %2889 = vdwg.mxu0
    %v2890 = vrot.slane %v1400, 5
    %v2891 = vsel %vm145, %v2890, 0
    %2893 = vmatprep.subr.mxu0 0.0
    %2894 = vmatpush1.msra.mxu0 0.0
    %2895 = vmatprep.subr.mxu0 0.0
    %2896 = vmatpush1.msra.mxu0 0.0
    %2897 = vmatprep.subr.mxu0 0.0
    %2898 = vmatpush1.msra.mxu0 0.0
    %2899 = vmatprep.subr.mxu0 0.0
    %2900 = vmatpush1.msra.mxu0 0.0
    %2901 = vmatprep.subr.mxu0 0.0
    %2902 = vmatpush1.msra.mxu0 0.0
    %2903 = vmatprep.subr.mxu0 0.0
    %2904 = vmatpush1.msra.mxu0 0.0
    %2905 = vmatprep.subr.mxu0 0.0
    %2906 = vmatpush1.msra.mxu0 0.0
    %2907 = vmatprep.subr.mxu0 0.0
    %2908 = vmatpush1.msra.mxu0 0.0
    %2909 = vmatprep.subr.mxu0 0.0
    %2910 = vmatpush1.msra.mxu0 0.0
    %2911 = vmatprep.subr.mxu0 0.0
    %2912 = vmatpush1.msra.mxu0 0.0
    %2913 = vmatprep.subr.mxu0 0.0
    %2914 = vmatpush1.msra.mxu0 0.0
    %2915 = vmatprep.subr.mxu0 0.0
    %2916 = vmatpush1.msra.mxu0 0.0
    %2917 = vmatprep.subr.mxu0 0.0
    %2918 = vmatpush1.msra.mxu0 %v1009
    %2919 = vmatprep.subr.mxu0 0.0
    %2920 = vmatpush1.msra.mxu0 %v1008
    %2921 = vmatprep.subr.mxu0 0.0
    %2922 = vmatpush1.msra.mxu0 %v1007
    %2923 = vmatprep.subr.mxu0 0.0
    %2924 = vmatpush1.msra.mxu0 %v1006
    %2925 = vmatprep.subr.mxu0 0.0
    %2926 = vmatpush2.msra.mxu0 0.0
    %2927 = vmatprep.subr.mxu0 0.0
    %2928 = vmatpush2.msra.mxu0 0.0
    %2929 = vmatprep.subr.mxu0 0.0
    %2930 = vmatpush2.msra.mxu0 0.0
    %2931 = vmatprep.subr.mxu0 0.0
    %2932 = vmatpush2.msra.mxu0 0.0
    %2933 = vmatprep.subr.mxu0 0.0
    %2934 = vmatpush2.msra.mxu0 0.0
    %2935 = vmatprep.subr.mxu0 0.0
    %2936 = vmatpush2.msra.mxu0 0.0
    %2937 = vmatprep.subr.mxu0 0.0
    %2938 = vmatpush2.msra.mxu0 0.0
    %2939 = vmatprep.subr.mxu0 0.0
    %2940 = vmatpush2.msra.mxu0 0.0
    %2941 = vmatprep.subr.mxu0 0.0
    %2942 = vmatpush2.msra.mxu0 0.0
    %2943 = vmatprep.subr.mxu0 0.0
    %2944 = vmatpush2.msra.mxu0 0.0
    %2945 = vmatprep.subr.mxu0 0.0
    %2946 = vmatpush2.msra.mxu0 0.0
    %2947 = vmatprep.subr.mxu0 0.0
    %2948 = vmatpush2.msra.mxu0 0.0
    %2949 = vmatprep.subr.mxu0 0.0
    %2950 = vmatpush2.msra.mxu0 0.0
    %2951 = vmatprep.subr.mxu0 0.0
    %2952 = vmatpush2.msra.mxu0 0.0
    %2953 = vmatprep.subr.mxu0 0.0
    %2954 = vmatpush2.msra.mxu0 0.0
    %2955 = vmatprep.subr.mxu0 0.0
    %2956 = vmatpush2.msra.mxu0 0.0
    %2957 = vmatprep.mubr.f32.mxu0 0.0
    %2958 = vmatmul.mubr.f32.gmra.mxu0 %v2891
    %v2959 = vpop.f32.mrf.mxu0
    %v2960 = vadd.f32 0.0, %v2959
    %v2961 = vpop.f32.mrf.mxu0
    %2962 = vdwg.mxu0
    %v2963 = vrot.slane %v772, 5
    %2964 = vrot.lane.b32.xlu0 %v2963, 64
    %v2965 = vpop.permute.xlu0 %2964
    %v2967 = vmul.f32 %v2960, %v2965
    %v2968 = vsel %vm145, %v2963, 0
    %2970 = vmatprep.subr.mxu0 0.0
    %2971 = vmatpush1.msra.mxu0 0.0
    %2972 = vmatprep.subr.mxu0 0.0
    %2973 = vmatpush1.msra.mxu0 0.0
    %2974 = vmatprep.subr.mxu0 0.0
    %2975 = vmatpush1.msra.mxu0 0.0
    %2976 = vmatprep.subr.mxu0 0.0
    %2977 = vmatpush1.msra.mxu0 0.0
    %2978 = vmatprep.subr.mxu0 0.0
    %2979 = vmatpush1.msra.mxu0 0.0
    %2980 = vmatprep.subr.mxu0 0.0
    %2981 = vmatpush1.msra.mxu0 0.0
    %2982 = vmatprep.subr.mxu0 0.0
    %2983 = vmatpush1.msra.mxu0 0.0
    %2984 = vmatprep.subr.mxu0 0.0
    %2985 = vmatpush1.msra.mxu0 0.0
    %2986 = vmatprep.subr.mxu0 0.0
    %2987 = vmatpush1.msra.mxu0 0.0
    %2988 = vmatprep.subr.mxu0 0.0
    %2989 = vmatpush1.msra.mxu0 0.0
    %2990 = vmatprep.subr.mxu0 0.0
    %2991 = vmatpush1.msra.mxu0 0.0
    %2992 = vmatprep.subr.mxu0 0.0
    %2993 = vmatpush1.msra.mxu0 0.0
    %2994 = vmatprep.subr.mxu0 0.0
    %2995 = vmatpush1.msra.mxu0 %v2887
    %2996 = vmatprep.subr.mxu0 0.0
    %2997 = vmatpush1.msra.mxu0 %v2882
    %2998 = vmatprep.subr.mxu0 0.0
    %2999 = vmatpush1.msra.mxu0 %v2877
    %3000 = vmatprep.subr.mxu0 0.0
    %3001 = vmatpush1.msra.mxu0 %v2872
    %3002 = vmatprep.subr.mxu0 0.0
    %3003 = vmatpush2.msra.mxu0 0.0
    %3004 = vmatprep.subr.mxu0 0.0
    %3005 = vmatpush2.msra.mxu0 0.0
    %3006 = vmatprep.subr.mxu0 0.0
    %3007 = vmatpush2.msra.mxu0 0.0
    %3008 = vmatprep.subr.mxu0 0.0
    %3009 = vmatpush2.msra.mxu0 0.0
    %3010 = vmatprep.subr.mxu0 0.0
    %3011 = vmatpush2.msra.mxu0 0.0
    %3012 = vmatprep.subr.mxu0 0.0
    %3013 = vmatpush2.msra.mxu0 0.0
    %3014 = vmatprep.subr.mxu0 0.0
    %3015 = vmatpush2.msra.mxu0 0.0
    %3016 = vmatprep.subr.mxu0 0.0
    %3017 = vmatpush2.msra.mxu0 0.0
    %3018 = vmatprep.subr.mxu0 0.0
    %3019 = vmatpush2.msra.mxu0 0.0
    %3020 = vmatprep.subr.mxu0 0.0
    %3021 = vmatpush2.msra.mxu0 0.0
    %3022 = vmatprep.subr.mxu0 0.0
    %3023 = vmatpush2.msra.mxu0 0.0
    %3024 = vmatprep.subr.mxu0 0.0
    %3025 = vmatpush2.msra.mxu0 0.0
    %3026 = vmatprep.subr.mxu0 0.0
    %3027 = vmatpush2.msra.mxu0 0.0
    %3028 = vmatprep.subr.mxu0 0.0
    %3029 = vmatpush2.msra.mxu0 0.0
    %3030 = vmatprep.subr.mxu0 0.0
    %3031 = vmatpush2.msra.mxu0 0.0
    %3032 = vmatprep.subr.mxu0 0.0
    %3033 = vmatpush2.msra.mxu0 0.0
    %3034 = vmatprep.mubr.f32.mxu0 0.0
    %3035 = vmatmul.mubr.f32.gmra.mxu0 %v2968
    %v3036 = vpop.f32.mrf.mxu0
    %v3037 = vadd.f32 %v2967, %v3036
    %v3038 = vpop.f32.mrf.mxu0
    %3039 = vdwg.mxu0
    %3040 = vst.msk [vmem:[#allocation2 + $0x5] sm:$0x1] %vm1170, %v3037
    %v3041 = vlaneseq
    %v3042 = vshrl.u32 %v3041, 7
    %v3043 = vsub.s32 5, %v3042
    %v3044 = vrot.slane %v947, %v3043
    %v3045 = vmul.f32 %v956, %v3044
    %v3046 = vmul.f32 %v957, %v3044
    %v3047 = vmul.f32 %v958, %v3044
    %v3048 = vmul.f32 %v959, %v3044
    %v3049 = vlaneseq
    %v3050 = vshrl.u32 %v3049, 7
    %v3051 = vsub.s32 5, %v3050
    %v3052 = vrot.slane %v772, %v3051
    %3054 = vrot.lane.b32.xlu0 %v3052, 96
    %v3055 = vpop.permute.xlu0 %3054
    %v3057 = vmul.f32 %v956, %v3055
    %v3058 = vmul.f32 %v957, %v3055
    %v3059 = vmul.f32 %v958, %v3055
    %v3060 = vmul.f32 %v959, %v3055
    %3061 = vrot.lane.b32.xlu0 %v3052, 64
    %v3062 = vpop.permute.xlu0 %3061
    %v3064 = vmul.f32 %v1006, %v3062
    %v3065 = vmul.f32 %v1007, %v3062
    %v3066 = vmul.f32 %v1008, %v3062
    %v3067 = vmul.f32 %v1009, %v3062
    %v3069 = vsel %vm145, %v3057, 0
    %v3072 = vsel %vm145, %v3058, 0
    %v3075 = vsel %vm145, %v3059, 0
    %v3078 = vsel %vm145, %v3060, 0
    %3080 = vmatprep.subr.mxu0 0.0
    %3081 = vmatpush1.msra.mxu0 0.0
    %3082 = vmatprep.subr.mxu0 0.0
    %3083 = vmatpush1.msra.mxu0 0.0
    %3084 = vmatprep.subr.mxu0 0.0
    %3085 = vmatpush1.msra.mxu0 0.0
    %3086 = vmatprep.subr.mxu0 0.0
    %3087 = vmatpush1.msra.mxu0 0.0
    %3088 = vmatprep.subr.mxu0 0.0
    %3089 = vmatpush1.msra.mxu0 0.0
    %3090 = vmatprep.subr.mxu0 0.0
    %3091 = vmatpush1.msra.mxu0 0.0
    %3092 = vmatprep.subr.mxu0 0.0
    %3093 = vmatpush1.msra.mxu0 0.0
    %3094 = vmatprep.subr.mxu0 0.0
    %3095 = vmatpush1.msra.mxu0 0.0
    %3096 = vmatprep.subr.mxu0 0.0
    %3097 = vmatpush1.msra.mxu0 0.0
    %3098 = vmatprep.subr.mxu0 0.0
    %3099 = vmatpush1.msra.mxu0 0.0
    %3100 = vmatprep.subr.mxu0 0.0
    %3101 = vmatpush1.msra.mxu0 0.0
    %3102 = vmatprep.subr.mxu0 0.0
    %3103 = vmatpush1.msra.mxu0 0.0
    %3104 = vmatprep.subr.mxu0 0.0
    %3105 = vmatpush1.msra.mxu0 %v3067
    %3106 = vmatprep.subr.mxu0 0.0
    %3107 = vmatpush1.msra.mxu0 %v3066
    %3108 = vmatprep.subr.mxu0 0.0
    %3109 = vmatpush1.msra.mxu0 %v3065
    %3110 = vmatprep.subr.mxu0 0.0
    %3111 = vmatpush1.msra.mxu0 %v3064
    %3112 = vmatprep.subr.mxu0 0.0
    %3113 = vmatpush2.msra.mxu0 0.0
    %3114 = vmatprep.subr.mxu0 0.0
    %3115 = vmatpush2.msra.mxu0 0.0
    %3116 = vmatprep.subr.mxu0 0.0
    %3117 = vmatpush2.msra.mxu0 0.0
    %3118 = vmatprep.subr.mxu0 0.0
    %3119 = vmatpush2.msra.mxu0 0.0
    %3120 = vmatprep.subr.mxu0 0.0
    %3121 = vmatpush2.msra.mxu0 0.0
    %3122 = vmatprep.subr.mxu0 0.0
    %3123 = vmatpush2.msra.mxu0 0.0
    %3124 = vmatprep.subr.mxu0 0.0
    %3125 = vmatpush2.msra.mxu0 0.0
    %3126 = vmatprep.subr.mxu0 0.0
    %3127 = vmatpush2.msra.mxu0 0.0
    %3128 = vmatprep.subr.mxu0 0.0
    %3129 = vmatpush2.msra.mxu0 0.0
    %3130 = vmatprep.subr.mxu0 0.0
    %3131 = vmatpush2.msra.mxu0 0.0
    %3132 = vmatprep.subr.mxu0 0.0
    %3133 = vmatpush2.msra.mxu0 0.0
    %3134 = vmatprep.subr.mxu0 0.0
    %3135 = vmatpush2.msra.mxu0 0.0
    %3136 = vmatprep.subr.mxu0 0.0
    %3137 = vmatpush2.msra.mxu0 0.0
    %3138 = vmatprep.subr.mxu0 0.0
    %3139 = vmatpush2.msra.mxu0 0.0
    %3140 = vmatprep.subr.mxu0 0.0
    %3141 = vmatpush2.msra.mxu0 0.0
    %3142 = vmatprep.subr.mxu0 0.0
    %3143 = vmatpush2.msra.mxu0 0.0
    %3144 = vmatprep.mubr.f32.mxu0 0.0
    %3145 = vmatmul.mubr.f32.gmra.mxu0 %v3069
    %v3146 = vpop.f32.mrf.mxu0
    %v3147 = vadd.f32 0.0, %v3146
    %v3148 = vpop.f32.mrf.mxu0
    %3149 = vmatprep.mubr.f32.mxu0 0.0
    %3150 = vmatmul.mubr.f32.gmra.mxu0 %v3072
    %v3151 = vpop.f32.mrf.mxu0
    %v3152 = vadd.f32 0.0, %v3151
    %v3153 = vpop.f32.mrf.mxu0
    %3154 = vmatprep.mubr.f32.mxu0 0.0
    %3155 = vmatmul.mubr.f32.gmra.mxu0 %v3075
    %v3156 = vpop.f32.mrf.mxu0
    %v3157 = vadd.f32 0.0, %v3156
    %v3158 = vpop.f32.mrf.mxu0
    %3159 = vmatprep.mubr.f32.mxu0 0.0
    %3160 = vmatmul.mubr.f32.gmra.mxu0 %v3078
    %v3161 = vpop.f32.mrf.mxu0
    %v3162 = vadd.f32 0.0, %v3161
    %v3163 = vpop.f32.mrf.mxu0
    %3164 = vdwg.mxu0
    %v3166 = vsel %vm145, %v3045, 0
    %v3169 = vsel %vm145, %v3046, 0
    %v3172 = vsel %vm145, %v3047, 0
    %v3175 = vsel %vm145, %v3048, 0
    %3177 = vmatprep.subr.mxu0 0.0
    %3178 = vmatpush1.msra.mxu0 0.0
    %3179 = vmatprep.subr.mxu0 0.0
    %3180 = vmatpush1.msra.mxu0 0.0
    %3181 = vmatprep.subr.mxu0 0.0
    %3182 = vmatpush1.msra.mxu0 0.0
    %3183 = vmatprep.subr.mxu0 0.0
    %3184 = vmatpush1.msra.mxu0 0.0
    %3185 = vmatprep.subr.mxu0 0.0
    %3186 = vmatpush1.msra.mxu0 0.0
    %3187 = vmatprep.subr.mxu0 0.0
    %3188 = vmatpush1.msra.mxu0 0.0
    %3189 = vmatprep.subr.mxu0 0.0
    %3190 = vmatpush1.msra.mxu0 0.0
    %3191 = vmatprep.subr.mxu0 0.0
    %3192 = vmatpush1.msra.mxu0 0.0
    %3193 = vmatprep.subr.mxu0 0.0
    %3194 = vmatpush1.msra.mxu0 0.0
    %3195 = vmatprep.subr.mxu0 0.0
    %3196 = vmatpush1.msra.mxu0 0.0
    %3197 = vmatprep.subr.mxu0 0.0
    %3198 = vmatpush1.msra.mxu0 0.0
    %3199 = vmatprep.subr.mxu0 0.0
    %3200 = vmatpush1.msra.mxu0 0.0
    %3201 = vmatprep.subr.mxu0 0.0
    %3202 = vmatpush1.msra.mxu0 %v2887
    %3203 = vmatprep.subr.mxu0 0.0
    %3204 = vmatpush1.msra.mxu0 %v2882
    %3205 = vmatprep.subr.mxu0 0.0
    %3206 = vmatpush1.msra.mxu0 %v2877
    %3207 = vmatprep.subr.mxu0 0.0
    %3208 = vmatpush1.msra.mxu0 %v2872
    %3209 = vmatprep.subr.mxu0 0.0
    %3210 = vmatpush2.msra.mxu0 0.0
    %3211 = vmatprep.subr.mxu0 0.0
    %3212 = vmatpush2.msra.mxu0 0.0
    %3213 = vmatprep.subr.mxu0 0.0
    %3214 = vmatpush2.msra.mxu0 0.0
    %3215 = vmatprep.subr.mxu0 0.0
    %3216 = vmatpush2.msra.mxu0 0.0
    %3217 = vmatprep.subr.mxu0 0.0
    %3218 = vmatpush2.msra.mxu0 0.0
    %3219 = vmatprep.subr.mxu0 0.0
    %3220 = vmatpush2.msra.mxu0 0.0
    %3221 = vmatprep.subr.mxu0 0.0
    %3222 = vmatpush2.msra.mxu0 0.0
    %3223 = vmatprep.subr.mxu0 0.0
    %3224 = vmatpush2.msra.mxu0 0.0
    %3225 = vmatprep.subr.mxu0 0.0
    %3226 = vmatpush2.msra.mxu0 0.0
    %3227 = vmatprep.subr.mxu0 0.0
    %3228 = vmatpush2.msra.mxu0 0.0
    %3229 = vmatprep.subr.mxu0 0.0
    %3230 = vmatpush2.msra.mxu0 0.0
    %3231 = vmatprep.subr.mxu0 0.0
    %3232 = vmatpush2.msra.mxu0 0.0
    %3233 = vmatprep.subr.mxu0 0.0
    %3234 = vmatpush2.msra.mxu0 0.0
    %3235 = vmatprep.subr.mxu0 0.0
    %3236 = vmatpush2.msra.mxu0 0.0
    %3237 = vmatprep.subr.mxu0 0.0
    %3238 = vmatpush2.msra.mxu0 0.0
    %3239 = vmatprep.subr.mxu0 0.0
    %3240 = vmatpush2.msra.mxu0 0.0
    %3241 = vmatprep.mubr.f32.mxu0 0.0
    %3242 = vmatmul.mubr.f32.gmra.mxu0 %v3166
    %v3243 = vpop.f32.mrf.mxu0
    %v3244 = vadd.f32 %v3147, %v3243
    %v3245 = vpop.f32.mrf.mxu0
    %3246 = vmatprep.mubr.f32.mxu0 0.0
    %3247 = vmatmul.mubr.f32.gmra.mxu0 %v3169
    %v3248 = vpop.f32.mrf.mxu0
    %v3249 = vadd.f32 %v3152, %v3248
    %v3250 = vpop.f32.mrf.mxu0
    %3251 = vmatprep.mubr.f32.mxu0 0.0
    %3252 = vmatmul.mubr.f32.gmra.mxu0 %v3172
    %v3253 = vpop.f32.mrf.mxu0
    %v3254 = vadd.f32 %v3157, %v3253
    %v3255 = vpop.f32.mrf.mxu0
    %3256 = vmatprep.mubr.f32.mxu0 0.0
    %3257 = vmatmul.mubr.f32.gmra.mxu0 %v3175
    %v3258 = vpop.f32.mrf.mxu0
    %v3259 = vadd.f32 %v3162, %v3258
    %v3260 = vpop.f32.mrf.mxu0
    %3261 = vdwg.mxu0
    %v3262 = vrot.slane %v1400, 6
    %v3263 = vsel %vm145, %v3262, 0
    %3265 = vmatprep.subr.mxu0 0.0
    %3266 = vmatpush1.msra.mxu0 0.0
    %3267 = vmatprep.subr.mxu0 0.0
    %3268 = vmatpush1.msra.mxu0 0.0
    %3269 = vmatprep.subr.mxu0 0.0
    %3270 = vmatpush1.msra.mxu0 0.0
    %3271 = vmatprep.subr.mxu0 0.0
    %3272 = vmatpush1.msra.mxu0 0.0
    %3273 = vmatprep.subr.mxu0 0.0
    %3274 = vmatpush1.msra.mxu0 0.0
    %3275 = vmatprep.subr.mxu0 0.0
    %3276 = vmatpush1.msra.mxu0 0.0
    %3277 = vmatprep.subr.mxu0 0.0
    %3278 = vmatpush1.msra.mxu0 0.0
    %3279 = vmatprep.subr.mxu0 0.0
    %3280 = vmatpush1.msra.mxu0 0.0
    %3281 = vmatprep.subr.mxu0 0.0
    %3282 = vmatpush1.msra.mxu0 0.0
    %3283 = vmatprep.subr.mxu0 0.0
    %3284 = vmatpush1.msra.mxu0 0.0
    %3285 = vmatprep.subr.mxu0 0.0
    %3286 = vmatpush1.msra.mxu0 0.0
    %3287 = vmatprep.subr.mxu0 0.0
    %3288 = vmatpush1.msra.mxu0 0.0
    %3289 = vmatprep.subr.mxu0 0.0
    %3290 = vmatpush1.msra.mxu0 %v1009
    %3291 = vmatprep.subr.mxu0 0.0
    %3292 = vmatpush1.msra.mxu0 %v1008
    %3293 = vmatprep.subr.mxu0 0.0
    %3294 = vmatpush1.msra.mxu0 %v1007
    %3295 = vmatprep.subr.mxu0 0.0
    %3296 = vmatpush1.msra.mxu0 %v1006
    %3297 = vmatprep.subr.mxu0 0.0
    %3298 = vmatpush2.msra.mxu0 0.0
    %3299 = vmatprep.subr.mxu0 0.0
    %3300 = vmatpush2.msra.mxu0 0.0
    %3301 = vmatprep.subr.mxu0 0.0
    %3302 = vmatpush2.msra.mxu0 0.0
    %3303 = vmatprep.subr.mxu0 0.0
    %3304 = vmatpush2.msra.mxu0 0.0
    %3305 = vmatprep.subr.mxu0 0.0
    %3306 = vmatpush2.msra.mxu0 0.0
    %3307 = vmatprep.subr.mxu0 0.0
    %3308 = vmatpush2.msra.mxu0 0.0
    %3309 = vmatprep.subr.mxu0 0.0
    %3310 = vmatpush2.msra.mxu0 0.0
    %3311 = vmatprep.subr.mxu0 0.0
    %3312 = vmatpush2.msra.mxu0 0.0
    %3313 = vmatprep.subr.mxu0 0.0
    %3314 = vmatpush2.msra.mxu0 0.0
    %3315 = vmatprep.subr.mxu0 0.0
    %3316 = vmatpush2.msra.mxu0 0.0
    %3317 = vmatprep.subr.mxu0 0.0
    %3318 = vmatpush2.msra.mxu0 0.0
    %3319 = vmatprep.subr.mxu0 0.0
    %3320 = vmatpush2.msra.mxu0 0.0
    %3321 = vmatprep.subr.mxu0 0.0
    %3322 = vmatpush2.msra.mxu0 0.0
    %3323 = vmatprep.subr.mxu0 0.0
    %3324 = vmatpush2.msra.mxu0 0.0
    %3325 = vmatprep.subr.mxu0 0.0
    %3326 = vmatpush2.msra.mxu0 0.0
    %3327 = vmatprep.subr.mxu0 0.0
    %3328 = vmatpush2.msra.mxu0 0.0
    %3329 = vmatprep.mubr.f32.mxu0 0.0
    %3330 = vmatmul.mubr.f32.gmra.mxu0 %v3263
    %v3331 = vpop.f32.mrf.mxu0
    %v3332 = vadd.f32 0.0, %v3331
    %v3333 = vpop.f32.mrf.mxu0
    %3334 = vdwg.mxu0
    %v3335 = vrot.slane %v772, 6
    %3336 = vrot.lane.b32.xlu0 %v3335, 64
    %v3337 = vpop.permute.xlu0 %3336
    %v3339 = vmul.f32 %v3332, %v3337
    %v3340 = vsel %vm145, %v3335, 0
    %3342 = vmatprep.subr.mxu0 0.0
    %3343 = vmatpush1.msra.mxu0 0.0
    %3344 = vmatprep.subr.mxu0 0.0
    %3345 = vmatpush1.msra.mxu0 0.0
    %3346 = vmatprep.subr.mxu0 0.0
    %3347 = vmatpush1.msra.mxu0 0.0
    %3348 = vmatprep.subr.mxu0 0.0
    %3349 = vmatpush1.msra.mxu0 0.0
    %3350 = vmatprep.subr.mxu0 0.0
    %3351 = vmatpush1.msra.mxu0 0.0
    %3352 = vmatprep.subr.mxu0 0.0
    %3353 = vmatpush1.msra.mxu0 0.0
    %3354 = vmatprep.subr.mxu0 0.0
    %3355 = vmatpush1.msra.mxu0 0.0
    %3356 = vmatprep.subr.mxu0 0.0
    %3357 = vmatpush1.msra.mxu0 0.0
    %3358 = vmatprep.subr.mxu0 0.0
    %3359 = vmatpush1.msra.mxu0 0.0
    %3360 = vmatprep.subr.mxu0 0.0
    %3361 = vmatpush1.msra.mxu0 0.0
    %3362 = vmatprep.subr.mxu0 0.0
    %3363 = vmatpush1.msra.mxu0 0.0
    %3364 = vmatprep.subr.mxu0 0.0
    %3365 = vmatpush1.msra.mxu0 0.0
    %3366 = vmatprep.subr.mxu0 0.0
    %3367 = vmatpush1.msra.mxu0 %v3259
    %3368 = vmatprep.subr.mxu0 0.0
    %3369 = vmatpush1.msra.mxu0 %v3254
    %3370 = vmatprep.subr.mxu0 0.0
    %3371 = vmatpush1.msra.mxu0 %v3249
    %3372 = vmatprep.subr.mxu0 0.0
    %3373 = vmatpush1.msra.mxu0 %v3244
    %3374 = vmatprep.subr.mxu0 0.0
    %3375 = vmatpush2.msra.mxu0 0.0
    %3376 = vmatprep.subr.mxu0 0.0
    %3377 = vmatpush2.msra.mxu0 0.0
    %3378 = vmatprep.subr.mxu0 0.0
    %3379 = vmatpush2.msra.mxu0 0.0
    %3380 = vmatprep.subr.mxu0 0.0
    %3381 = vmatpush2.msra.mxu0 0.0
    %3382 = vmatprep.subr.mxu0 0.0
    %3383 = vmatpush2.msra.mxu0 0.0
    %3384 = vmatprep.subr.mxu0 0.0
    %3385 = vmatpush2.msra.mxu0 0.0
    %3386 = vmatprep.subr.mxu0 0.0
    %3387 = vmatpush2.msra.mxu0 0.0
    %3388 = vmatprep.subr.mxu0 0.0
    %3389 = vmatpush2.msra.mxu0 0.0
    %3390 = vmatprep.subr.mxu0 0.0
    %3391 = vmatpush2.msra.mxu0 0.0
    %3392 = vmatprep.subr.mxu0 0.0
    %3393 = vmatpush2.msra.mxu0 0.0
    %3394 = vmatprep.subr.mxu0 0.0
    %3395 = vmatpush2.msra.mxu0 0.0
    %3396 = vmatprep.subr.mxu0 0.0
    %3397 = vmatpush2.msra.mxu0 0.0
    %3398 = vmatprep.subr.mxu0 0.0
    %3399 = vmatpush2.msra.mxu0 0.0
    %3400 = vmatprep.subr.mxu0 0.0
    %3401 = vmatpush2.msra.mxu0 0.0
    %3402 = vmatprep.subr.mxu0 0.0
    %3403 = vmatpush2.msra.mxu0 0.0
    %3404 = vmatprep.subr.mxu0 0.0
    %3405 = vmatpush2.msra.mxu0 0.0
    %3406 = vmatprep.mubr.f32.mxu0 0.0
    %3407 = vmatmul.mubr.f32.gmra.mxu0 %v3340
    %v3408 = vpop.f32.mrf.mxu0
    %v3409 = vadd.f32 %v3339, %v3408
    %v3410 = vpop.f32.mrf.mxu0
    %3411 = vdwg.mxu0
    %3412 = vst.msk [vmem:[#allocation2 + $0x6] sm:$0x1] %vm1170, %v3409
    %v3413 = vlaneseq
    %v3414 = vshrl.u32 %v3413, 7
    %v3415 = vsub.s32 6, %v3414
    %v3416 = vrot.slane %v947, %v3415
    %v3417 = vmul.f32 %v956, %v3416
    %v3418 = vmul.f32 %v957, %v3416
    %v3419 = vmul.f32 %v958, %v3416
    %v3420 = vmul.f32 %v959, %v3416
    %v3421 = vlaneseq
    %v3422 = vshrl.u32 %v3421, 7
    %v3423 = vsub.s32 6, %v3422
    %v3424 = vrot.slane %v772, %v3423
    %3426 = vrot.lane.b32.xlu0 %v3424, 96
    %v3427 = vpop.permute.xlu0 %3426
    %v3429 = vmul.f32 %v956, %v3427
    %v3430 = vmul.f32 %v957, %v3427
    %v3431 = vmul.f32 %v958, %v3427
    %v3432 = vmul.f32 %v959, %v3427
    %3433 = vrot.lane.b32.xlu0 %v3424, 64
    %v3434 = vpop.permute.xlu0 %3433
    %v3436 = vmul.f32 %v1006, %v3434
    %v3437 = vmul.f32 %v1007, %v3434
    %v3438 = vmul.f32 %v1008, %v3434
    %v3439 = vmul.f32 %v1009, %v3434
    %v3441 = vsel %vm145, %v3429, 0
    %v3444 = vsel %vm145, %v3430, 0
    %v3447 = vsel %vm145, %v3431, 0
    %v3450 = vsel %vm145, %v3432, 0
    %3452 = vmatprep.subr.mxu0 0.0
    %3453 = vmatpush1.msra.mxu0 0.0
    %3454 = vmatprep.subr.mxu0 0.0
    %3455 = vmatpush1.msra.mxu0 0.0
    %3456 = vmatprep.subr.mxu0 0.0
    %3457 = vmatpush1.msra.mxu0 0.0
    %3458 = vmatprep.subr.mxu0 0.0
    %3459 = vmatpush1.msra.mxu0 0.0
    %3460 = vmatprep.subr.mxu0 0.0
    %3461 = vmatpush1.msra.mxu0 0.0
    %3462 = vmatprep.subr.mxu0 0.0
    %3463 = vmatpush1.msra.mxu0 0.0
    %3464 = vmatprep.subr.mxu0 0.0
    %3465 = vmatpush1.msra.mxu0 0.0
    %3466 = vmatprep.subr.mxu0 0.0
    %3467 = vmatpush1.msra.mxu0 0.0
    %3468 = vmatprep.subr.mxu0 0.0
    %3469 = vmatpush1.msra.mxu0 0.0
    %3470 = vmatprep.subr.mxu0 0.0
    %3471 = vmatpush1.msra.mxu0 0.0
    %3472 = vmatprep.subr.mxu0 0.0
    %3473 = vmatpush1.msra.mxu0 0.0
    %3474 = vmatprep.subr.mxu0 0.0
    %3475 = vmatpush1.msra.mxu0 0.0
    %3476 = vmatprep.subr.mxu0 0.0
    %3477 = vmatpush1.msra.mxu0 %v3439
    %3478 = vmatprep.subr.mxu0 0.0
    %3479 = vmatpush1.msra.mxu0 %v3438
    %3480 = vmatprep.subr.mxu0 0.0
    %3481 = vmatpush1.msra.mxu0 %v3437
    %3482 = vmatprep.subr.mxu0 0.0
    %3483 = vmatpush1.msra.mxu0 %v3436
    %3484 = vmatprep.subr.mxu0 0.0
    %3485 = vmatpush2.msra.mxu0 0.0
    %3486 = vmatprep.subr.mxu0 0.0
    %3487 = vmatpush2.msra.mxu0 0.0
    %3488 = vmatprep.subr.mxu0 0.0
    %3489 = vmatpush2.msra.mxu0 0.0
    %3490 = vmatprep.subr.mxu0 0.0
    %3491 = vmatpush2.msra.mxu0 0.0
    %3492 = vmatprep.subr.mxu0 0.0
    %3493 = vmatpush2.msra.mxu0 0.0
    %3494 = vmatprep.subr.mxu0 0.0
    %3495 = vmatpush2.msra.mxu0 0.0
    %3496 = vmatprep.subr.mxu0 0.0
    %3497 = vmatpush2.msra.mxu0 0.0
    %3498 = vmatprep.subr.mxu0 0.0
    %3499 = vmatpush2.msra.mxu0 0.0
    %3500 = vmatprep.subr.mxu0 0.0
    %3501 = vmatpush2.msra.mxu0 0.0
    %3502 = vmatprep.subr.mxu0 0.0
    %3503 = vmatpush2.msra.mxu0 0.0
    %3504 = vmatprep.subr.mxu0 0.0
    %3505 = vmatpush2.msra.mxu0 0.0
    %3506 = vmatprep.subr.mxu0 0.0
    %3507 = vmatpush2.msra.mxu0 0.0
    %3508 = vmatprep.subr.mxu0 0.0
    %3509 = vmatpush2.msra.mxu0 0.0
    %3510 = vmatprep.subr.mxu0 0.0
    %3511 = vmatpush2.msra.mxu0 0.0
    %3512 = vmatprep.subr.mxu0 0.0
    %3513 = vmatpush2.msra.mxu0 0.0
    %3514 = vmatprep.subr.mxu0 0.0
    %3515 = vmatpush2.msra.mxu0 0.0
    %3516 = vmatprep.mubr.f32.mxu0 0.0
    %3517 = vmatmul.mubr.f32.gmra.mxu0 %v3441
    %v3518 = vpop.f32.mrf.mxu0
    %v3519 = vadd.f32 0.0, %v3518
    %v3520 = vpop.f32.mrf.mxu0
    %3521 = vmatprep.mubr.f32.mxu0 0.0
    %3522 = vmatmul.mubr.f32.gmra.mxu0 %v3444
    %v3523 = vpop.f32.mrf.mxu0
    %v3524 = vadd.f32 0.0, %v3523
    %v3525 = vpop.f32.mrf.mxu0
    %3526 = vmatprep.mubr.f32.mxu0 0.0
    %3527 = vmatmul.mubr.f32.gmra.mxu0 %v3447
    %v3528 = vpop.f32.mrf.mxu0
    %v3529 = vadd.f32 0.0, %v3528
    %v3530 = vpop.f32.mrf.mxu0
    %3531 = vmatprep.mubr.f32.mxu0 0.0
    %3532 = vmatmul.mubr.f32.gmra.mxu0 %v3450
    %v3533 = vpop.f32.mrf.mxu0
    %v3534 = vadd.f32 0.0, %v3533
    %v3535 = vpop.f32.mrf.mxu0
    %3536 = vdwg.mxu0
    %v3538 = vsel %vm145, %v3417, 0
    %v3541 = vsel %vm145, %v3418, 0
    %v3544 = vsel %vm145, %v3419, 0
    %v3547 = vsel %vm145, %v3420, 0
    %3549 = vmatprep.subr.mxu0 0.0
    %3550 = vmatpush1.msra.mxu0 0.0
    %3551 = vmatprep.subr.mxu0 0.0
    %3552 = vmatpush1.msra.mxu0 0.0
    %3553 = vmatprep.subr.mxu0 0.0
    %3554 = vmatpush1.msra.mxu0 0.0
    %3555 = vmatprep.subr.mxu0 0.0
    %3556 = vmatpush1.msra.mxu0 0.0
    %3557 = vmatprep.subr.mxu0 0.0
    %3558 = vmatpush1.msra.mxu0 0.0
    %3559 = vmatprep.subr.mxu0 0.0
    %3560 = vmatpush1.msra.mxu0 0.0
    %3561 = vmatprep.subr.mxu0 0.0
    %3562 = vmatpush1.msra.mxu0 0.0
    %3563 = vmatprep.subr.mxu0 0.0
    %3564 = vmatpush1.msra.mxu0 0.0
    %3565 = vmatprep.subr.mxu0 0.0
    %3566 = vmatpush1.msra.mxu0 0.0
    %3567 = vmatprep.subr.mxu0 0.0
    %3568 = vmatpush1.msra.mxu0 0.0
    %3569 = vmatprep.subr.mxu0 0.0
    %3570 = vmatpush1.msra.mxu0 0.0
    %3571 = vmatprep.subr.mxu0 0.0
    %3572 = vmatpush1.msra.mxu0 0.0
    %3573 = vmatprep.subr.mxu0 0.0
    %3574 = vmatpush1.msra.mxu0 %v3259
    %3575 = vmatprep.subr.mxu0 0.0
    %3576 = vmatpush1.msra.mxu0 %v3254
    %3577 = vmatprep.subr.mxu0 0.0
    %3578 = vmatpush1.msra.mxu0 %v3249
    %3579 = vmatprep.subr.mxu0 0.0
    %3580 = vmatpush1.msra.mxu0 %v3244
    %3581 = vmatprep.subr.mxu0 0.0
    %3582 = vmatpush2.msra.mxu0 0.0
    %3583 = vmatprep.subr.mxu0 0.0
    %3584 = vmatpush2.msra.mxu0 0.0
    %3585 = vmatprep.subr.mxu0 0.0
    %3586 = vmatpush2.msra.mxu0 0.0
    %3587 = vmatprep.subr.mxu0 0.0
    %3588 = vmatpush2.msra.mxu0 0.0
    %3589 = vmatprep.subr.mxu0 0.0
    %3590 = vmatpush2.msra.mxu0 0.0
    %3591 = vmatprep.subr.mxu0 0.0
    %3592 = vmatpush2.msra.mxu0 0.0
    %3593 = vmatprep.subr.mxu0 0.0
    %3594 = vmatpush2.msra.mxu0 0.0
    %3595 = vmatprep.subr.mxu0 0.0
    %3596 = vmatpush2.msra.mxu0 0.0
    %3597 = vmatprep.subr.mxu0 0.0
    %3598 = vmatpush2.msra.mxu0 0.0
    %3599 = vmatprep.subr.mxu0 0.0
    %3600 = vmatpush2.msra.mxu0 0.0
    %3601 = vmatprep.subr.mxu0 0.0
    %3602 = vmatpush2.msra.mxu0 0.0
    %3603 = vmatprep.subr.mxu0 0.0
    %3604 = vmatpush2.msra.mxu0 0.0
    %3605 = vmatprep.subr.mxu0 0.0
    %3606 = vmatpush2.msra.mxu0 0.0
    %3607 = vmatprep.subr.mxu0 0.0
    %3608 = vmatpush2.msra.mxu0 0.0
    %3609 = vmatprep.subr.mxu0 0.0
    %3610 = vmatpush2.msra.mxu0 0.0
    %3611 = vmatprep.subr.mxu0 0.0
    %3612 = vmatpush2.msra.mxu0 0.0
    %3613 = vmatprep.mubr.f32.mxu0 0.0
    %3614 = vmatmul.mubr.f32.gmra.mxu0 %v3538
    %v3615 = vpop.f32.mrf.mxu0
    %v3616 = vadd.f32 %v3519, %v3615
    %v3617 = vpop.f32.mrf.mxu0
    %3618 = vmatprep.mubr.f32.mxu0 0.0
    %3619 = vmatmul.mubr.f32.gmra.mxu0 %v3541
    %v3620 = vpop.f32.mrf.mxu0
    %v3621 = vadd.f32 %v3524, %v3620
    %v3622 = vpop.f32.mrf.mxu0
    %3623 = vmatprep.mubr.f32.mxu0 0.0
    %3624 = vmatmul.mubr.f32.gmra.mxu0 %v3544
    %v3625 = vpop.f32.mrf.mxu0
    %v3626 = vadd.f32 %v3529, %v3625
    %v3627 = vpop.f32.mrf.mxu0
    %3628 = vmatprep.mubr.f32.mxu0 0.0
    %3629 = vmatmul.mubr.f32.gmra.mxu0 %v3547
    %v3630 = vpop.f32.mrf.mxu0
    %v3631 = vadd.f32 %v3534, %v3630
    %v3632 = vpop.f32.mrf.mxu0
    %3633 = vdwg.mxu0
    %v3634 = vrot.slane %v1400, 7
    %v3635 = vsel %vm145, %v3634, 0
    %3637 = vmatprep.subr.mxu0 0.0
    %3638 = vmatpush1.msra.mxu0 0.0
    %3639 = vmatprep.subr.mxu0 0.0
    %3640 = vmatpush1.msra.mxu0 0.0
    %3641 = vmatprep.subr.mxu0 0.0
    %3642 = vmatpush1.msra.mxu0 0.0
    %3643 = vmatprep.subr.mxu0 0.0
    %3644 = vmatpush1.msra.mxu0 0.0
    %3645 = vmatprep.subr.mxu0 0.0
    %3646 = vmatpush1.msra.mxu0 0.0
    %3647 = vmatprep.subr.mxu0 0.0
    %3648 = vmatpush1.msra.mxu0 0.0
    %3649 = vmatprep.subr.mxu0 0.0
    %3650 = vmatpush1.msra.mxu0 0.0
    %3651 = vmatprep.subr.mxu0 0.0
    %3652 = vmatpush1.msra.mxu0 0.0
    %3653 = vmatprep.subr.mxu0 0.0
    %3654 = vmatpush1.msra.mxu0 0.0
    %3655 = vmatprep.subr.mxu0 0.0
    %3656 = vmatpush1.msra.mxu0 0.0
    %3657 = vmatprep.subr.mxu0 0.0
    %3658 = vmatpush1.msra.mxu0 0.0
    %3659 = vmatprep.subr.mxu0 0.0
    %3660 = vmatpush1.msra.mxu0 0.0
    %3661 = vmatprep.subr.mxu0 0.0
    %3662 = vmatpush1.msra.mxu0 %v1009
    %3663 = vmatprep.subr.mxu0 0.0
    %3664 = vmatpush1.msra.mxu0 %v1008
    %3665 = vmatprep.subr.mxu0 0.0
    %3666 = vmatpush1.msra.mxu0 %v1007
    %3667 = vmatprep.subr.mxu0 0.0
    %3668 = vmatpush1.msra.mxu0 %v1006
    %3669 = vmatprep.subr.mxu0 0.0
    %3670 = vmatpush2.msra.mxu0 0.0
    %3671 = vmatprep.subr.mxu0 0.0
    %3672 = vmatpush2.msra.mxu0 0.0
    %3673 = vmatprep.subr.mxu0 0.0
    %3674 = vmatpush2.msra.mxu0 0.0
    %3675 = vmatprep.subr.mxu0 0.0
    %3676 = vmatpush2.msra.mxu0 0.0
    %3677 = vmatprep.subr.mxu0 0.0
    %3678 = vmatpush2.msra.mxu0 0.0
    %3679 = vmatprep.subr.mxu0 0.0
    %3680 = vmatpush2.msra.mxu0 0.0
    %3681 = vmatprep.subr.mxu0 0.0
    %3682 = vmatpush2.msra.mxu0 0.0
    %3683 = vmatprep.subr.mxu0 0.0
    %3684 = vmatpush2.msra.mxu0 0.0
    %3685 = vmatprep.subr.mxu0 0.0
    %3686 = vmatpush2.msra.mxu0 0.0
    %3687 = vmatprep.subr.mxu0 0.0
    %3688 = vmatpush2.msra.mxu0 0.0
    %3689 = vmatprep.subr.mxu0 0.0
    %3690 = vmatpush2.msra.mxu0 0.0
    %3691 = vmatprep.subr.mxu0 0.0
    %3692 = vmatpush2.msra.mxu0 0.0
    %3693 = vmatprep.subr.mxu0 0.0
    %3694 = vmatpush2.msra.mxu0 0.0
    %3695 = vmatprep.subr.mxu0 0.0
    %3696 = vmatpush2.msra.mxu0 0.0
    %3697 = vmatprep.subr.mxu0 0.0
    %3698 = vmatpush2.msra.mxu0 0.0
    %3699 = vmatprep.subr.mxu0 0.0
    %3700 = vmatpush2.msra.mxu0 0.0
    %3701 = vmatprep.mubr.f32.mxu0 0.0
    %3702 = vmatmul.mubr.f32.gmra.mxu0 %v3635
    %v3703 = vpop.f32.mrf.mxu0
    %v3704 = vadd.f32 0.0, %v3703
    %v3705 = vpop.f32.mrf.mxu0
    %3706 = vdwg.mxu0
    %v3707 = vrot.slane %v772, 7
    %3708 = vrot.lane.b32.xlu0 %v3707, 64
    %v3709 = vpop.permute.xlu0 %3708
    %v3711 = vmul.f32 %v3704, %v3709
    %v3712 = vsel %vm145, %v3707, 0
    %3714 = vmatprep.subr.mxu0 0.0
    %3715 = vmatpush1.msra.mxu0 0.0
    %3716 = vmatprep.subr.mxu0 0.0
    %3717 = vmatpush1.msra.mxu0 0.0
    %3718 = vmatprep.subr.mxu0 0.0
    %3719 = vmatpush1.msra.mxu0 0.0
    %3720 = vmatprep.subr.mxu0 0.0
    %3721 = vmatpush1.msra.mxu0 0.0
    %3722 = vmatprep.subr.mxu0 0.0
    %3723 = vmatpush1.msra.mxu0 0.0
    %3724 = vmatprep.subr.mxu0 0.0
    %3725 = vmatpush1.msra.mxu0 0.0
    %3726 = vmatprep.subr.mxu0 0.0
    %3727 = vmatpush1.msra.mxu0 0.0
    %3728 = vmatprep.subr.mxu0 0.0
    %3729 = vmatpush1.msra.mxu0 0.0
    %3730 = vmatprep.subr.mxu0 0.0
    %3731 = vmatpush1.msra.mxu0 0.0
    %3732 = vmatprep.subr.mxu0 0.0
    %3733 = vmatpush1.msra.mxu0 0.0
    %3734 = vmatprep.subr.mxu0 0.0
    %3735 = vmatpush1.msra.mxu0 0.0
    %3736 = vmatprep.subr.mxu0 0.0
    %3737 = vmatpush1.msra.mxu0 0.0
    %3738 = vmatprep.subr.mxu0 0.0
    %3739 = vmatpush1.msra.mxu0 %v3631
    %3740 = vmatprep.subr.mxu0 0.0
    %3741 = vmatpush1.msra.mxu0 %v3626
    %3742 = vmatprep.subr.mxu0 0.0
    %3743 = vmatpush1.msra.mxu0 %v3621
    %3744 = vmatprep.subr.mxu0 0.0
    %3745 = vmatpush1.msra.mxu0 %v3616
    %3746 = vmatprep.subr.mxu0 0.0
    %3747 = vmatpush2.msra.mxu0 0.0
    %3748 = vmatprep.subr.mxu0 0.0
    %3749 = vmatpush2.msra.mxu0 0.0
    %3750 = vmatprep.subr.mxu0 0.0
    %3751 = vmatpush2.msra.mxu0 0.0
    %3752 = vmatprep.subr.mxu0 0.0
    %3753 = vmatpush2.msra.mxu0 0.0
    %3754 = vmatprep.subr.mxu0 0.0
    %3755 = vmatpush2.msra.mxu0 0.0
    %3756 = vmatprep.subr.mxu0 0.0
    %3757 = vmatpush2.msra.mxu0 0.0
    %3758 = vmatprep.subr.mxu0 0.0
    %3759 = vmatpush2.msra.mxu0 0.0
    %3760 = vmatprep.subr.mxu0 0.0
    %3761 = vmatpush2.msra.mxu0 0.0
    %3762 = vmatprep.subr.mxu0 0.0
    %3763 = vmatpush2.msra.mxu0 0.0
    %3764 = vmatprep.subr.mxu0 0.0
    %3765 = vmatpush2.msra.mxu0 0.0
    %3766 = vmatprep.subr.mxu0 0.0
    %3767 = vmatpush2.msra.mxu0 0.0
    %3768 = vmatprep.subr.mxu0 0.0
    %3769 = vmatpush2.msra.mxu0 0.0
    %3770 = vmatprep.subr.mxu0 0.0
    %3771 = vmatpush2.msra.mxu0 0.0
    %3772 = vmatprep.subr.mxu0 0.0
    %3773 = vmatpush2.msra.mxu0 0.0
    %3774 = vmatprep.subr.mxu0 0.0
    %3775 = vmatpush2.msra.mxu0 0.0
    %3776 = vmatprep.subr.mxu0 0.0
    %3777 = vmatpush2.msra.mxu0 0.0
    %3778 = vmatprep.mubr.f32.mxu0 0.0
    %3779 = vmatmul.mubr.f32.gmra.mxu0 %v3712
    %v3780 = vpop.f32.mrf.mxu0
    %v3781 = vadd.f32 %v3711, %v3780
    %v3782 = vpop.f32.mrf.mxu0
    %3783 = vdwg.mxu0
    %3784 = vst.msk [vmem:[#allocation2 + $0x7] sm:$0x1] %vm1170, %v3781
    %v3785 = vlaneseq
    %v3786 = vshrl.u32 %v3785, 7
    %v3787 = vsub.s32 7, %v3786
    %v3788 = vrot.slane %v947, %v3787
    %v3789 = vmul.f32 %v956, %v3788
    %v3790 = vmul.f32 %v957, %v3788
    %v3791 = vmul.f32 %v958, %v3788
    %v3792 = vmul.f32 %v959, %v3788
    %v3793 = vlaneseq
    %v3794 = vshrl.u32 %v3793, 7
    %v3795 = vsub.s32 7, %v3794
    %v3796 = vrot.slane %v772, %v3795
    %3798 = vrot.lane.b32.xlu0 %v3796, 96
    %v3799 = vpop.permute.xlu0 %3798
    %v3801 = vmul.f32 %v956, %v3799
    %v3802 = vmul.f32 %v957, %v3799
    %v3803 = vmul.f32 %v958, %v3799
    %v3804 = vmul.f32 %v959, %v3799
    %3805 = vrot.lane.b32.xlu0 %v3796, 64
    %v3806 = vpop.permute.xlu0 %3805
    %v3808 = vmul.f32 %v1006, %v3806
    %v3809 = vmul.f32 %v1007, %v3806
    %v3810 = vmul.f32 %v1008, %v3806
    %v3811 = vmul.f32 %v1009, %v3806
    %v3813 = vsel %vm145, %v3801, 0
    %v3816 = vsel %vm145, %v3802, 0
    %v3819 = vsel %vm145, %v3803, 0
    %v3822 = vsel %vm145, %v3804, 0
    %3824 = vmatprep.subr.mxu0 0.0
    %3825 = vmatpush1.msra.mxu0 0.0
    %3826 = vmatprep.subr.mxu0 0.0
    %3827 = vmatpush1.msra.mxu0 0.0
    %3828 = vmatprep.subr.mxu0 0.0
    %3829 = vmatpush1.msra.mxu0 0.0
    %3830 = vmatprep.subr.mxu0 0.0
    %3831 = vmatpush1.msra.mxu0 0.0
    %3832 = vmatprep.subr.mxu0 0.0
    %3833 = vmatpush1.msra.mxu0 0.0
    %3834 = vmatprep.subr.mxu0 0.0
    %3835 = vmatpush1.msra.mxu0 0.0
    %3836 = vmatprep.subr.mxu0 0.0
    %3837 = vmatpush1.msra.mxu0 0.0
    %3838 = vmatprep.subr.mxu0 0.0
    %3839 = vmatpush1.msra.mxu0 0.0
    %3840 = vmatprep.subr.mxu0 0.0
    %3841 = vmatpush1.msra.mxu0 0.0
    %3842 = vmatprep.subr.mxu0 0.0
    %3843 = vmatpush1.msra.mxu0 0.0
    %3844 = vmatprep.subr.mxu0 0.0
    %3845 = vmatpush1.msra.mxu0 0.0
    %3846 = vmatprep.subr.mxu0 0.0
    %3847 = vmatpush1.msra.mxu0 0.0
    %3848 = vmatprep.subr.mxu0 0.0
    %3849 = vmatpush1.msra.mxu0 %v3811
    %3850 = vmatprep.subr.mxu0 0.0
    %3851 = vmatpush1.msra.mxu0 %v3810
    %3852 = vmatprep.subr.mxu0 0.0
    %3853 = vmatpush1.msra.mxu0 %v3809
    %3854 = vmatprep.subr.mxu0 0.0
    %3855 = vmatpush1.msra.mxu0 %v3808
    %3856 = vmatprep.subr.mxu0 0.0
    %3857 = vmatpush2.msra.mxu0 0.0
    %3858 = vmatprep.subr.mxu0 0.0
    %3859 = vmatpush2.msra.mxu0 0.0
    %3860 = vmatprep.subr.mxu0 0.0
    %3861 = vmatpush2.msra.mxu0 0.0
    %3862 = vmatprep.subr.mxu0 0.0
    %3863 = vmatpush2.msra.mxu0 0.0
    %3864 = vmatprep.subr.mxu0 0.0
    %3865 = vmatpush2.msra.mxu0 0.0
    %3866 = vmatprep.subr.mxu0 0.0
    %3867 = vmatpush2.msra.mxu0 0.0
    %3868 = vmatprep.subr.mxu0 0.0
    %3869 = vmatpush2.msra.mxu0 0.0
    %3870 = vmatprep.subr.mxu0 0.0
    %3871 = vmatpush2.msra.mxu0 0.0
    %3872 = vmatprep.subr.mxu0 0.0
    %3873 = vmatpush2.msra.mxu0 0.0
    %3874 = vmatprep.subr.mxu0 0.0
    %3875 = vmatpush2.msra.mxu0 0.0
    %3876 = vmatprep.subr.mxu0 0.0
    %3877 = vmatpush2.msra.mxu0 0.0
    %3878 = vmatprep.subr.mxu0 0.0
    %3879 = vmatpush2.msra.mxu0 0.0
    %3880 = vmatprep.subr.mxu0 0.0
    %3881 = vmatpush2.msra.mxu0 0.0
    %3882 = vmatprep.subr.mxu0 0.0
    %3883 = vmatpush2.msra.mxu0 0.0
    %3884 = vmatprep.subr.mxu0 0.0
    %3885 = vmatpush2.msra.mxu0 0.0
    %3886 = vmatprep.subr.mxu0 0.0
    %3887 = vmatpush2.msra.mxu0 0.0
    %3888 = vmatprep.mubr.f32.mxu0 0.0
    %3889 = vmatmul.mubr.f32.gmra.mxu0 %v3813
    %v3890 = vpop.f32.mrf.mxu0
    %v3891 = vadd.f32 0.0, %v3890
    %v3892 = vpop.f32.mrf.mxu0
    %3893 = vmatprep.mubr.f32.mxu0 0.0
    %3894 = vmatmul.mubr.f32.gmra.mxu0 %v3816
    %v3895 = vpop.f32.mrf.mxu0
    %v3896 = vadd.f32 0.0, %v3895
    %v3897 = vpop.f32.mrf.mxu0
    %3898 = vmatprep.mubr.f32.mxu0 0.0
    %3899 = vmatmul.mubr.f32.gmra.mxu0 %v3819
    %v3900 = vpop.f32.mrf.mxu0
    %v3901 = vadd.f32 0.0, %v3900
    %v3902 = vpop.f32.mrf.mxu0
    %3903 = vmatprep.mubr.f32.mxu0 0.0
    %3904 = vmatmul.mubr.f32.gmra.mxu0 %v3822
    %v3905 = vpop.f32.mrf.mxu0
    %v3906 = vadd.f32 0.0, %v3905
    %v3907 = vpop.f32.mrf.mxu0
    %3908 = vdwg.mxu0
    %v3910 = vsel %vm145, %v3789, 0
    %v3913 = vsel %vm145, %v3790, 0
    %v3916 = vsel %vm145, %v3791, 0
    %v3919 = vsel %vm145, %v3792, 0
    %3921 = vmatprep.subr.mxu0 0.0
    %3922 = vmatpush1.msra.mxu0 0.0
    %3923 = vmatprep.subr.mxu0 0.0
    %3924 = vmatpush1.msra.mxu0 0.0
    %3925 = vmatprep.subr.mxu0 0.0
    %3926 = vmatpush1.msra.mxu0 0.0
    %3927 = vmatprep.subr.mxu0 0.0
    %3928 = vmatpush1.msra.mxu0 0.0
    %3929 = vmatprep.subr.mxu0 0.0
    %3930 = vmatpush1.msra.mxu0 0.0
    %3931 = vmatprep.subr.mxu0 0.0
    %3932 = vmatpush1.msra.mxu0 0.0
    %3933 = vmatprep.subr.mxu0 0.0
    %3934 = vmatpush1.msra.mxu0 0.0
    %3935 = vmatprep.subr.mxu0 0.0
    %3936 = vmatpush1.msra.mxu0 0.0
    %3937 = vmatprep.subr.mxu0 0.0
    %3938 = vmatpush1.msra.mxu0 0.0
    %3939 = vmatprep.subr.mxu0 0.0
    %3940 = vmatpush1.msra.mxu0 0.0
    %3941 = vmatprep.subr.mxu0 0.0
    %3942 = vmatpush1.msra.mxu0 0.0
    %3943 = vmatprep.subr.mxu0 0.0
    %3944 = vmatpush1.msra.mxu0 0.0
    %3945 = vmatprep.subr.mxu0 0.0
    %3946 = vmatpush1.msra.mxu0 %v3631
    %3947 = vmatprep.subr.mxu0 0.0
    %3948 = vmatpush1.msra.mxu0 %v3626
    %3949 = vmatprep.subr.mxu0 0.0
    %3950 = vmatpush1.msra.mxu0 %v3621
    %3951 = vmatprep.subr.mxu0 0.0
    %3952 = vmatpush1.msra.mxu0 %v3616
    %3953 = vmatprep.subr.mxu0 0.0
    %3954 = vmatpush2.msra.mxu0 0.0
    %3955 = vmatprep.subr.mxu0 0.0
    %3956 = vmatpush2.msra.mxu0 0.0
    %3957 = vmatprep.subr.mxu0 0.0
    %3958 = vmatpush2.msra.mxu0 0.0
    %3959 = vmatprep.subr.mxu0 0.0
    %3960 = vmatpush2.msra.mxu0 0.0
    %3961 = vmatprep.subr.mxu0 0.0
    %3962 = vmatpush2.msra.mxu0 0.0
    %3963 = vmatprep.subr.mxu0 0.0
    %3964 = vmatpush2.msra.mxu0 0.0
    %3965 = vmatprep.subr.mxu0 0.0
    %3966 = vmatpush2.msra.mxu0 0.0
    %3967 = vmatprep.subr.mxu0 0.0
    %3968 = vmatpush2.msra.mxu0 0.0
    %3969 = vmatprep.subr.mxu0 0.0
    %3970 = vmatpush2.msra.mxu0 0.0
    %3971 = vmatprep.subr.mxu0 0.0
    %3972 = vmatpush2.msra.mxu0 0.0
    %3973 = vmatprep.subr.mxu0 0.0
    %3974 = vmatpush2.msra.mxu0 0.0
    %3975 = vmatprep.subr.mxu0 0.0
    %3976 = vmatpush2.msra.mxu0 0.0
    %3977 = vmatprep.subr.mxu0 0.0
    %3978 = vmatpush2.msra.mxu0 0.0
    %3979 = vmatprep.subr.mxu0 0.0
    %3980 = vmatpush2.msra.mxu0 0.0
    %3981 = vmatprep.subr.mxu0 0.0
    %3982 = vmatpush2.msra.mxu0 0.0
    %3983 = vmatprep.subr.mxu0 0.0
    %3984 = vmatpush2.msra.mxu0 0.0
    %3985 = vmatprep.mubr.f32.mxu0 0.0
    %3986 = vmatmul.mubr.f32.gmra.mxu0 %v3910
    %v3987 = vpop.f32.mrf.mxu0
    %v3988 = vadd.f32 %v3891, %v3987
    %v3989 = vpop.f32.mrf.mxu0
    %3990 = vmatprep.mubr.f32.mxu0 0.0
    %3991 = vmatmul.mubr.f32.gmra.mxu0 %v3913
    %v3992 = vpop.f32.mrf.mxu0
    %v3993 = vadd.f32 %v3896, %v3992
    %v3994 = vpop.f32.mrf.mxu0
    %3995 = vmatprep.mubr.f32.mxu0 0.0
    %3996 = vmatmul.mubr.f32.gmra.mxu0 %v3916
    %v3997 = vpop.f32.mrf.mxu0
    %v3998 = vadd.f32 %v3901, %v3997
    %v3999 = vpop.f32.mrf.mxu0
    %4000 = vmatprep.mubr.f32.mxu0 0.0
    %4001 = vmatmul.mubr.f32.gmra.mxu0 %v3919
    %v4002 = vpop.f32.mrf.mxu0
    %v4003 = vadd.f32 %v3906, %v4002
    %v4004 = vpop.f32.mrf.mxu0
    %4005 = vdwg.mxu0
    %4006 = vst.msk [vmem:[%s19] sm:$0xff] %vm145, %v3988
    %4007 = vst.msk [vmem:[%s19 + $0x8] sm:$0xff] %vm145, %v3993
    %4008 = vst.msk [vmem:[%s19 + $0x10] sm:$0xff] %vm145, %v3998
    %4009 = vst.msk [vmem:[%s19 + $0x18] sm:$0xff] %vm145, %v4003
    %v4010 = vld [vmem:[#allocation2] sm:$0xff]
    %v4012 = vsel %vm145, %v4010, 0
    %4014 = vmatprep.subr.mxu0 0.0
    %4015 = vmatpush1.msra.mxu0 0.0
    %4016 = vmatprep.subr.mxu0 0.0
    %4017 = vmatpush1.msra.mxu0 0.0
    %4018 = vmatprep.subr.mxu0 0.0
    %4019 = vmatpush1.msra.mxu0 0.0
    %4020 = vmatprep.subr.mxu0 0.0
    %4021 = vmatpush1.msra.mxu0 0.0
    %4022 = vmatprep.subr.mxu0 0.0
    %4023 = vmatpush1.msra.mxu0 0.0
    %4024 = vmatprep.subr.mxu0 0.0
    %4025 = vmatpush1.msra.mxu0 0.0
    %4026 = vmatprep.subr.mxu0 0.0
    %4027 = vmatpush1.msra.mxu0 0.0
    %4028 = vmatprep.subr.mxu0 0.0
    %4029 = vmatpush1.msra.mxu0 0.0
    %4030 = vmatprep.subr.mxu0 0.0
    %4031 = vmatpush1.msra.mxu0 0.0
    %4032 = vmatprep.subr.mxu0 0.0
    %4033 = vmatpush1.msra.mxu0 0.0
    %4034 = vmatprep.subr.mxu0 0.0
    %4035 = vmatpush1.msra.mxu0 0.0
    %4036 = vmatprep.subr.mxu0 0.0
    %4037 = vmatpush1.msra.mxu0 0.0
    %4038 = vmatprep.subr.mxu0 0.0
    %4039 = vmatpush1.msra.mxu0 %v1009
    %4040 = vmatprep.subr.mxu0 0.0
    %4041 = vmatpush1.msra.mxu0 %v1008
    %4042 = vmatprep.subr.mxu0 0.0
    %4043 = vmatpush1.msra.mxu0 %v1007
    %4044 = vmatprep.subr.mxu0 0.0
    %4045 = vmatpush1.msra.mxu0 %v1006
    %4046 = vmatprep.subr.mxu0 0.0
    %4047 = vmatpush2.msra.mxu0 0.0
    %4048 = vmatprep.subr.mxu0 0.0
    %4049 = vmatpush2.msra.mxu0 0.0
    %4050 = vmatprep.subr.mxu0 0.0
    %4051 = vmatpush2.msra.mxu0 0.0
    %4052 = vmatprep.subr.mxu0 0.0
    %4053 = vmatpush2.msra.mxu0 0.0
    %4054 = vmatprep.subr.mxu0 0.0
    %4055 = vmatpush2.msra.mxu0 0.0
    %4056 = vmatprep.subr.mxu0 0.0
    %4057 = vmatpush2.msra.mxu0 0.0
    %4058 = vmatprep.subr.mxu0 0.0
    %4059 = vmatpush2.msra.mxu0 0.0
    %4060 = vmatprep.subr.mxu0 0.0
    %4061 = vmatpush2.msra.mxu0 0.0
    %4062 = vmatprep.subr.mxu0 0.0
    %4063 = vmatpush2.msra.mxu0 0.0
    %4064 = vmatprep.subr.mxu0 0.0
    %4065 = vmatpush2.msra.mxu0 0.0
    %4066 = vmatprep.subr.mxu0 0.0
    %4067 = vmatpush2.msra.mxu0 0.0
    %4068 = vmatprep.subr.mxu0 0.0
    %4069 = vmatpush2.msra.mxu0 0.0
    %4070 = vmatprep.subr.mxu0 0.0
    %4071 = vmatpush2.msra.mxu0 0.0
    %4072 = vmatprep.subr.mxu0 0.0
    %4073 = vmatpush2.msra.mxu0 0.0
    %4074 = vmatprep.subr.mxu0 0.0
    %4075 = vmatpush2.msra.mxu0 0.0
    %4076 = vmatprep.subr.mxu0 0.0
    %4077 = vmatpush2.msra.mxu0 0.0
    %4078 = vmatprep.mubr.f32.mxu0 0.0
    %4079 = vmatmul.mubr.f32.gmra.mxu0 %v4012
    %v4080 = vpop.f32.mrf.mxu0
    %v4081 = vadd.f32 0.0, %v4080
    %v4082 = vpop.f32.mrf.mxu0
    %4083 = vdwg.mxu0
    %v4084 = vmul.f32 %v4081, 0.0625
    %v4085 = vsub.f32 %v4010, %v4084
    %v4086 = vmul.f32 %v4085, %v4085
    %v4088 = vsel %vm145, %v4086, 0
    %4090 = vmatprep.subr.mxu0 0.0
    %4091 = vmatpush1.msra.mxu0 0.0
    %4092 = vmatprep.subr.mxu0 0.0
    %4093 = vmatpush1.msra.mxu0 0.0
    %4094 = vmatprep.subr.mxu0 0.0
    %4095 = vmatpush1.msra.mxu0 0.0
    %4096 = vmatprep.subr.mxu0 0.0
    %4097 = vmatpush1.msra.mxu0 0.0
    %4098 = vmatprep.subr.mxu0 0.0
    %4099 = vmatpush1.msra.mxu0 0.0
    %4100 = vmatprep.subr.mxu0 0.0
    %4101 = vmatpush1.msra.mxu0 0.0
    %4102 = vmatprep.subr.mxu0 0.0
    %4103 = vmatpush1.msra.mxu0 0.0
    %4104 = vmatprep.subr.mxu0 0.0
    %4105 = vmatpush1.msra.mxu0 0.0
    %4106 = vmatprep.subr.mxu0 0.0
    %4107 = vmatpush1.msra.mxu0 0.0
    %4108 = vmatprep.subr.mxu0 0.0
    %4109 = vmatpush1.msra.mxu0 0.0
    %4110 = vmatprep.subr.mxu0 0.0
    %4111 = vmatpush1.msra.mxu0 0.0
    %4112 = vmatprep.subr.mxu0 0.0
    %4113 = vmatpush1.msra.mxu0 0.0
    %4114 = vmatprep.subr.mxu0 0.0
    %4115 = vmatpush1.msra.mxu0 %v1009
    %4116 = vmatprep.subr.mxu0 0.0
    %4117 = vmatpush1.msra.mxu0 %v1008
    %4118 = vmatprep.subr.mxu0 0.0
    %4119 = vmatpush1.msra.mxu0 %v1007
    %4120 = vmatprep.subr.mxu0 0.0
    %4121 = vmatpush1.msra.mxu0 %v1006
    %4122 = vmatprep.subr.mxu0 0.0
    %4123 = vmatpush2.msra.mxu0 0.0
    %4124 = vmatprep.subr.mxu0 0.0
    %4125 = vmatpush2.msra.mxu0 0.0
    %4126 = vmatprep.subr.mxu0 0.0
    %4127 = vmatpush2.msra.mxu0 0.0
    %4128 = vmatprep.subr.mxu0 0.0
    %4129 = vmatpush2.msra.mxu0 0.0
    %4130 = vmatprep.subr.mxu0 0.0
    %4131 = vmatpush2.msra.mxu0 0.0
    %4132 = vmatprep.subr.mxu0 0.0
    %4133 = vmatpush2.msra.mxu0 0.0
    %4134 = vmatprep.subr.mxu0 0.0
    %4135 = vmatpush2.msra.mxu0 0.0
    %4136 = vmatprep.subr.mxu0 0.0
    %4137 = vmatpush2.msra.mxu0 0.0
    %4138 = vmatprep.subr.mxu0 0.0
    %4139 = vmatpush2.msra.mxu0 0.0
    %4140 = vmatprep.subr.mxu0 0.0
    %4141 = vmatpush2.msra.mxu0 0.0
    %4142 = vmatprep.subr.mxu0 0.0
    %4143 = vmatpush2.msra.mxu0 0.0
    %4144 = vmatprep.subr.mxu0 0.0
    %4145 = vmatpush2.msra.mxu0 0.0
    %4146 = vmatprep.subr.mxu0 0.0
    %4147 = vmatpush2.msra.mxu0 0.0
    %4148 = vmatprep.subr.mxu0 0.0
    %4149 = vmatpush2.msra.mxu0 0.0
    %4150 = vmatprep.subr.mxu0 0.0
    %4151 = vmatpush2.msra.mxu0 0.0
    %4152 = vmatprep.subr.mxu0 0.0
    %4153 = vmatpush2.msra.mxu0 0.0
    %4154 = vmatprep.mubr.f32.mxu0 0.0
    %4155 = vmatmul.mubr.f32.gmra.mxu0 %v4088
    %v4156 = vpop.f32.mrf.mxu0
    %v4157 = vadd.f32 0.0, %v4156
    %v4158 = vpop.f32.mrf.mxu0
    %4159 = vdwg.mxu0
    %v4160 = vmul.f32 %v4157, 0.0625
    %v4161 = vadd.f32 %v4160, 0.00064
    %v4162 = vrsqrt.pop %v4161
    %v4163 = vmul.f32 %v4085, %v4162
    %v4164 = vld [vmem:[#allocation12] sm:$0x1]
    %v4166 = vlaneseq
    %v4167 = vshrl.u32 %v4166, 7
    %v4168 = vsub.s32 0, %v4167
    %v4169 = vrot.slane %v4164, %v4168
    %v4171 = vmul.f32 %v4163, %v4169
    %v4172 = vld [vmem:[#allocation14] sm:$0x1]
    %v4174 = vlaneseq
    %v4175 = vshrl.u32 %v4174, 7
    %v4176 = vsub.s32 0, %v4175
    %v4177 = vrot.slane %v4172, %v4176
    %v4179 = vadd.f32 %v4171, %v4177
    %v4180 = vxor.u32 %v772, 2147483648
    %v4181 = vmul.f32 %v4180, 1.442695
    %v4182 = vpow.pop %v4181
    %v4183 = vadd.f32 %v4182, 1.0
    %v4184 = vrcp.pop %v4183
    %v4185 = vmul.f32 1.0, %v4184
    %v4186 = vmul.f32 %v772, %v4185
    %4188 = vrot.lane.b32.xlu0 %v4186, 32
    %v4189 = vpop.permute.xlu0 %4188
    %v4191 = vmul.f32 %v4179, %v4189
    %v4192 = vld [vmem:[%s16] sm:$0xff]
    %v4193 = vld [vmem:[%s16 + $0x8] sm:$0xff]
    %v4194 = vld [vmem:[%s16 + $0x10] sm:$0xff]
    %v4195 = vld [vmem:[%s16 + $0x18] sm:$0xff]
    %v4197 = vsel %vm145, %v4191, 0
    %4199 = vmatprep.subr.mxu0 0.0
    %4200 = vmatpush1.msra.mxu0 0.0
    %4201 = vmatprep.subr.mxu0 0.0
    %4202 = vmatpush1.msra.mxu0 0.0
    %4203 = vmatprep.subr.mxu0 0.0
    %4204 = vmatpush1.msra.mxu0 0.0
    %4205 = vmatprep.subr.mxu0 0.0
    %4206 = vmatpush1.msra.mxu0 0.0
    %4207 = vmatprep.subr.mxu0 0.0
    %4208 = vmatpush1.msra.mxu0 0.0
    %4209 = vmatprep.subr.mxu0 0.0
    %4210 = vmatpush1.msra.mxu0 0.0
    %4211 = vmatprep.subr.mxu0 0.0
    %4212 = vmatpush1.msra.mxu0 0.0
    %4213 = vmatprep.subr.mxu0 0.0
    %4214 = vmatpush1.msra.mxu0 0.0
    %4215 = vmatprep.subr.mxu0 0.0
    %4216 = vmatpush1.msra.mxu0 0.0
    %4217 = vmatprep.subr.mxu0 0.0
    %4218 = vmatpush1.msra.mxu0 0.0
    %4219 = vmatprep.subr.mxu0 0.0
    %4220 = vmatpush1.msra.mxu0 0.0
    %4221 = vmatprep.subr.mxu0 0.0
    %4222 = vmatpush1.msra.mxu0 0.0
    %4223 = vmatprep.subr.mxu0 0.0
    %4224 = vmatpush1.msra.mxu0 %v4195
    %4225 = vmatprep.subr.mxu0 0.0
    %4226 = vmatpush1.msra.mxu0 %v4194
    %4227 = vmatprep.subr.mxu0 0.0
    %4228 = vmatpush1.msra.mxu0 %v4193
    %4229 = vmatprep.subr.mxu0 0.0
    %4230 = vmatpush1.msra.mxu0 %v4192
    %4231 = vmatprep.subr.mxu0 0.0
    %4232 = vmatpush2.msra.mxu0 0.0
    %4233 = vmatprep.subr.mxu0 0.0
    %4234 = vmatpush2.msra.mxu0 0.0
    %4235 = vmatprep.subr.mxu0 0.0
    %4236 = vmatpush2.msra.mxu0 0.0
    %4237 = vmatprep.subr.mxu0 0.0
    %4238 = vmatpush2.msra.mxu0 0.0
    %4239 = vmatprep.subr.mxu0 0.0
    %4240 = vmatpush2.msra.mxu0 0.0
    %4241 = vmatprep.subr.mxu0 0.0
    %4242 = vmatpush2.msra.mxu0 0.0
    %4243 = vmatprep.subr.mxu0 0.0
    %4244 = vmatpush2.msra.mxu0 0.0
    %4245 = vmatprep.subr.mxu0 0.0
    %4246 = vmatpush2.msra.mxu0 0.0
    %4247 = vmatprep.subr.mxu0 0.0
    %4248 = vmatpush2.msra.mxu0 0.0
    %4249 = vmatprep.subr.mxu0 0.0
    %4250 = vmatpush2.msra.mxu0 0.0
    %4251 = vmatprep.subr.mxu0 0.0
    %4252 = vmatpush2.msra.mxu0 0.0
    %4253 = vmatprep.subr.mxu0 0.0
    %4254 = vmatpush2.msra.mxu0 0.0
    %4255 = vmatprep.subr.mxu0 0.0
    %4256 = vmatpush2.msra.mxu0 0.0
    %4257 = vmatprep.subr.mxu0 0.0
    %4258 = vmatpush2.msra.mxu0 0.0
    %4259 = vmatprep.subr.mxu0 0.0
    %4260 = vmatpush2.msra.mxu0 0.0
    %4261 = vmatprep.subr.mxu0 0.0
    %4262 = vmatpush2.msra.mxu0 0.0
    %4263 = vmatprep.mubr.f32.mxu0 0.0
    %4264 = vmatmul.mubr.f32.gmra.mxu0 %v4197
    %v4265 = vpop.f32.mrf.mxu0
    %v4266 = vadd.f32 0.0, %v4265
    %v4267 = vpop.f32.mrf.mxu0
    %4268 = vdwg.mxu0
    %v4269 = vadd.f32 %v175, %v4266
    %4270 = vst.msk [vmem:[#allocation15] sm:$0xff] %vm145, %v4269
    %vm4271 = vcmask 261127
    %4272 = vst.msk [vmem:[#allocation16 - $0x7] sm:$0x80] %vm4271, %v175
    // Predicated region
    $region98: #{time_mixer_forward.1} parent=1 // pred_check
      _
    $region99: #{time_mixer_forward.1} parent=1 // pred_check_branch
      %4274 = sbr.rel (0) target = $region101
    $region100: #{time_mixer_forward.1} parent=1 // pred_region
      %s4276 = ssub.s32 128, 128
      %4277 = vsyncadd [#allocation5], %s4276
      %s4279 = sshll.u32 [#allocation15], 4
      %s4280 = int_to_ptr.vmem [resolvable:$true] %s4279
      %4282 = dma.vmem_to_hbm [thread:$0]  %s4280, 128, %s17, [#allocation5]
    $region101: #{time_mixer_forward.1} parent=1 // pred_fallthru
      _
    // Predicated region
    $region102: #{time_mixer_forward.1} parent=1 // pred_check
      _
    $region103: #{time_mixer_forward.1} parent=1 // pred_check_branch
      %4284 = sbr.rel (0) target = $region105
    $region104: #{time_mixer_forward.1} parent=1 // pred_region
      %s4286 = ssub.s32 16, 16
      %4287 = vsyncadd [#allocation17], %s4286
      %s4289 = sshll.u32 [#allocation16], 4
      %s4290 = int_to_ptr.vmem [resolvable:$true] %s4289
      %4292 = dma.vmem_to_hbm [thread:$0]  %s4290, 16, %s18, [#allocation17]
    $region105: #{time_mixer_forward.1} parent=1 // pred_fallthru
      _
    // Predicated region
    $region106: #{time_mixer_forward.1} parent=1 // pred_check
      _
    $region107: #{time_mixer_forward.1} parent=1 // pred_check_branch
      %4294 = sbr.rel (0) target = $region109
    $region108: #{time_mixer_forward.1} parent=1 // pred_region
      _
    $region109: #{time_mixer_forward.1} parent=1 // pred_fallthru
      _
    // Predicated region
    $region110: #{time_mixer_forward.1} parent=1 // pred_check
      _
    $region111: #{time_mixer_forward.1} parent=1 // pred_check_branch
      %4296 = sbr.rel (0) target = $region113
    $region112: #{time_mixer_forward.1} parent=1 // pred_region
      %4297 = dma.done [#allocation5], 128
    $region113: #{time_mixer_forward.1} parent=1 // pred_fallthru
      _
    // Predicated region
    $region114: #{time_mixer_forward.1} parent=1 // pred_check
      _
    $region115: #{time_mixer_forward.1} parent=1 // pred_check_branch
      %4299 = sbr.rel (0) target = $region117
    $region116: #{time_mixer_forward.1} parent=1 // pred_region
      %4300 = dma.done [#allocation17], 16
    $region117: #{time_mixer_forward.1} parent=1 // pred_fallthru
      _
    // Predicated region
    $region118: #{time_mixer_forward.1} parent=1 // pred_check
      _
    $region119: #{time_mixer_forward.1} parent=1 // pred_check_branch
      %4302 = sbr.rel (0) target = $region121
    $region120: #{time_mixer_forward.1} parent=1 // pred_region
      _
    $region121: #{time_mixer_forward.1} parent=1 // pred_fallthru
      _
    %4303 = vsyncpa [#allocation4], 1
    %4304 = vsyncpa [#allocation7], 1
    %4305 = vsyncpa [#allocation10], 1
    %4306 = vsyncpa [#allocation13], 1
    %4307 = vsyncpa [#allocation5], 1
    %4308 = vsyncpa [#allocation17], 1

</llo_original>
